<compile_context>
chip_gen: v6e
topology: v6e:2x2x1
jax: 0.10.0
libtpu: 0.0.40
codegen_flags: <defaults>
</compile_context>

<pallas_src>
import functools
import math

import jax
import jax.numpy as jnp
from jax import lax
from jax.experimental import pallas as pl
from jax.experimental.pallas import tpu as pltpu

VMEM = pl.BlockSpec(memory_space=pltpu.MemorySpace.VMEM)


# ------------------------------------------------------------------ weight packing helpers
def _round_up(n, m):
    return ((n + m - 1) // m) * m


def _pack_mats(entries):
    """Pack 2-D matrices into one (R, width) buffer; rows padded to /8, cols zero-padded."""
    width = 128
    for _, m in entries:
        width = max(width, _round_up(m.shape[1], 128))
    blocks, offs, r = [], {}, 0
    for name, m in entries:
        m = jnp.asarray(m, jnp.float32)
        nr, nc = m.shape
        nrp = _round_up(nr, 8)
        blocks.append(jnp.zeros((nrp, width), jnp.float32).at[:nr, :nc].set(m))
        offs[name] = (r, nr, nc)
        r += nrp
    return jnp.concatenate(blocks, axis=0), offs


def _pack_rows(entries):
    """Pack bias/gamma/beta row vectors into one (NB, width) buffer, one row each."""
    width = 128
    for _, v in entries:
        width = max(width, _round_up(int(v.shape[-1]), 128))
    rows, offs = [], {}
    for i, (name, v) in enumerate(entries):
        v = jnp.asarray(v, jnp.float32).reshape(1, -1)
        rows.append(jnp.zeros((1, width), jnp.float32).at[:, :v.shape[1]].set(v))
        offs[name] = (i, v.shape[1])
    return jnp.concatenate(rows, axis=0), offs


# ------------------------------------------------------------------ parameters
def init_params(key, H, num_regular, category_counts, num_static, out_size):
    keys = iter(jax.random.split(key, 512))

    def rand(shape, scale=0.1):
        return (scale * jax.random.normal(next(keys), shape)).astype(jnp.float32)

    def grn_raw():
        return dict(w1=rand((H, H)), b1=rand((1, H)),
                    w2=rand((H, H)), b2=rand((1, H)),
                    wg=rand((H, H)), bg=rand((1, H)),
                    lng=jnp.ones((1, H), jnp.float32),
                    lnb=jnp.zeros((1, H), jnp.float32))

    def fuse(g):
        # Pre-compose gate_fc o fc2 (exact reassociation):
        #   gate = sigmoid(fc2(elu) @ Wg + bg) = sigmoid(elu @ (W2 @ Wg) + (b2 @ Wg + bg))
        return dict(w1=g['w1'], b1=g['b1'], w2=g['w2'], b2=g['b2'],
                    wg=g['w2'] @ g['wg'], bg=g['b2'] @ g['wg'] + g['bg'],
                    lng=g['lng'], lnb=g['lnb'])

    def blkdiag(ms):
        n = len(ms)
        rows = []
        for i, m in enumerate(ms):
            row = [m if j == i else jnp.zeros((m.shape[0], ms[j].shape[1]), jnp.float32)
                   for j in range(n)]
            rows.append(jnp.concatenate(row, axis=1))
        return jnp.concatenate(rows, axis=0)

    def catl(vs):
        return jnp.concatenate(vs, axis=-1)

    Mblk = jnp.ones((H, H), jnp.float32) / H          # per-H-block mean (as a matmul)

    # TODO(synk): static_selection / static_grns are used but never defined in the reference
    # __init__; implemented as Linear(num_static*H -> num_static) + one H->H GRN per static
    # variable (standard TFT static variable-selection network).
    sg = [fuse(grn_raw()) for _ in range(num_static)]
    cg = [fuse(grn_raw()) for _ in range(3)]          # enrichment, state_h, state_c
    tg = [fuse(grn_raw()) for _ in range(3)]          # temporal, static-enrichment, decoder

    wents = [
        # TODO(synk): the reference builds a fresh, untrained nn.Linear(1, H) inside forward()
        # for every regular variable on every call; here those are fixed deterministic params.
        ('reg_w', rand((num_regular, H))),
        ('reg_b', rand((num_regular, H))),
    ]
    for i, c in enumerate(category_counts):
        wents.append((f'emb{i}', rand((c, H), 1.0)))
    wents += [
        ('wsel', rand((num_static * H, num_static))),
        # batched per-static GRNs (block-diagonal weights, exact)
        ('sg_w1', blkdiag([g['w1'] for g in sg])),
        ('sg_w2', blkdiag([g['w2'] for g in sg])),
        ('sg_wg', blkdiag([g['wg'] for g in sg])),
        ('sg_M', blkdiag([Mblk] * num_static)),
        ('sel_E', jnp.kron(jnp.eye(num_static, dtype=jnp.float32),
                           jnp.ones((1, H), jnp.float32))),        # expand sel weights to lanes
        ('sel_S', jnp.kron(jnp.ones((num_static, 1), jnp.float32),
                           jnp.eye(H, dtype=jnp.float32))),        # sum over variable blocks
        # batched static-context GRNs (shared input -> concat w1, block-diag fc2/gate)
        ('cg_w1', catl([g['w1'] for g in cg])),
        ('cg_w2', blkdiag([g['w2'] for g in cg])),
        ('cg_wg', blkdiag([g['wg'] for g in cg])),
        ('cg_M', blkdiag([Mblk] * 3)),
        ('lstm_wih', rand((H, 4 * H))),
        ('lstm_whh', rand((H, 4 * H))),
    ]
    for k, g in enumerate(tg):
        wents += [(f'tg{k}_w1', g['w1']), (f'tg{k}_w2', g['w2']), (f'tg{k}_wg', g['wg'])]
    wents += [
        ('enrich_wc', rand((H, H))),
        ('wqkv', jnp.concatenate([rand((H, H)), rand((H, H)), rand((H, H))], axis=1)),
        ('wo', rand((H, H))),
        ('out_w', rand((H, out_size))),
    ]

    bents = [
        ('bsel', rand((1, num_static))),
        ('sg_b1', catl([g['b1'] for g in sg])),
        ('sg_b2', catl([g['b2'] for g in sg])),
        ('sg_bg', catl([g['bg'] for g in sg])),
        ('sg_lng', catl([g['lng'] for g in sg])),
        ('sg_lnb', catl([g['lnb'] for g in sg])),
        ('cg_b1', catl([g['b1'] for g in cg])),
        ('cg_b2', catl([g['b2'] for g in cg])),
        ('cg_bg', catl([g['bg'] for g in cg])),
        ('cg_lng', catl([g['lng'] for g in cg])),
        ('cg_lnb', catl([g['lnb'] for g in cg])),
        # TODO(synk): LSTM uses a single fused bias (equivalent to PyTorch's b_ih + b_hh).
        ('lstm_b', rand((1, 4 * H))),
    ]
    for k, g in enumerate(tg):
        bents += [(f'tg{k}_b1', g['b1']), (f'tg{k}_b2', g['b2']), (f'tg{k}_bg', g['bg']),
                  (f'tg{k}_lng', g['lng']), (f'tg{k}_lnb', g['lnb'])]
    bents += [('out_b', rand((1, out_size)))]

    wbuf, woff = _pack_mats(wents)
    bbuf, boff = _pack_rows(bents)
    return wbuf, bbuf, woff, boff


# ------------------------------------------------------------------ fused forward kernel
def _build_kernel(cfg, woff, boff):
    B, T, H = cfg['B'], cfg['T'], cfg['hidden']
    nr = cfg['num_regular']
    cat_counts = cfg['category_counts']
    ncat = len(cat_counts)
    static_loc = cfg['static_input_loc']
    known_reg = cfg['known_regular_inputs']
    known_cat = cfg['known_categorical_inputs']
    out_size = cfg['output_size']
    NV = nr + ncat

    def kernel(x_ref, wbuf_ref, bbuf_ref, o_ref):
        def W(name):
            r, nrw, ncw = woff[name]
            return wbuf_ref[r:r + nrw, 0:ncw]

        def Bv(name):
            r, ncw = boff[name]
            return bbuf_ref[r:r + 1, 0:ncw]

        def elu(v):
            return jnp.where(v > 0, v, jnp.exp(jnp.minimum(v, 0.0)) - 1.0)

        def grn1(x, tag, extra=None):
            """GRN with H-wide I/O; hidden & gate via two separate matmuls (no lane split)."""
            h = jnp.dot(x, W(tag + '_w1'), preferred_element_type=jnp.float32) + Bv(tag + '_b1')
            if extra is not None:
                h = h + extra                                   # additional context (pre-ELU)
            h = elu(h)
            hidden = (jnp.dot(h, W(tag + '_w2'), preferred_element_type=jnp.float32)
                      + Bv(tag + '_b2'))
            gate = jax.nn.sigmoid(
                jnp.dot(h, W(tag + '_wg'), preferred_element_type=jnp.float32) + Bv(tag + '_bg'))
            y = x + hidden * gate
            mu = jnp.mean(y, axis=-1, keepdims=True)
            var = jnp.mean((y - mu) ** 2, axis=-1, keepdims=True)
            return (y - mu) * lax.rsqrt(var + 1e-5) * Bv(tag + '_lng') + Bv(tag + '_lnb')

        def grn_batched(x, skip, tag):
            """G independent GRNs batched along lanes (block-diag weights built at init).

            Per-H-block LayerNorm statistics are computed with a block-averaging matmul so no
            cross-lane reshuffle / reshape is needed."""
            h = jnp.dot(x, W(tag + '_w1'), preferred_element_type=jnp.float32) + Bv(tag + '_b1')
            h = elu(h)
            hidden = (jnp.dot(h, W(tag + '_w2'), preferred_element_type=jnp.float32)
                      + Bv(tag + '_b2'))
            gate = jax.nn.sigmoid(
                jnp.dot(h, W(tag + '_wg'), preferred_element_type=jnp.float32) + Bv(tag + '_bg'))
            y = skip + hidden * gate
            M = W(tag + '_M')
            mu = jnp.dot(y, M, preferred_element_type=jnp.float32)
            var = jnp.dot((y - mu) ** 2, M, preferred_element_type=jnp.float32)
            return (y - mu) * lax.rsqrt(var + 1e-5) * Bv(tag + '_lng') + Bv(tag + '_lnb')

        # ---- transform_inputs, fused in-kernel ----
        xall = x_ref[...]                                       # (B, T, NV)
        x2 = xall.reshape(B * T, NV)                            # b-major rows
        x0 = xall[:, 0, :]                                      # first timestep (B, NV)
        reg_w = W('reg_w')
        reg_b = W('reg_b')

        def reg_proj(col_vals, i):                              # Linear(1, H) on a value column
            return col_vals * reg_w[i:i + 1, :] + reg_b[i:i + 1, :]

        def cat_embed(col_vals, i, n_rows):                     # one-hot matmul (no gather)
            ids = col_vals.astype(jnp.int32)                    # (N, 1)
            onehot = (lax.broadcasted_iota(jnp.int32, (n_rows, cat_counts[i]), 1)
                      == ids).astype(jnp.float32)
            return jnp.dot(onehot, W(f'emb{i}'), preferred_element_type=jnp.float32)

        static_blocks = []
        for i in range(nr):
            if i in static_loc:
                static_blocks.append(reg_proj(x0[:, i:i + 1], i))
        for i in range(ncat):
            if nr + i in static_loc:
                static_blocks.append(cat_embed(x0[:, nr + i:nr + i + 1], i, B))
        static2 = (static_blocks[0] if len(static_blocks) == 1
                   else jnp.concatenate(static_blocks, axis=-1))            # (B, ns*H)

        hist_blocks = []                                        # reference order: unknown, known
        for i in range(nr):
            if i not in known_reg and i not in static_loc:
                hist_blocks.append(reg_proj(x2[:, i:i + 1], i))
        for i in range(ncat):
            if i not in known_cat and nr + i not in static_loc:
                hist_blocks.append(cat_embed(x2[:, nr + i:nr + i + 1], i, B * T))
        for i in range(nr):
            if i in known_reg and i not in static_loc:
                hist_blocks.append(reg_proj(x2[:, i:i + 1], i))
        for i in range(ncat):
            if i in known_cat and nr + i not in static_loc:
                hist_blocks.append(cat_embed(x2[:, nr + i:nr + i + 1], i, B * T))
        hist2 = (hist_blocks[0] if len(hist_blocks) == 1
                 else jnp.concatenate(hist_blocks, axis=-1))                # (B*T, H)

        # ---- static variable selection (single matmul + exact softmax) ----
        logits = jnp.dot(static2, W('wsel'), preferred_element_type=jnp.float32) + Bv('bsel')
        logits = logits - jnp.max(logits, axis=-1, keepdims=True)
        e = jnp.exp(logits)
        sel_w = e / jnp.sum(e, axis=-1, keepdims=True)                      # (B, ns)

        # ---- per-static-variable GRNs (one batched GRN) + weighted sum -> static context ----
        sgrn = grn_batched(static2, static2, 'sg')                          # (B, ns*H)
        sel_exp = jnp.dot(sel_w, W('sel_E'), preferred_element_type=jnp.float32)
        static_ctx = jnp.dot(sgrn * sel_exp, W('sel_S'),
                             preferred_element_type=jnp.float32)            # (B, H)

        # ---- static-context GRNs (enrichment, state_h, state_c) as one batched GRN ----
        # (the reference's "static_context_variable_selection" GRN result is discarded -> skipped)
        skip3 = jnp.concatenate([static_ctx, static_ctx, static_ctx], axis=-1)
        cgrn = grn_batched(static_ctx, skip3, 'cg')                         # (B, 3H)
        ctx_enrich = cgrn[:, 0:H]
        state_h = cgrn[:, H:2 * H]
        state_c = cgrn[:, 2 * H:3 * H]

        # ---- LSTM (input projection hoisted, T statically unrolled, no VMEM scratch) ----
        # TODO(synk): reference does .unsqueeze(0).repeat(1, B, 1) which builds an invalid
        # (1, B*B, H) hidden state for B > 1; the intended per-batch (B, H) initial state is used.
        xw = (jnp.dot(hist2, W('lstm_wih'), preferred_element_type=jnp.float32)
              + Bv('lstm_b')).reshape(B, T, 4 * H)
        whh = W('lstm_whh')
        h = state_h
        c = state_c
        hs = []
        for t in range(T):
            gates = xw[:, t, :] + jnp.dot(h, whh, preferred_element_type=jnp.float32)
            sig = jax.nn.sigmoid(gates)                          # one EUP push over (B, 4H)
            i_g = sig[:, 0:H]                                    # PyTorch gate order i, f, g, o
            f_g = sig[:, H:2 * H]
            o_g = sig[:, 3 * H:4 * H]
            g_g = jnp.tanh(gates[:, 2 * H:3 * H])
            c = f_g * c + i_g * g_g
            h = o_g * jnp.tanh(c)
            hs.append(h)
        lstm2 = jnp.stack(hs, axis=1).reshape(B * T, H)          # b-major rows, matches hist2

        # ---- temporal feature GRN + residual ----
        temporal2 = grn1(lstm2, 'tg0') + hist2

        # ---- static enrichment GRN (additional context, bias-free context_fc) ----
        ctx_add = jnp.dot(ctx_enrich, W('enrich_wc'), preferred_element_type=jnp.float32)
        ctx_add2 = jnp.broadcast_to(ctx_add[:, None, :], (B, T, H)).reshape(B * T, H)
        enriched2 = grn1(temporal2, 'tg1', extra=ctx_add2)

        # ---- causal self-attention (n_head = 1), fused QKV folded over B*T rows ----
        qkv = jnp.dot(enriched2, W('wqkv'),
                      preferred_element_type=jnp.float32).reshape(B, T, 3 * H)
        q = qkv[..., 0:H]
        k = qkv[..., H:2 * H]
        v = qkv[..., 2 * H:3 * H]
        scores = jnp.einsum('bqd,bkd->bqk', q, k,
                            preferred_element_type=jnp.float32) * (1.0 / math.sqrt(H))
        rows = lax.broadcasted_iota(jnp.int32, (T, T), 0)
        cols = lax.broadcasted_iota(jnp.int32, (T, T), 1)
        causal = jnp.broadcast_to((cols <= rows)[None, :, :], (B, T, T))
        scores = jnp.where(causal, scores, jnp.float32(-1e9))    # masked_fill(mask == 0, -1e9)
        scores = scores - jnp.max(scores, axis=-1, keepdims=True)
        es = jnp.exp(scores)
        attn = es / jnp.sum(es, axis=-1, keepdims=True)          # exact softmax
        head = jnp.einsum('bqk,bkd->bqd', attn, v, preferred_element_type=jnp.float32)
        attn2 = (jnp.dot(head.reshape(B * T, H), W('wo'),
                         preferred_element_type=jnp.float32) + enriched2)

        # ---- decoder GRN + residual + output linear + tanh ----
        decoder2 = grn1(attn2, 'tg2')
        transformer2 = decoder2 + temporal2                      # force_output_sharpe_length=None
        out2 = jnp.tanh(jnp.dot(transformer2, W('out_w'),
                                preferred_element_type=jnp.float32) + Bv('out_b'))
        o_ref[...] = out2.reshape(B, T, out_size)

    return kernel


# ------------------------------------------------------------------ full forward
def tft_forward(x, wbuf, bbuf, cfg, woff, boff):
    B, T, _ = x.shape
    cfg = dict(cfg, B=B, T=T)
    kernel = _build_kernel(cfg, woff, boff)
    return pl.pallas_call(
        kernel,
        out_shape=jax.ShapeDtypeStruct((B, T, cfg['output_size']), jnp.float32),
        in_specs=[VMEM, VMEM, VMEM],
        out_specs=VMEM,
    )(x.astype(jnp.float32), wbuf, bbuf)


# ------------------------------------------------------------------ main
if __name__ == "__main__":
    B, T, H = 2, 8, 32
    num_regular = 2
    category_counts = [6]
    cfg = dict(
        hidden=H,
        num_regular=num_regular,
        category_counts=category_counts,
        static_input_loc=[1, 2],          # regular var 1 and categorical var 0 are static
        known_regular_inputs=[0],         # exactly one temporal variable -> LSTM input size = H
        known_categorical_inputs=[],
        num_static=2,
        output_size=1,
    )

    key = jax.random.PRNGKey(0)
    kp, kx, kc = jax.random.split(key, 3)
    wbuf, bbuf, woff, boff = init_params(kp, H, num_regular, category_counts,
                                         num_static=cfg['num_static'],
                                         out_size=cfg['output_size'])

    x_reg = jax.random.normal(kx, (B, T, num_regular), dtype=jnp.float32)
    x_cat = jax.random.randint(kc, (B, T, 1), 0, category_counts[0]).astype(jnp.float32)
    x = jnp.concatenate([x_reg, x_cat], axis=-1)                 # (B, T, 3)

    fwd = jax.jit(functools.partial(tft_forward, cfg=cfg, woff=woff, boff=boff))
    out = jax.block_until_ready(fwd(x, wbuf, bbuf))
    assert out.shape == (B, T, 1)
    assert bool(jnp.all(jnp.isfinite(out)))
    print("KERNEL_OK")
</pallas_src>

<mosaic_0001>
module attributes {stable_mosaic.version = 11 : i64} {
  func.func @kernel(%arg0: memref<2x8x3xf32, #tpu.memory_space<vmem>>, %arg1: memref<1216x128xf32, #tpu.memory_space<vmem>>, %arg2: memref<28x128xf32, #tpu.memory_space<vmem>>, %arg3: memref<2x8x1xf32, #tpu.memory_space<vmem>>) attributes {dimension_semantics = [], scalar_prefetch = 0 : i64, scratch_operands = 0 : i64, tpu.core_type = #tpu.core_type<tc>} {
    %c0 = arith.constant 0 : index
    %c0_0 = arith.constant 0 : index
    %c0_1 = arith.constant 0 : index
    %0 = vector.load %arg0[%c0, %c0_0, %c0_1] : memref<2x8x3xf32, #tpu.memory_space<vmem>>, vector<2x8x3xf32>
    %1 = vector.shape_cast %0 : vector<2x8x3xf32> to vector<16x3xf32>
    %2 = vector.extract_strided_slice %0 {offsets = [0, 0, 0], sizes = [2, 1, 3], strides = [1, 1, 1]} : vector<2x8x3xf32> to vector<2x1x3xf32>
    %3 = vector.shape_cast %2 : vector<2x1x3xf32> to vector<2x3xf32>
    %c0_2 = arith.constant 0 : index
    %c0_3 = arith.constant 0 : index
    %4 = vector.load %arg1[%c0_2, %c0_3] : memref<1216x128xf32, #tpu.memory_space<vmem>>, vector<2x32xf32>
    %c8 = arith.constant 8 : index
    %c0_4 = arith.constant 0 : index
    %5 = vector.load %arg1[%c8, %c0_4] : memref<1216x128xf32, #tpu.memory_space<vmem>>, vector<2x32xf32>
    %6 = vector.extract_strided_slice %3 {offsets = [0, 1], sizes = [2, 1], strides = [1, 1]} : vector<2x3xf32> to vector<2x1xf32>
    %7 = vector.extract_strided_slice %4 {offsets = [1, 0], sizes = [1, 32], strides = [1, 1]} : vector<2x32xf32> to vector<1x32xf32>
    %8 = vector.broadcast %6 : vector<2x1xf32> to vector<2x32xf32>
    %9 = vector.broadcast %7 : vector<1x32xf32> to vector<2x32xf32>
    %10 = arith.mulf %8, %9 : vector<2x32xf32>
    %11 = vector.extract_strided_slice %5 {offsets = [1, 0], sizes = [1, 32], strides = [1, 1]} : vector<2x32xf32> to vector<1x32xf32>
    %12 = vector.broadcast %11 : vector<1x32xf32> to vector<2x32xf32>
    %13 = arith.addf %10, %12 : vector<2x32xf32>
    %14 = vector.extract_strided_slice %3 {offsets = [0, 2], sizes = [2, 1], strides = [1, 1]} : vector<2x3xf32> to vector<2x1xf32>
    %15 = arith.fptosi %14 : vector<2x1xf32> to vector<2x1xi32>
    %16 = tpu.iota {dimensions = array<i32: 1>} : vector<2x6xi32>
    %17 = vector.broadcast %15 : vector<2x1xi32> to vector<2x6xi32>
    %18 = arith.cmpi eq, %16, %17 : vector<2x6xi32>
    %19 = arith.extui %18 : vector<2x6xi1> to vector<2x6xi32>
    %20 = arith.sitofp %19 : vector<2x6xi32> to vector<2x6xf32>
    %c16 = arith.constant 16 : index
    %c0_5 = arith.constant 0 : index
    %21 = vector.load %arg1[%c16, %c0_5] : memref<1216x128xf32, #tpu.memory_space<vmem>>, vector<6x32xf32>
    %cst = arith.constant dense<0.000000e+00> : vector<2x32xf32>
    %22 = tpu.matmul %20, %21, %cst {dimension_numbers = #tpu.dot_dimension_numbers<[1], [0], [0], [1], [0, 0, 1, 1], [], []>} : vector<2x6xf32>, vector<6x32xf32>, vector<2x32xf32> -> vector<2x32xf32>
    %23 = tpu.concatenate %13, %22 in 1 : vector<2x32xf32>, vector<2x32xf32> -> vector<2x64xf32>
    %24 = vector.extract_strided_slice %1 {offsets = [0, 0], sizes = [16, 1], strides = [1, 1]} : vector<16x3xf32> to vector<16x1xf32>
    %25 = vector.extract_strided_slice %4 {offsets = [0, 0], sizes = [1, 32], strides = [1, 1]} : vector<2x32xf32> to vector<1x32xf32>
    %26 = vector.broadcast %24 : vector<16x1xf32> to vector<16x32xf32>
    %27 = vector.broadcast %25 : vector<1x32xf32> to vector<16x32xf32>
    %28 = arith.mulf %26, %27 : vector<16x32xf32>
    %29 = vector.extract_strided_slice %5 {offsets = [0, 0], sizes = [1, 32], strides = [1, 1]} : vector<2x32xf32> to vector<1x32xf32>
    %30 = vector.broadcast %29 : vector<1x32xf32> to vector<16x32xf32>
    %31 = arith.addf %28, %30 : vector<16x32xf32>
    %c24 = arith.constant 24 : index
    %c0_6 = arith.constant 0 : index
    %32 = vector.load %arg1[%c24, %c0_6] : memref<1216x128xf32, #tpu.memory_space<vmem>>, vector<64x2xf32>
    %cst_7 = arith.constant dense<0.000000e+00> : vector<2x2xf32>
    %33 = tpu.matmul %23, %32, %cst_7 {dimension_numbers = #tpu.dot_dimension_numbers<[1], [0], [0], [1], [0, 0, 1, 1], [], []>} : vector<2x64xf32>, vector<64x2xf32>, vector<2x2xf32> -> vector<2x2xf32>
    %c0_8 = arith.constant 0 : index
    %c0_9 = arith.constant 0 : index
    %34 = vector.load %arg2[%c0_8, %c0_9] : memref<28x128xf32, #tpu.memory_space<vmem>>, vector<1x2xf32>
    %35 = vector.broadcast %34 : vector<1x2xf32> to vector<2x2xf32>
    %36 = arith.addf %33, %35 : vector<2x2xf32>
    %cst_10 = arith.constant dense<0xFF800000> : vector<2xf32>
    %37 = vector.multi_reduction <maximumf>, %36, %cst_10 [1] : vector<2x2xf32> to vector<2xf32>
    %38 = vector.shape_cast %37 : vector<2xf32> to vector<2x1xf32>
    %39 = vector.broadcast %38 : vector<2x1xf32> to vector<2x2xf32>
    %40 = arith.subf %36, %39 : vector<2x2xf32>
    %41 = math.exp %40 : vector<2x2xf32>
    %cst_11 = arith.constant dense<0.000000e+00> : vector<2xf32>
    %42 = vector.multi_reduction <add>, %41, %cst_11 [1] : vector<2x2xf32> to vector<2xf32>
    %43 = vector.shape_cast %42 : vector<2xf32> to vector<2x1xf32>
    %44 = vector.broadcast %43 : vector<2x1xf32> to vector<2x2xf32>
    %45 = arith.divf %41, %44 : vector<2x2xf32>
    %c88 = arith.constant 88 : index
    %c0_12 = arith.constant 0 : index
    %46 = vector.load %arg1[%c88, %c0_12] : memref<1216x128xf32, #tpu.memory_space<vmem>>, vector<64x64xf32>
    %cst_13 = arith.constant dense<0.000000e+00> : vector<2x64xf32>
    %47 = tpu.matmul %23, %46, %cst_13 {dimension_numbers = #tpu.dot_dimension_numbers<[1], [0], [0], [1], [0, 0, 1, 1], [], []>} : vector<2x64xf32>, vector<64x64xf32>, vector<2x64xf32> -> vector<2x64xf32>
    %c1 = arith.constant 1 : index
    %c0_14 = arith.constant 0 : index
    %48 = vector.load %arg2[%c1, %c0_14] : memref<28x128xf32, #tpu.memory_space<vmem>>, vector<1x64xf32>
    %49 = vector.broadcast %48 : vector<1x64xf32> to vector<2x64xf32>
    %50 = arith.addf %47, %49 : vector<2x64xf32>
    %cst_15 = arith.constant 0.000000e+00 : f32
    %51 = vector.broadcast %cst_15 : f32 to vector<2x64xf32>
    %52 = arith.cmpf ogt, %50, %51 : vector<2x64xf32>
    %cst_16 = arith.constant 0.000000e+00 : f32
    %53 = vector.broadcast %cst_16 : f32 to vector<2x64xf32>
    %54 = arith.minimumf %50, %53 : vector<2x64xf32>
    %55 = math.exp %54 : vector<2x64xf32>
    %cst_17 = arith.constant 1.000000e+00 : f32
    %56 = vector.broadcast %cst_17 : f32 to vector<2x64xf32>
    %57 = arith.subf %55, %56 : vector<2x64xf32>
    %58 = arith.select %52, %50, %57 : vector<2x64xi1>, vector<2x64xf32>
    %c152 = arith.constant 152 : index
    %c0_18 = arith.constant 0 : index
    %59 = vector.load %arg1[%c152, %c0_18] : memref<1216x128xf32, #tpu.memory_space<vmem>>, vector<64x64xf32>
    %cst_19 = arith.constant dense<0.000000e+00> : vector<2x64xf32>
    %60 = tpu.matmul %58, %59, %cst_19 {dimension_numbers = #tpu.dot_dimension_numbers<[1], [0], [0], [1], [0, 0, 1, 1], [], []>} : vector<2x64xf32>, vector<64x64xf32>, vector<2x64xf32> -> vector<2x64xf32>
    %c2 = arith.constant 2 : index
    %c0_20 = arith.constant 0 : index
    %61 = vector.load %arg2[%c2, %c0_20] : memref<28x128xf32, #tpu.memory_space<vmem>>, vector<1x64xf32>
    %62 = vector.broadcast %61 : vector<1x64xf32> to vector<2x64xf32>
    %63 = arith.addf %60, %62 : vector<2x64xf32>
    %c216 = arith.constant 216 : index
    %c0_21 = arith.constant 0 : index
    %64 = vector.load %arg1[%c216, %c0_21] : memref<1216x128xf32, #tpu.memory_space<vmem>>, vector<64x64xf32>
    %cst_22 = arith.constant dense<0.000000e+00> : vector<2x64xf32>
    %65 = tpu.matmul %58, %64, %cst_22 {dimension_numbers = #tpu.dot_dimension_numbers<[1], [0], [0], [1], [0, 0, 1, 1], [], []>} : vector<2x64xf32>, vector<64x64xf32>, vector<2x64xf32> -> vector<2x64xf32>
    %c3 = arith.constant 3 : index
    %c0_23 = arith.constant 0 : index
    %66 = vector.load %arg2[%c3, %c0_23] : memref<28x128xf32, #tpu.memory_space<vmem>>, vector<1x64xf32>
    %67 = vector.broadcast %66 : vector<1x64xf32> to vector<2x64xf32>
    %68 = arith.addf %65, %67 : vector<2x64xf32>
    %69 = arith.negf %68 : vector<2x64xf32>
    %70 = math.exp %69 : vector<2x64xf32>
    %cst_24 = arith.constant 1.000000e+00 : f32
    %71 = vector.broadcast %cst_24 : f32 to vector<2x64xf32>
    %72 = arith.addf %71, %70 : vector<2x64xf32>
    %73 = arith.divf %71, %72 : vector<2x64xf32>
    %74 = arith.mulf %63, %73 : vector<2x64xf32>
    %75 = arith.addf %23, %74 : vector<2x64xf32>
    %c280 = arith.constant 280 : index
    %c0_25 = arith.constant 0 : index
    %76 = vector.load %arg1[%c280, %c0_25] : memref<1216x128xf32, #tpu.memory_space<vmem>>, vector<64x64xf32>
    %cst_26 = arith.constant dense<0.000000e+00> : vector<2x64xf32>
    %77 = tpu.matmul %75, %76, %cst_26 {dimension_numbers = #tpu.dot_dimension_numbers<[1], [0], [0], [1], [0, 0, 1, 1], [], []>} : vector<2x64xf32>, vector<64x64xf32>, vector<2x64xf32> -> vector<2x64xf32>
    %78 = arith.subf %75, %77 : vector<2x64xf32>
    %79 = arith.mulf %78, %78 : vector<2x64xf32>
    %cst_27 = arith.constant dense<0.000000e+00> : vector<2x64xf32>
    %80 = tpu.matmul %79, %76, %cst_27 {dimension_numbers = #tpu.dot_dimension_numbers<[1], [0], [0], [1], [0, 0, 1, 1], [], []>} : vector<2x64xf32>, vector<64x64xf32>, vector<2x64xf32> -> vector<2x64xf32>
    %81 = arith.subf %75, %77 : vector<2x64xf32>
    %cst_28 = arith.constant 9.99999974E-6 : f32
    %82 = vector.broadcast %cst_28 : f32 to vector<2x64xf32>
    %83 = arith.addf %80, %82 : vector<2x64xf32>
    %84 = math.rsqrt %83 : vector<2x64xf32>
    %85 = arith.mulf %81, %84 : vector<2x64xf32>
    %c4 = arith.constant 4 : index
    %c0_29 = arith.constant 0 : index
    %86 = vector.load %arg2[%c4, %c0_29] : memref<28x128xf32, #tpu.memory_space<vmem>>, vector<1x64xf32>
    %87 = vector.broadcast %86 : vector<1x64xf32> to vector<2x64xf32>
    %88 = arith.mulf %85, %87 : vector<2x64xf32>
    %c5 = arith.constant 5 : index
    %c0_30 = arith.constant 0 : index
    %89 = vector.load %arg2[%c5, %c0_30] : memref<28x128xf32, #tpu.memory_space<vmem>>, vector<1x64xf32>
    %90 = vector.broadcast %89 : vector<1x64xf32> to vector<2x64xf32>
    %91 = arith.addf %88, %90 : vector<2x64xf32>
    %c344 = arith.constant 344 : index
    %c0_31 = arith.constant 0 : index
    %92 = vector.load %arg1[%c344, %c0_31] : memref<1216x128xf32, #tpu.memory_space<vmem>>, vector<2x64xf32>
    %cst_32 = arith.constant dense<0.000000e+00> : vector<2x64xf32>
    %93 = tpu.matmul %45, %92, %cst_32 {dimension_numbers = #tpu.dot_dimension_numbers<[1], [0], [0], [1], [0, 0, 1, 1], [], []>} : vector<2x2xf32>, vector<2x64xf32>, vector<2x64xf32> -> vector<2x64xf32>
    %94 = arith.mulf %91, %93 : vector<2x64xf32>
    %c352 = arith.constant 352 : index
    %c0_33 = arith.constant 0 : index
    %95 = vector.load %arg1[%c352, %c0_33] : memref<1216x128xf32, #tpu.memory_space<vmem>>, vector<64x32xf32>
    %cst_34 = arith.constant dense<0.000000e+00> : vector<2x32xf32>
    %96 = tpu.matmul %94, %95, %cst_34 {dimension_numbers = #tpu.dot_dimension_numbers<[1], [0], [0], [1], [0, 0, 1, 1], [], []>} : vector<2x64xf32>, vector<64x32xf32>, vector<2x32xf32> -> vector<2x32xf32>
    %97 = tpu.concatenate %96, %96, %96 in 1 : vector<2x32xf32>, vector<2x32xf32>, vector<2x32xf32> -> vector<2x96xf32>
    %c416 = arith.constant 416 : index
    %c0_35 = arith.constant 0 : index
    %98 = vector.load %arg1[%c416, %c0_35] : memref<1216x128xf32, #tpu.memory_space<vmem>>, vector<32x96xf32>
    %cst_36 = arith.constant dense<0.000000e+00> : vector<2x96xf32>
    %99 = tpu.matmul %96, %98, %cst_36 {dimension_numbers = #tpu.dot_dimension_numbers<[1], [0], [0], [1], [0, 0, 1, 1], [], []>} : vector<2x32xf32>, vector<32x96xf32>, vector<2x96xf32> -> vector<2x96xf32>
    %c6 = arith.constant 6 : index
    %c0_37 = arith.constant 0 : index
    %100 = vector.load %arg2[%c6, %c0_37] : memref<28x128xf32, #tpu.memory_space<vmem>>, vector<1x96xf32>
    %101 = vector.broadcast %100 : vector<1x96xf32> to vector<2x96xf32>
    %102 = arith.addf %99, %101 : vector<2x96xf32>
    %cst_38 = arith.constant 0.000000e+00 : f32
    %103 = vector.broadcast %cst_38 : f32 to vector<2x96xf32>
    %104 = arith.cmpf ogt, %102, %103 : vector<2x96xf32>
    %cst_39 = arith.constant 0.000000e+00 : f32
    %105 = vector.broadcast %cst_39 : f32 to vector<2x96xf32>
    %106 = arith.minimumf %102, %105 : vector<2x96xf32>
    %107 = math.exp %106 : vector<2x96xf32>
    %cst_40 = arith.constant 1.000000e+00 : f32
    %108 = vector.broadcast %cst_40 : f32 to vector<2x96xf32>
    %109 = arith.subf %107, %108 : vector<2x96xf32>
    %110 = arith.select %104, %102, %109 : vector<2x96xi1>, vector<2x96xf32>
    %c448 = arith.constant 448 : index
    %c0_41 = arith.constant 0 : index
    %111 = vector.load %arg1[%c448, %c0_41] : memref<1216x128xf32, #tpu.memory_space<vmem>>, vector<96x96xf32>
    %cst_42 = arith.constant dense<0.000000e+00> : vector<2x96xf32>
    %112 = tpu.matmul %110, %111, %cst_42 {dimension_numbers = #tpu.dot_dimension_numbers<[1], [0], [0], [1], [0, 0, 1, 1], [], []>} : vector<2x96xf32>, vector<96x96xf32>, vector<2x96xf32> -> vector<2x96xf32>
    %c7 = arith.constant 7 : index
    %c0_43 = arith.constant 0 : index
    %113 = vector.load %arg2[%c7, %c0_43] : memref<28x128xf32, #tpu.memory_space<vmem>>, vector<1x96xf32>
    %114 = vector.broadcast %113 : vector<1x96xf32> to vector<2x96xf32>
    %115 = arith.addf %112, %114 : vector<2x96xf32>
    %c544 = arith.constant 544 : index
    %c0_44 = arith.constant 0 : index
    %116 = vector.load %arg1[%c544, %c0_44] : memref<1216x128xf32, #tpu.memory_space<vmem>>, vector<96x96xf32>
    %cst_45 = arith.constant dense<0.000000e+00> : vector<2x96xf32>
    %117 = tpu.matmul %110, %116, %cst_45 {dimension_numbers = #tpu.dot_dimension_numbers<[1], [0], [0], [1], [0, 0, 1, 1], [], []>} : vector<2x96xf32>, vector<96x96xf32>, vector<2x96xf32> -> vector<2x96xf32>
    %c8_46 = arith.constant 8 : index
    %c0_47 = arith.constant 0 : index
    %118 = vector.load %arg2[%c8_46, %c0_47] : memref<28x128xf32, #tpu.memory_space<vmem>>, vector<1x96xf32>
    %119 = vector.broadcast %118 : vector<1x96xf32> to vector<2x96xf32>
    %120 = arith.addf %117, %119 : vector<2x96xf32>
    %121 = arith.negf %120 : vector<2x96xf32>
    %122 = math.exp %121 : vector<2x96xf32>
    %cst_48 = arith.constant 1.000000e+00 : f32
    %123 = vector.broadcast %cst_48 : f32 to vector<2x96xf32>
    %124 = arith.addf %123, %122 : vector<2x96xf32>
    %125 = arith.divf %123, %124 : vector<2x96xf32>
    %126 = arith.mulf %115, %125 : vector<2x96xf32>
    %127 = arith.addf %97, %126 : vector<2x96xf32>
    %c640 = arith.constant 640 : index
    %c0_49 = arith.constant 0 : index
    %128 = vector.load %arg1[%c640, %c0_49] : memref<1216x128xf32, #tpu.memory_space<vmem>>, vector<96x96xf32>
    %cst_50 = arith.constant dense<0.000000e+00> : vector<2x96xf32>
    %129 = tpu.matmul %127, %128, %cst_50 {dimension_numbers = #tpu.dot_dimension_numbers<[1], [0], [0], [1], [0, 0, 1, 1], [], []>} : vector<2x96xf32>, vector<96x96xf32>, vector<2x96xf32> -> vector<2x96xf32>
    %130 = arith.subf %127, %129 : vector<2x96xf32>
    %131 = arith.mulf %130, %130 : vector<2x96xf32>
    %cst_51 = arith.constant dense<0.000000e+00> : vector<2x96xf32>
    %132 = tpu.matmul %131, %128, %cst_51 {dimension_numbers = #tpu.dot_dimension_numbers<[1], [0], [0], [1], [0, 0, 1, 1], [], []>} : vector<2x96xf32>, vector<96x96xf32>, vector<2x96xf32> -> vector<2x96xf32>
    %133 = arith.subf %127, %129 : vector<2x96xf32>
    %cst_52 = arith.constant 9.99999974E-6 : f32
    %134 = vector.broadcast %cst_52 : f32 to vector<2x96xf32>
    %135 = arith.addf %132, %134 : vector<2x96xf32>
    %136 = math.rsqrt %135 : vector<2x96xf32>
    %137 = arith.mulf %133, %136 : vector<2x96xf32>
    %c9 = arith.constant 9 : index
    %c0_53 = arith.constant 0 : index
    %138 = vector.load %arg2[%c9, %c0_53] : memref<28x128xf32, #tpu.memory_space<vmem>>, vector<1x96xf32>
    %139 = vector.broadcast %138 : vector<1x96xf32> to vector<2x96xf32>
    %140 = arith.mulf %137, %139 : vector<2x96xf32>
    %c10 = arith.constant 10 : index
    %c0_54 = arith.constant 0 : index
    %141 = vector.load %arg2[%c10, %c0_54] : memref<28x128xf32, #tpu.memory_space<vmem>>, vector<1x96xf32>
    %142 = vector.broadcast %141 : vector<1x96xf32> to vector<2x96xf32>
    %143 = arith.addf %140, %142 : vector<2x96xf32>
    %144 = vector.extract_strided_slice %143 {offsets = [0, 0], sizes = [2, 32], strides = [1, 1]} : vector<2x96xf32> to vector<2x32xf32>
    %145 = vector.extract_strided_slice %143 {offsets = [0, 32], sizes = [2, 32], strides = [1, 1]} : vector<2x96xf32> to vector<2x32xf32>
    %146 = vector.extract_strided_slice %143 {offsets = [0, 64], sizes = [2, 32], strides = [1, 1]} : vector<2x96xf32> to vector<2x32xf32>
    %c736 = arith.constant 736 : index
    %c0_55 = arith.constant 0 : index
    %147 = vector.load %arg1[%c736, %c0_55] : memref<1216x128xf32, #tpu.memory_space<vmem>>, vector<32x128xf32>
    %cst_56 = arith.constant dense<0.000000e+00> : vector<16x128xf32>
    %148 = tpu.matmul %31, %147, %cst_56 {dimension_numbers = #tpu.dot_dimension_numbers<[1], [0], [0], [1], [0, 0, 1, 1], [], []>} : vector<16x32xf32>, vector<32x128xf32>, vector<16x128xf32> -> vector<16x128xf32>
    %c11 = arith.constant 11 : index
    %c0_57 = arith.constant 0 : index
    %149 = vector.load %arg2[%c11, %c0_57] : memref<28x128xf32, #tpu.memory_space<vmem>>, vector<1x128xf32>
    %150 = vector.broadcast %149 : vector<1x128xf32> to vector<16x128xf32>
    %151 = arith.addf %148, %150 : vector<16x128xf32>
    %152 = vector.shape_cast %151 : vector<16x128xf32> to vector<2x8x128xf32>
    %c768 = arith.constant 768 : index
    %c0_58 = arith.constant 0 : index
    %153 = vector.load %arg1[%c768, %c0_58] : memref<1216x128xf32, #tpu.memory_space<vmem>>, vector<32x128xf32>
    %154 = vector.extract_strided_slice %152 {offsets = [0, 0, 0], sizes = [2, 1, 128], strides = [1, 1, 1]} : vector<2x8x128xf32> to vector<2x1x128xf32>
    %155 = vector.shape_cast %154 : vector<2x1x128xf32> to vector<2x128xf32>
    %cst_59 = arith.constant dense<0.000000e+00> : vector<2x128xf32>
    %156 = tpu.matmul %145, %153, %cst_59 {dimension_numbers = #tpu.dot_dimension_numbers<[1], [0], [0], [1], [0, 0, 1, 1], [], []>} : vector<2x32xf32>, vector<32x128xf32>, vector<2x128xf32> -> vector<2x128xf32>
    %157 = arith.addf %155, %156 : vector<2x128xf32>
    %158 = arith.negf %157 : vector<2x128xf32>
    %159 = math.exp %158 : vector<2x128xf32>
    %cst_60 = arith.constant 1.000000e+00 : f32
    %160 = vector.broadcast %cst_60 : f32 to vector<2x128xf32>
    %161 = arith.addf %160, %159 : vector<2x128xf32>
    %162 = arith.divf %160, %161 : vector<2x128xf32>
    %163 = vector.extract_strided_slice %162 {offsets = [0, 0], sizes = [2, 32], strides = [1, 1]} : vector<2x128xf32> to vector<2x32xf32>
    %164 = vector.extract_strided_slice %162 {offsets = [0, 32], sizes = [2, 32], strides = [1, 1]} : vector<2x128xf32> to vector<2x32xf32>
    %165 = vector.extract_strided_slice %162 {offsets = [0, 96], sizes = [2, 32], strides = [1, 1]} : vector<2x128xf32> to vector<2x32xf32>
    %166 = vector.extract_strided_slice %157 {offsets = [0, 64], sizes = [2, 32], strides = [1, 1]} : vector<2x128xf32> to vector<2x32xf32>
    %167 = math.tanh %166 : vector<2x32xf32>
    %168 = arith.mulf %164, %146 : vector<2x32xf32>
    %169 = arith.mulf %163, %167 : vector<2x32xf32>
    %170 = arith.addf %168, %169 : vector<2x32xf32>
    %171 = math.tanh %170 : vector<2x32xf32>
    %172 = arith.mulf %165, %171 : vector<2x32xf32>
    %173 = vector.extract_strided_slice %152 {offsets = [0, 1, 0], sizes = [2, 1, 128], strides = [1, 1, 1]} : vector<2x8x128xf32> to vector<2x1x128xf32>
    %174 = vector.shape_cast %173 : vector<2x1x128xf32> to vector<2x128xf32>
    %cst_61 = arith.constant dense<0.000000e+00> : vector<2x128xf32>
    %175 = tpu.matmul %172, %153, %cst_61 {dimension_numbers = #tpu.dot_dimension_numbers<[1], [0], [0], [1], [0, 0, 1, 1], [], []>} : vector<2x32xf32>, vector<32x128xf32>, vector<2x128xf32> -> vector<2x128xf32>
    %176 = arith.addf %174, %175 : vector<2x128xf32>
    %177 = arith.negf %176 : vector<2x128xf32>
    %178 = math.exp %177 : vector<2x128xf32>
    %cst_62 = arith.constant 1.000000e+00 : f32
    %179 = vector.broadcast %cst_62 : f32 to vector<2x128xf32>
    %180 = arith.addf %179, %178 : vector<2x128xf32>
    %181 = arith.divf %179, %180 : vector<2x128xf32>
    %182 = vector.extract_strided_slice %181 {offsets = [0, 0], sizes = [2, 32], strides = [1, 1]} : vector<2x128xf32> to vector<2x32xf32>
    %183 = vector.extract_strided_slice %181 {offsets = [0, 32], sizes = [2, 32], strides = [1, 1]} : vector<2x128xf32> to vector<2x32xf32>
    %184 = vector.extract_strided_slice %181 {offsets = [0, 96], sizes = [2, 32], strides = [1, 1]} : vector<2x128xf32> to vector<2x32xf32>
    %185 = vector.extract_strided_slice %176 {offsets = [0, 64], sizes = [2, 32], strides = [1, 1]} : vector<2x128xf32> to vector<2x32xf32>
    %186 = math.tanh %185 : vector<2x32xf32>
    %187 = arith.mulf %183, %170 : vector<2x32xf32>
    %188 = arith.mulf %182, %186 : vector<2x32xf32>
    %189 = arith.addf %187, %188 : vector<2x32xf32>
    %190 = math.tanh %189 : vector<2x32xf32>
    %191 = arith.mulf %184, %190 : vector<2x32xf32>
    %192 = vector.extract_strided_slice %152 {offsets = [0, 2, 0], sizes = [2, 1, 128], strides = [1, 1, 1]} : vector<2x8x128xf32> to vector<2x1x128xf32>
    %193 = vector.shape_cast %192 : vector<2x1x128xf32> to vector<2x128xf32>
    %cst_63 = arith.constant dense<0.000000e+00> : vector<2x128xf32>
    %194 = tpu.matmul %191, %153, %cst_63 {dimension_numbers = #tpu.dot_dimension_numbers<[1], [0], [0], [1], [0, 0, 1, 1], [], []>} : vector<2x32xf32>, vector<32x128xf32>, vector<2x128xf32> -> vector<2x128xf32>
    %195 = arith.addf %193, %194 : vector<2x128xf32>
    %196 = arith.negf %195 : vector<2x128xf32>
    %197 = math.exp %196 : vector<2x128xf32>
    %cst_64 = arith.constant 1.000000e+00 : f32
    %198 = vector.broadcast %cst_64 : f32 to vector<2x128xf32>
    %199 = arith.addf %198, %197 : vector<2x128xf32>
    %200 = arith.divf %198, %199 : vector<2x128xf32>
    %201 = vector.extract_strided_slice %200 {offsets = [0, 0], sizes = [2, 32], strides = [1, 1]} : vector<2x128xf32> to vector<2x32xf32>
    %202 = vector.extract_strided_slice %200 {offsets = [0, 32], sizes = [2, 32], strides = [1, 1]} : vector<2x128xf32> to vector<2x32xf32>
    %203 = vector.extract_strided_slice %200 {offsets = [0, 96], sizes = [2, 32], strides = [1, 1]} : vector<2x128xf32> to vector<2x32xf32>
    %204 = vector.extract_strided_slice %195 {offsets = [0, 64], sizes = [2, 32], strides = [1, 1]} : vector<2x128xf32> to vector<2x32xf32>
    %205 = math.tanh %204 : vector<2x32xf32>
    %206 = arith.mulf %202, %189 : vector<2x32xf32>
    %207 = arith.mulf %201, %205 : vector<2x32xf32>
    %208 = arith.addf %206, %207 : vector<2x32xf32>
    %209 = math.tanh %208 : vector<2x32xf32>
    %210 = arith.mulf %203, %209 : vector<2x32xf32>
    %211 = vector.extract_strided_slice %152 {offsets = [0, 3, 0], sizes = [2, 1, 128], strides = [1, 1, 1]} : vector<2x8x128xf32> to vector<2x1x128xf32>
    %212 = vector.shape_cast %211 : vector<2x1x128xf32> to vector<2x128xf32>
    %cst_65 = arith.constant dense<0.000000e+00> : vector<2x128xf32>
    %213 = tpu.matmul %210, %153, %cst_65 {dimension_numbers = #tpu.dot_dimension_numbers<[1], [0], [0], [1], [0, 0, 1, 1], [], []>} : vector<2x32xf32>, vector<32x128xf32>, vector<2x128xf32> -> vector<2x128xf32>
    %214 = arith.addf %212, %213 : vector<2x128xf32>
    %215 = arith.negf %214 : vector<2x128xf32>
    %216 = math.exp %215 : vector<2x128xf32>
    %cst_66 = arith.constant 1.000000e+00 : f32
    %217 = vector.broadcast %cst_66 : f32 to vector<2x128xf32>
    %218 = arith.addf %217, %216 : vector<2x128xf32>
    %219 = arith.divf %217, %218 : vector<2x128xf32>
    %220 = vector.extract_strided_slice %219 {offsets = [0, 0], sizes = [2, 32], strides = [1, 1]} : vector<2x128xf32> to vector<2x32xf32>
    %221 = vector.extract_strided_slice %219 {offsets = [0, 32], sizes = [2, 32], strides = [1, 1]} : vector<2x128xf32> to vector<2x32xf32>
    %222 = vector.extract_strided_slice %219 {offsets = [0, 96], sizes = [2, 32], strides = [1, 1]} : vector<2x128xf32> to vector<2x32xf32>
    %223 = vector.extract_strided_slice %214 {offsets = [0, 64], sizes = [2, 32], strides = [1, 1]} : vector<2x128xf32> to vector<2x32xf32>
    %224 = math.tanh %223 : vector<2x32xf32>
    %225 = arith.mulf %221, %208 : vector<2x32xf32>
    %226 = arith.mulf %220, %224 : vector<2x32xf32>
    %227 = arith.addf %225, %226 : vector<2x32xf32>
    %228 = math.tanh %227 : vector<2x32xf32>
    %229 = arith.mulf %222, %228 : vector<2x32xf32>
    %230 = vector.extract_strided_slice %152 {offsets = [0, 4, 0], sizes = [2, 1, 128], strides = [1, 1, 1]} : vector<2x8x128xf32> to vector<2x1x128xf32>
    %231 = vector.shape_cast %230 : vector<2x1x128xf32> to vector<2x128xf32>
    %cst_67 = arith.constant dense<0.000000e+00> : vector<2x128xf32>
    %232 = tpu.matmul %229, %153, %cst_67 {dimension_numbers = #tpu.dot_dimension_numbers<[1], [0], [0], [1], [0, 0, 1, 1], [], []>} : vector<2x32xf32>, vector<32x128xf32>, vector<2x128xf32> -> vector<2x128xf32>
    %233 = arith.addf %231, %232 : vector<2x128xf32>
    %234 = arith.negf %233 : vector<2x128xf32>
    %235 = math.exp %234 : vector<2x128xf32>
    %cst_68 = arith.constant 1.000000e+00 : f32
    %236 = vector.broadcast %cst_68 : f32 to vector<2x128xf32>
    %237 = arith.addf %236, %235 : vector<2x128xf32>
    %238 = arith.divf %236, %237 : vector<2x128xf32>
    %239 = vector.extract_strided_slice %238 {offsets = [0, 0], sizes = [2, 32], strides = [1, 1]} : vector<2x128xf32> to vector<2x32xf32>
    %240 = vector.extract_strided_slice %238 {offsets = [0, 32], sizes = [2, 32], strides = [1, 1]} : vector<2x128xf32> to vector<2x32xf32>
    %241 = vector.extract_strided_slice %238 {offsets = [0, 96], sizes = [2, 32], strides = [1, 1]} : vector<2x128xf32> to vector<2x32xf32>
    %242 = vector.extract_strided_slice %233 {offsets = [0, 64], sizes = [2, 32], strides = [1, 1]} : vector<2x128xf32> to vector<2x32xf32>
    %243 = math.tanh %242 : vector<2x32xf32>
    %244 = arith.mulf %240, %227 : vector<2x32xf32>
    %245 = arith.mulf %239, %243 : vector<2x32xf32>
    %246 = arith.addf %244, %245 : vector<2x32xf32>
    %247 = math.tanh %246 : vector<2x32xf32>
    %248 = arith.mulf %241, %247 : vector<2x32xf32>
    %249 = vector.extract_strided_slice %152 {offsets = [0, 5, 0], sizes = [2, 1, 128], strides = [1, 1, 1]} : vector<2x8x128xf32> to vector<2x1x128xf32>
    %250 = vector.shape_cast %249 : vector<2x1x128xf32> to vector<2x128xf32>
    %cst_69 = arith.constant dense<0.000000e+00> : vector<2x128xf32>
    %251 = tpu.matmul %248, %153, %cst_69 {dimension_numbers = #tpu.dot_dimension_numbers<[1], [0], [0], [1], [0, 0, 1, 1], [], []>} : vector<2x32xf32>, vector<32x128xf32>, vector<2x128xf32> -> vector<2x128xf32>
    %252 = arith.addf %250, %251 : vector<2x128xf32>
    %253 = arith.negf %252 : vector<2x128xf32>
    %254 = math.exp %253 : vector<2x128xf32>
    %cst_70 = arith.constant 1.000000e+00 : f32
    %255 = vector.broadcast %cst_70 : f32 to vector<2x128xf32>
    %256 = arith.addf %255, %254 : vector<2x128xf32>
    %257 = arith.divf %255, %256 : vector<2x128xf32>
    %258 = vector.extract_strided_slice %257 {offsets = [0, 0], sizes = [2, 32], strides = [1, 1]} : vector<2x128xf32> to vector<2x32xf32>
    %259 = vector.extract_strided_slice %257 {offsets = [0, 32], sizes = [2, 32], strides = [1, 1]} : vector<2x128xf32> to vector<2x32xf32>
    %260 = vector.extract_strided_slice %257 {offsets = [0, 96], sizes = [2, 32], strides = [1, 1]} : vector<2x128xf32> to vector<2x32xf32>
    %261 = vector.extract_strided_slice %252 {offsets = [0, 64], sizes = [2, 32], strides = [1, 1]} : vector<2x128xf32> to vector<2x32xf32>
    %262 = math.tanh %261 : vector<2x32xf32>
    %263 = arith.mulf %259, %246 : vector<2x32xf32>
    %264 = arith.mulf %258, %262 : vector<2x32xf32>
    %265 = arith.addf %263, %264 : vector<2x32xf32>
    %266 = math.tanh %265 : vector<2x32xf32>
    %267 = arith.mulf %260, %266 : vector<2x32xf32>
    %268 = vector.extract_strided_slice %152 {offsets = [0, 6, 0], sizes = [2, 1, 128], strides = [1, 1, 1]} : vector<2x8x128xf32> to vector<2x1x128xf32>
    %269 = vector.shape_cast %268 : vector<2x1x128xf32> to vector<2x128xf32>
    %cst_71 = arith.constant dense<0.000000e+00> : vector<2x128xf32>
    %270 = tpu.matmul %267, %153, %cst_71 {dimension_numbers = #tpu.dot_dimension_numbers<[1], [0], [0], [1], [0, 0, 1, 1], [], []>} : vector<2x32xf32>, vector<32x128xf32>, vector<2x128xf32> -> vector<2x128xf32>
    %271 = arith.addf %269, %270 : vector<2x128xf32>
    %272 = arith.negf %271 : vector<2x128xf32>
    %273 = math.exp %272 : vector<2x128xf32>
    %cst_72 = arith.constant 1.000000e+00 : f32
    %274 = vector.broadcast %cst_72 : f32 to vector<2x128xf32>
    %275 = arith.addf %274, %273 : vector<2x128xf32>
    %276 = arith.divf %274, %275 : vector<2x128xf32>
    %277 = vector.extract_strided_slice %276 {offsets = [0, 0], sizes = [2, 32], strides = [1, 1]} : vector<2x128xf32> to vector<2x32xf32>
    %278 = vector.extract_strided_slice %276 {offsets = [0, 32], sizes = [2, 32], strides = [1, 1]} : vector<2x128xf32> to vector<2x32xf32>
    %279 = vector.extract_strided_slice %276 {offsets = [0, 96], sizes = [2, 32], strides = [1, 1]} : vector<2x128xf32> to vector<2x32xf32>
    %280 = vector.extract_strided_slice %271 {offsets = [0, 64], sizes = [2, 32], strides = [1, 1]} : vector<2x128xf32> to vector<2x32xf32>
    %281 = math.tanh %280 : vector<2x32xf32>
    %282 = arith.mulf %278, %265 : vector<2x32xf32>
    %283 = arith.mulf %277, %281 : vector<2x32xf32>
    %284 = arith.addf %282, %283 : vector<2x32xf32>
    %285 = math.tanh %284 : vector<2x32xf32>
    %286 = arith.mulf %279, %285 : vector<2x32xf32>
    %287 = vector.extract_strided_slice %152 {offsets = [0, 7, 0], sizes = [2, 1, 128], strides = [1, 1, 1]} : vector<2x8x128xf32> to vector<2x1x128xf32>
    %288 = vector.shape_cast %287 : vector<2x1x128xf32> to vector<2x128xf32>
    %cst_73 = arith.constant dense<0.000000e+00> : vector<2x128xf32>
    %289 = tpu.matmul %286, %153, %cst_73 {dimension_numbers = #tpu.dot_dimension_numbers<[1], [0], [0], [1], [0, 0, 1, 1], [], []>} : vector<2x32xf32>, vector<32x128xf32>, vector<2x128xf32> -> vector<2x128xf32>
    %290 = arith.addf %288, %289 : vector<2x128xf32>
    %291 = arith.negf %290 : vector<2x128xf32>
    %292 = math.exp %291 : vector<2x128xf32>
    %cst_74 = arith.constant 1.000000e+00 : f32
    %293 = vector.broadcast %cst_74 : f32 to vector<2x128xf32>
    %294 = arith.addf %293, %292 : vector<2x128xf32>
    %295 = arith.divf %293, %294 : vector<2x128xf32>
    %296 = vector.extract_strided_slice %295 {offsets = [0, 0], sizes = [2, 32], strides = [1, 1]} : vector<2x128xf32> to vector<2x32xf32>
    %297 = vector.extract_strided_slice %295 {offsets = [0, 32], sizes = [2, 32], strides = [1, 1]} : vector<2x128xf32> to vector<2x32xf32>
    %298 = vector.extract_strided_slice %295 {offsets = [0, 96], sizes = [2, 32], strides = [1, 1]} : vector<2x128xf32> to vector<2x32xf32>
    %299 = vector.extract_strided_slice %290 {offsets = [0, 64], sizes = [2, 32], strides = [1, 1]} : vector<2x128xf32> to vector<2x32xf32>
    %300 = math.tanh %299 : vector<2x32xf32>
    %301 = arith.mulf %297, %284 : vector<2x32xf32>
    %302 = arith.mulf %296, %300 : vector<2x32xf32>
    %303 = arith.addf %301, %302 : vector<2x32xf32>
    %304 = math.tanh %303 : vector<2x32xf32>
    %305 = arith.mulf %298, %304 : vector<2x32xf32>
    %306 = vector.shape_cast %172 : vector<2x32xf32> to vector<2x1x32xf32>
    %307 = vector.shape_cast %191 : vector<2x32xf32> to vector<2x1x32xf32>
    %308 = vector.shape_cast %210 : vector<2x32xf32> to vector<2x1x32xf32>
    %309 = vector.shape_cast %229 : vector<2x32xf32> to vector<2x1x32xf32>
    %310 = vector.shape_cast %248 : vector<2x32xf32> to vector<2x1x32xf32>
    %311 = vector.shape_cast %267 : vector<2x32xf32> to vector<2x1x32xf32>
    %312 = vector.shape_cast %286 : vector<2x32xf32> to vector<2x1x32xf32>
    %313 = vector.shape_cast %305 : vector<2x32xf32> to vector<2x1x32xf32>
    %314 = tpu.concatenate %306, %307, %308, %309, %310, %311, %312, %313 in 1 : vector<2x1x32xf32>, vector<2x1x32xf32>, vector<2x1x32xf32>, vector<2x1x32xf32>, vector<2x1x32xf32>, vector<2x1x32xf32>, vector<2x1x32xf32>, vector<2x1x32xf32> -> vector<2x8x32xf32>
    %315 = vector.shape_cast %314 : vector<2x8x32xf32> to vector<16x32xf32>
    %c800 = arith.constant 800 : index
    %c0_75 = arith.constant 0 : index
    %316 = vector.load %arg1[%c800, %c0_75] : memref<1216x128xf32, #tpu.memory_space<vmem>>, vector<32x32xf32>
    %cst_76 = arith.constant dense<0.000000e+00> : vector<16x32xf32>
    %317 = tpu.matmul %315, %316, %cst_76 {dimension_numbers = #tpu.dot_dimension_numbers<[1], [0], [0], [1], [0, 0, 1, 1], [], []>} : vector<16x32xf32>, vector<32x32xf32>, vector<16x32xf32> -> vector<16x32xf32>
    %c12 = arith.constant 12 : index
    %c0_77 = arith.constant 0 : index
    %318 = vector.load %arg2[%c12, %c0_77] : memref<28x128xf32, #tpu.memory_space<vmem>>, vector<1x32xf32>
    %319 = vector.broadcast %318 : vector<1x32xf32> to vector<16x32xf32>
    %320 = arith.addf %317, %319 : vector<16x32xf32>
    %cst_78 = arith.constant 0.000000e+00 : f32
    %321 = vector.broadcast %cst_78 : f32 to vector<16x32xf32>
    %322 = arith.cmpf ogt, %320, %321 : vector<16x32xf32>
    %cst_79 = arith.constant 0.000000e+00 : f32
    %323 = vector.broadcast %cst_79 : f32 to vector<16x32xf32>
    %324 = arith.minimumf %320, %323 : vector<16x32xf32>
    %325 = math.exp %324 : vector<16x32xf32>
    %cst_80 = arith.constant 1.000000e+00 : f32
    %326 = vector.broadcast %cst_80 : f32 to vector<16x32xf32>
    %327 = arith.subf %325, %326 : vector<16x32xf32>
    %328 = arith.select %322, %320, %327 : vector<16x32xi1>, vector<16x32xf32>
    %c832 = arith.constant 832 : index
    %c0_81 = arith.constant 0 : index
    %329 = vector.load %arg1[%c832, %c0_81] : memref<1216x128xf32, #tpu.memory_space<vmem>>, vector<32x32xf32>
    %cst_82 = arith.constant dense<0.000000e+00> : vector<16x32xf32>
    %330 = tpu.matmul %328, %329, %cst_82 {dimension_numbers = #tpu.dot_dimension_numbers<[1], [0], [0], [1], [0, 0, 1, 1], [], []>} : vector<16x32xf32>, vector<32x32xf32>, vector<16x32xf32> -> vector<16x32xf32>
    %c13 = arith.constant 13 : index
    %c0_83 = arith.constant 0 : index
    %331 = vector.load %arg2[%c13, %c0_83] : memref<28x128xf32, #tpu.memory_space<vmem>>, vector<1x32xf32>
    %332 = vector.broadcast %331 : vector<1x32xf32> to vector<16x32xf32>
    %333 = arith.addf %330, %332 : vector<16x32xf32>
    %c864 = arith.constant 864 : index
    %c0_84 = arith.constant 0 : index
    %334 = vector.load %arg1[%c864, %c0_84] : memref<1216x128xf32, #tpu.memory_space<vmem>>, vector<32x32xf32>
    %cst_85 = arith.constant dense<0.000000e+00> : vector<16x32xf32>
    %335 = tpu.matmul %328, %334, %cst_85 {dimension_numbers = #tpu.dot_dimension_numbers<[1], [0], [0], [1], [0, 0, 1, 1], [], []>} : vector<16x32xf32>, vector<32x32xf32>, vector<16x32xf32> -> vector<16x32xf32>
    %c14 = arith.constant 14 : index
    %c0_86 = arith.constant 0 : index
    %336 = vector.load %arg2[%c14, %c0_86] : memref<28x128xf32, #tpu.memory_space<vmem>>, vector<1x32xf32>
    %337 = vector.broadcast %336 : vector<1x32xf32> to vector<16x32xf32>
    %338 = arith.addf %335, %337 : vector<16x32xf32>
    %339 = arith.negf %338 : vector<16x32xf32>
    %340 = math.exp %339 : vector<16x32xf32>
    %cst_87 = arith.constant 1.000000e+00 : f32
    %341 = vector.broadcast %cst_87 : f32 to vector<16x32xf32>
    %342 = arith.addf %341, %340 : vector<16x32xf32>
    %343 = arith.divf %341, %342 : vector<16x32xf32>
    %344 = arith.mulf %333, %343 : vector<16x32xf32>
    %345 = arith.addf %315, %344 : vector<16x32xf32>
    %cst_88 = arith.constant dense<0.000000e+00> : vector<16xf32>
    %346 = vector.multi_reduction <add>, %345, %cst_88 [1] : vector<16x32xf32> to vector<16xf32>
    %347 = vector.shape_cast %346 : vector<16xf32> to vector<16x1xf32>
    %cst_89 = arith.constant 3.200000e+01 : f32
    %348 = vector.broadcast %cst_89 : f32 to vector<16x1xf32>
    %349 = arith.divf %347, %348 : vector<16x1xf32>
    %350 = vector.broadcast %349 : vector<16x1xf32> to vector<16x32xf32>
    %351 = arith.subf %345, %350 : vector<16x32xf32>
    %352 = arith.mulf %351, %351 : vector<16x32xf32>
    %cst_90 = arith.constant dense<0.000000e+00> : vector<16xf32>
    %353 = vector.multi_reduction <add>, %352, %cst_90 [1] : vector<16x32xf32> to vector<16xf32>
    %354 = vector.shape_cast %353 : vector<16xf32> to vector<16x1xf32>
    %cst_91 = arith.constant 3.200000e+01 : f32
    %355 = vector.broadcast %cst_91 : f32 to vector<16x1xf32>
    %356 = arith.divf %354, %355 : vector<16x1xf32>
    %357 = vector.broadcast %349 : vector<16x1xf32> to vector<16x32xf32>
    %358 = arith.subf %345, %357 : vector<16x32xf32>
    %cst_92 = arith.constant 9.99999974E-6 : f32
    %359 = vector.broadcast %cst_92 : f32 to vector<16x1xf32>
    %360 = arith.addf %356, %359 : vector<16x1xf32>
    %361 = math.rsqrt %360 : vector<16x1xf32>
    %362 = vector.broadcast %361 : vector<16x1xf32> to vector<16x32xf32>
    %363 = arith.mulf %358, %362 : vector<16x32xf32>
    %c15 = arith.constant 15 : index
    %c0_93 = arith.constant 0 : index
    %364 = vector.load %arg2[%c15, %c0_93] : memref<28x128xf32, #tpu.memory_space<vmem>>, vector<1x32xf32>
    %365 = vector.broadcast %364 : vector<1x32xf32> to vector<16x32xf32>
    %366 = arith.mulf %363, %365 : vector<16x32xf32>
    %c16_94 = arith.constant 16 : index
    %c0_95 = arith.constant 0 : index
    %367 = vector.load %arg2[%c16_94, %c0_95] : memref<28x128xf32, #tpu.memory_space<vmem>>, vector<1x32xf32>
    %368 = vector.broadcast %367 : vector<1x32xf32> to vector<16x32xf32>
    %369 = arith.addf %366, %368 : vector<16x32xf32>
    %370 = arith.addf %369, %31 : vector<16x32xf32>
    %c1088 = arith.constant 1088 : index
    %c0_96 = arith.constant 0 : index
    %371 = vector.load %arg1[%c1088, %c0_96] : memref<1216x128xf32, #tpu.memory_space<vmem>>, vector<32x32xf32>
    %cst_97 = arith.constant dense<0.000000e+00> : vector<2x32xf32>
    %372 = tpu.matmul %144, %371, %cst_97 {dimension_numbers = #tpu.dot_dimension_numbers<[1], [0], [0], [1], [0, 0, 1, 1], [], []>} : vector<2x32xf32>, vector<32x32xf32>, vector<2x32xf32> -> vector<2x32xf32>
    %373 = vector.shape_cast %372 : vector<2x32xf32> to vector<2x1x32xf32>
    %374 = vector.shape_cast %373 : vector<2x1x32xf32> to vector<2x1x32xf32>
    %375 = vector.broadcast %374 : vector<2x1x32xf32> to vector<2x8x32xf32>
    %376 = vector.shape_cast %375 : vector<2x8x32xf32> to vector<16x32xf32>
    %c896 = arith.constant 896 : index
    %c0_98 = arith.constant 0 : index
    %377 = vector.load %arg1[%c896, %c0_98] : memref<1216x128xf32, #tpu.memory_space<vmem>>, vector<32x32xf32>
    %cst_99 = arith.constant dense<0.000000e+00> : vector<16x32xf32>
    %378 = tpu.matmul %370, %377, %cst_99 {dimension_numbers = #tpu.dot_dimension_numbers<[1], [0], [0], [1], [0, 0, 1, 1], [], []>} : vector<16x32xf32>, vector<32x32xf32>, vector<16x32xf32> -> vector<16x32xf32>
    %c17 = arith.constant 17 : index
    %c0_100 = arith.constant 0 : index
    %379 = vector.load %arg2[%c17, %c0_100] : memref<28x128xf32, #tpu.memory_space<vmem>>, vector<1x32xf32>
    %380 = vector.broadcast %379 : vector<1x32xf32> to vector<16x32xf32>
    %381 = arith.addf %378, %380 : vector<16x32xf32>
    %382 = arith.addf %381, %376 : vector<16x32xf32>
    %cst_101 = arith.constant 0.000000e+00 : f32
    %383 = vector.broadcast %cst_101 : f32 to vector<16x32xf32>
    %384 = arith.cmpf ogt, %382, %383 : vector<16x32xf32>
    %cst_102 = arith.constant 0.000000e+00 : f32
    %385 = vector.broadcast %cst_102 : f32 to vector<16x32xf32>
    %386 = arith.minimumf %382, %385 : vector<16x32xf32>
    %387 = math.exp %386 : vector<16x32xf32>
    %cst_103 = arith.constant 1.000000e+00 : f32
    %388 = vector.broadcast %cst_103 : f32 to vector<16x32xf32>
    %389 = arith.subf %387, %388 : vector<16x32xf32>
    %390 = arith.select %384, %382, %389 : vector<16x32xi1>, vector<16x32xf32>
    %c928 = arith.constant 928 : index
    %c0_104 = arith.constant 0 : index
    %391 = vector.load %arg1[%c928, %c0_104] : memref<1216x128xf32, #tpu.memory_space<vmem>>, vector<32x32xf32>
    %cst_105 = arith.constant dense<0.000000e+00> : vector<16x32xf32>
    %392 = tpu.matmul %390, %391, %cst_105 {dimension_numbers = #tpu.dot_dimension_numbers<[1], [0], [0], [1], [0, 0, 1, 1], [], []>} : vector<16x32xf32>, vector<32x32xf32>, vector<16x32xf32> -> vector<16x32xf32>
    %c18 = arith.constant 18 : index
    %c0_106 = arith.constant 0 : index
    %393 = vector.load %arg2[%c18, %c0_106] : memref<28x128xf32, #tpu.memory_space<vmem>>, vector<1x32xf32>
    %394 = vector.broadcast %393 : vector<1x32xf32> to vector<16x32xf32>
    %395 = arith.addf %392, %394 : vector<16x32xf32>
    %c960 = arith.constant 960 : index
    %c0_107 = arith.constant 0 : index
    %396 = vector.load %arg1[%c960, %c0_107] : memref<1216x128xf32, #tpu.memory_space<vmem>>, vector<32x32xf32>
    %cst_108 = arith.constant dense<0.000000e+00> : vector<16x32xf32>
    %397 = tpu.matmul %390, %396, %cst_108 {dimension_numbers = #tpu.dot_dimension_numbers<[1], [0], [0], [1], [0, 0, 1, 1], [], []>} : vector<16x32xf32>, vector<32x32xf32>, vector<16x32xf32> -> vector<16x32xf32>
    %c19 = arith.constant 19 : index
    %c0_109 = arith.constant 0 : index
    %398 = vector.load %arg2[%c19, %c0_109] : memref<28x128xf32, #tpu.memory_space<vmem>>, vector<1x32xf32>
    %399 = vector.broadcast %398 : vector<1x32xf32> to vector<16x32xf32>
    %400 = arith.addf %397, %399 : vector<16x32xf32>
    %401 = arith.negf %400 : vector<16x32xf32>
    %402 = math.exp %401 : vector<16x32xf32>
    %cst_110 = arith.constant 1.000000e+00 : f32
    %403 = vector.broadcast %cst_110 : f32 to vector<16x32xf32>
    %404 = arith.addf %403, %402 : vector<16x32xf32>
    %405 = arith.divf %403, %404 : vector<16x32xf32>
    %406 = arith.mulf %395, %405 : vector<16x32xf32>
    %407 = arith.addf %370, %406 : vector<16x32xf32>
    %cst_111 = arith.constant dense<0.000000e+00> : vector<16xf32>
    %408 = vector.multi_reduction <add>, %407, %cst_111 [1] : vector<16x32xf32> to vector<16xf32>
    %409 = vector.shape_cast %408 : vector<16xf32> to vector<16x1xf32>
    %cst_112 = arith.constant 3.200000e+01 : f32
    %410 = vector.broadcast %cst_112 : f32 to vector<16x1xf32>
    %411 = arith.divf %409, %410 : vector<16x1xf32>
    %412 = vector.broadcast %411 : vector<16x1xf32> to vector<16x32xf32>
    %413 = arith.subf %407, %412 : vector<16x32xf32>
    %414 = arith.mulf %413, %413 : vector<16x32xf32>
    %cst_113 = arith.constant dense<0.000000e+00> : vector<16xf32>
    %415 = vector.multi_reduction <add>, %414, %cst_113 [1] : vector<16x32xf32> to vector<16xf32>
    %416 = vector.shape_cast %415 : vector<16xf32> to vector<16x1xf32>
    %cst_114 = arith.constant 3.200000e+01 : f32
    %417 = vector.broadcast %cst_114 : f32 to vector<16x1xf32>
    %418 = arith.divf %416, %417 : vector<16x1xf32>
    %419 = vector.broadcast %411 : vector<16x1xf32> to vector<16x32xf32>
    %420 = arith.subf %407, %419 : vector<16x32xf32>
    %cst_115 = arith.constant 9.99999974E-6 : f32
    %421 = vector.broadcast %cst_115 : f32 to vector<16x1xf32>
    %422 = arith.addf %418, %421 : vector<16x1xf32>
    %423 = math.rsqrt %422 : vector<16x1xf32>
    %424 = vector.broadcast %423 : vector<16x1xf32> to vector<16x32xf32>
    %425 = arith.mulf %420, %424 : vector<16x32xf32>
    %c20 = arith.constant 20 : index
    %c0_116 = arith.constant 0 : index
    %426 = vector.load %arg2[%c20, %c0_116] : memref<28x128xf32, #tpu.memory_space<vmem>>, vector<1x32xf32>
    %427 = vector.broadcast %426 : vector<1x32xf32> to vector<16x32xf32>
    %428 = arith.mulf %425, %427 : vector<16x32xf32>
    %c21 = arith.constant 21 : index
    %c0_117 = arith.constant 0 : index
    %429 = vector.load %arg2[%c21, %c0_117] : memref<28x128xf32, #tpu.memory_space<vmem>>, vector<1x32xf32>
    %430 = vector.broadcast %429 : vector<1x32xf32> to vector<16x32xf32>
    %431 = arith.addf %428, %430 : vector<16x32xf32>
    %c1120 = arith.constant 1120 : index
    %c0_118 = arith.constant 0 : index
    %432 = vector.load %arg1[%c1120, %c0_118] : memref<1216x128xf32, #tpu.memory_space<vmem>>, vector<32x96xf32>
    %cst_119 = arith.constant dense<0.000000e+00> : vector<16x96xf32>
    %433 = tpu.matmul %431, %432, %cst_119 {dimension_numbers = #tpu.dot_dimension_numbers<[1], [0], [0], [1], [0, 0, 1, 1], [], []>} : vector<16x32xf32>, vector<32x96xf32>, vector<16x96xf32> -> vector<16x96xf32>
    %434 = vector.shape_cast %433 : vector<16x96xf32> to vector<2x8x96xf32>
    %435 = vector.extract_strided_slice %434 {offsets = [0, 0, 0], sizes = [2, 8, 32], strides = [1, 1, 1]} : vector<2x8x96xf32> to vector<2x8x32xf32>
    %436 = vector.extract_strided_slice %434 {offsets = [0, 0, 32], sizes = [2, 8, 32], strides = [1, 1, 1]} : vector<2x8x96xf32> to vector<2x8x32xf32>
    %437 = vector.extract_strided_slice %434 {offsets = [0, 0, 64], sizes = [2, 8, 32], strides = [1, 1, 1]} : vector<2x8x96xf32> to vector<2x8x32xf32>
    "tpu.trace_start"() <{level = 10 : i32, message = "bqd,bkd->bqk"}> : () -> ()
    %cst_120 = arith.constant dense<0.000000e+00> : vector<2x8x8xf32>
    %438 = tpu.matmul %435, %436, %cst_120 {dimension_numbers = #tpu.dot_dimension_numbers<[2], [2], [1], [1], [0, 0, 0, 1, 1, 1], [0], [0]>} : vector<2x8x32xf32>, vector<2x8x32xf32>, vector<2x8x8xf32> -> vector<2x8x8xf32>
    "tpu.trace_stop"() : () -> ()
    %cst_121 = arith.constant 0.176776692 : f32
    %439 = vector.broadcast %cst_121 : f32 to vector<2x8x8xf32>
    %440 = arith.mulf %438, %439 : vector<2x8x8xf32>
    %441 = tpu.iota {dimensions = array<i32: 0>} : vector<8x8xi32>
    %442 = tpu.iota {dimensions = array<i32: 1>} : vector<8x8xi32>
    %443 = arith.cmpi sle, %442, %441 : vector<8x8xi32>
    %444 = vector.shape_cast %443 : vector<8x8xi1> to vector<1x8x8xi1>
    %445 = vector.shape_cast %444 : vector<1x8x8xi1> to vector<1x8x8xi1>
    %446 = vector.broadcast %445 : vector<1x8x8xi1> to vector<2x8x8xi1>
    %cst_122 = arith.constant -1.000000e+09 : f32
    %447 = vector.broadcast %cst_122 : f32 to vector<2x8x8xf32>
    %448 = arith.select %446, %440, %447 : vector<2x8x8xi1>, vector<2x8x8xf32>
    %cst_123 = arith.constant dense<0xFF800000> : vector<2x8xf32>
    %449 = vector.multi_reduction <maximumf>, %448, %cst_123 [2] : vector<2x8x8xf32> to vector<2x8xf32>
    %450 = vector.shape_cast %449 : vector<2x8xf32> to vector<2x8x1xf32>
    %451 = vector.broadcast %450 : vector<2x8x1xf32> to vector<2x8x8xf32>
    %452 = arith.subf %448, %451 : vector<2x8x8xf32>
    %453 = math.exp %452 : vector<2x8x8xf32>
    %cst_124 = arith.constant dense<0.000000e+00> : vector<2x8xf32>
    %454 = vector.multi_reduction <add>, %453, %cst_124 [2] : vector<2x8x8xf32> to vector<2x8xf32>
    %455 = vector.shape_cast %454 : vector<2x8xf32> to vector<2x8x1xf32>
    %456 = vector.broadcast %455 : vector<2x8x1xf32> to vector<2x8x8xf32>
    %457 = arith.divf %453, %456 : vector<2x8x8xf32>
    "tpu.trace_start"() <{level = 10 : i32, message = "bqk,bkd->bqd"}> : () -> ()
    %cst_125 = arith.constant dense<0.000000e+00> : vector<2x8x32xf32>
    %458 = tpu.matmul %457, %437, %cst_125 {dimension_numbers = #tpu.dot_dimension_numbers<[2], [1], [1], [2], [0, 0, 0, 1, 1, 2], [0], [0]>} : vector<2x8x8xf32>, vector<2x8x32xf32>, vector<2x8x32xf32> -> vector<2x8x32xf32>
    "tpu.trace_stop"() : () -> ()
    %459 = vector.shape_cast %458 : vector<2x8x32xf32> to vector<16x32xf32>
    %c1152 = arith.constant 1152 : index
    %c0_126 = arith.constant 0 : index
    %460 = vector.load %arg1[%c1152, %c0_126] : memref<1216x128xf32, #tpu.memory_space<vmem>>, vector<32x32xf32>
    %cst_127 = arith.constant dense<0.000000e+00> : vector<16x32xf32>
    %461 = tpu.matmul %459, %460, %cst_127 {dimension_numbers = #tpu.dot_dimension_numbers<[1], [0], [0], [1], [0, 0, 1, 1], [], []>} : vector<16x32xf32>, vector<32x32xf32>, vector<16x32xf32> -> vector<16x32xf32>
    %462 = arith.addf %461, %431 : vector<16x32xf32>
    %c992 = arith.constant 992 : index
    %c0_128 = arith.constant 0 : index
    %463 = vector.load %arg1[%c992, %c0_128] : memref<1216x128xf32, #tpu.memory_space<vmem>>, vector<32x32xf32>
    %cst_129 = arith.constant dense<0.000000e+00> : vector<16x32xf32>
    %464 = tpu.matmul %462, %463, %cst_129 {dimension_numbers = #tpu.dot_dimension_numbers<[1], [0], [0], [1], [0, 0, 1, 1], [], []>} : vector<16x32xf32>, vector<32x32xf32>, vector<16x32xf32> -> vector<16x32xf32>
    %c22 = arith.constant 22 : index
    %c0_130 = arith.constant 0 : index
    %465 = vector.load %arg2[%c22, %c0_130] : memref<28x128xf32, #tpu.memory_space<vmem>>, vector<1x32xf32>
    %466 = vector.broadcast %465 : vector<1x32xf32> to vector<16x32xf32>
    %467 = arith.addf %464, %466 : vector<16x32xf32>
    %cst_131 = arith.constant 0.000000e+00 : f32
    %468 = vector.broadcast %cst_131 : f32 to vector<16x32xf32>
    %469 = arith.cmpf ogt, %467, %468 : vector<16x32xf32>
    %cst_132 = arith.constant 0.000000e+00 : f32
    %470 = vector.broadcast %cst_132 : f32 to vector<16x32xf32>
    %471 = arith.minimumf %467, %470 : vector<16x32xf32>
    %472 = math.exp %471 : vector<16x32xf32>
    %cst_133 = arith.constant 1.000000e+00 : f32
    %473 = vector.broadcast %cst_133 : f32 to vector<16x32xf32>
    %474 = arith.subf %472, %473 : vector<16x32xf32>
    %475 = arith.select %469, %467, %474 : vector<16x32xi1>, vector<16x32xf32>
    %c1024 = arith.constant 1024 : index
    %c0_134 = arith.constant 0 : index
    %476 = vector.load %arg1[%c1024, %c0_134] : memref<1216x128xf32, #tpu.memory_space<vmem>>, vector<32x32xf32>
    %cst_135 = arith.constant dense<0.000000e+00> : vector<16x32xf32>
    %477 = tpu.matmul %475, %476, %cst_135 {dimension_numbers = #tpu.dot_dimension_numbers<[1], [0], [0], [1], [0, 0, 1, 1], [], []>} : vector<16x32xf32>, vector<32x32xf32>, vector<16x32xf32> -> vector<16x32xf32>
    %c23 = arith.constant 23 : index
    %c0_136 = arith.constant 0 : index
    %478 = vector.load %arg2[%c23, %c0_136] : memref<28x128xf32, #tpu.memory_space<vmem>>, vector<1x32xf32>
    %479 = vector.broadcast %478 : vector<1x32xf32> to vector<16x32xf32>
    %480 = arith.addf %477, %479 : vector<16x32xf32>
    %c1056 = arith.constant 1056 : index
    %c0_137 = arith.constant 0 : index
    %481 = vector.load %arg1[%c1056, %c0_137] : memref<1216x128xf32, #tpu.memory_space<vmem>>, vector<32x32xf32>
    %cst_138 = arith.constant dense<0.000000e+00> : vector<16x32xf32>
    %482 = tpu.matmul %475, %481, %cst_138 {dimension_numbers = #tpu.dot_dimension_numbers<[1], [0], [0], [1], [0, 0, 1, 1], [], []>} : vector<16x32xf32>, vector<32x32xf32>, vector<16x32xf32> -> vector<16x32xf32>
    %c24_139 = arith.constant 24 : index
    %c0_140 = arith.constant 0 : index
    %483 = vector.load %arg2[%c24_139, %c0_140] : memref<28x128xf32, #tpu.memory_space<vmem>>, vector<1x32xf32>
    %484 = vector.broadcast %483 : vector<1x32xf32> to vector<16x32xf32>
    %485 = arith.addf %482, %484 : vector<16x32xf32>
    %486 = arith.negf %485 : vector<16x32xf32>
    %487 = math.exp %486 : vector<16x32xf32>
    %cst_141 = arith.constant 1.000000e+00 : f32
    %488 = vector.broadcast %cst_141 : f32 to vector<16x32xf32>
    %489 = arith.addf %488, %487 : vector<16x32xf32>
    %490 = arith.divf %488, %489 : vector<16x32xf32>
    %491 = arith.mulf %480, %490 : vector<16x32xf32>
    %492 = arith.addf %462, %491 : vector<16x32xf32>
    %cst_142 = arith.constant dense<0.000000e+00> : vector<16xf32>
    %493 = vector.multi_reduction <add>, %492, %cst_142 [1] : vector<16x32xf32> to vector<16xf32>
    %494 = vector.shape_cast %493 : vector<16xf32> to vector<16x1xf32>
    %cst_143 = arith.constant 3.200000e+01 : f32
    %495 = vector.broadcast %cst_143 : f32 to vector<16x1xf32>
    %496 = arith.divf %494, %495 : vector<16x1xf32>
    %497 = vector.broadcast %496 : vector<16x1xf32> to vector<16x32xf32>
    %498 = arith.subf %492, %497 : vector<16x32xf32>
    %499 = arith.mulf %498, %498 : vector<16x32xf32>
    %cst_144 = arith.constant dense<0.000000e+00> : vector<16xf32>
    %500 = vector.multi_reduction <add>, %499, %cst_144 [1] : vector<16x32xf32> to vector<16xf32>
    %501 = vector.shape_cast %500 : vector<16xf32> to vector<16x1xf32>
    %cst_145 = arith.constant 3.200000e+01 : f32
    %502 = vector.broadcast %cst_145 : f32 to vector<16x1xf32>
    %503 = arith.divf %501, %502 : vector<16x1xf32>
    %504 = vector.broadcast %496 : vector<16x1xf32> to vector<16x32xf32>
    %505 = arith.subf %492, %504 : vector<16x32xf32>
    %cst_146 = arith.constant 9.99999974E-6 : f32
    %506 = vector.broadcast %cst_146 : f32 to vector<16x1xf32>
    %507 = arith.addf %503, %506 : vector<16x1xf32>
    %508 = math.rsqrt %507 : vector<16x1xf32>
    %509 = vector.broadcast %508 : vector<16x1xf32> to vector<16x32xf32>
    %510 = arith.mulf %505, %509 : vector<16x32xf32>
    %c25 = arith.constant 25 : index
    %c0_147 = arith.constant 0 : index
    %511 = vector.load %arg2[%c25, %c0_147] : memref<28x128xf32, #tpu.memory_space<vmem>>, vector<1x32xf32>
    %512 = vector.broadcast %511 : vector<1x32xf32> to vector<16x32xf32>
    %513 = arith.mulf %510, %512 : vector<16x32xf32>
    %c26 = arith.constant 26 : index
    %c0_148 = arith.constant 0 : index
    %514 = vector.load %arg2[%c26, %c0_148] : memref<28x128xf32, #tpu.memory_space<vmem>>, vector<1x32xf32>
    %515 = vector.broadcast %514 : vector<1x32xf32> to vector<16x32xf32>
    %516 = arith.addf %513, %515 : vector<16x32xf32>
    %517 = arith.addf %516, %370 : vector<16x32xf32>
    %c1184 = arith.constant 1184 : index
    %c0_149 = arith.constant 0 : index
    %518 = vector.load %arg1[%c1184, %c0_149] : memref<1216x128xf32, #tpu.memory_space<vmem>>, vector<32x1xf32>
    %cst_150 = arith.constant dense<0.000000e+00> : vector<16x1xf32>
    %519 = tpu.matmul %517, %518, %cst_150 {dimension_numbers = #tpu.dot_dimension_numbers<[1], [0], [0], [1], [0, 0, 1, 1], [], []>} : vector<16x32xf32>, vector<32x1xf32>, vector<16x1xf32> -> vector<16x1xf32>
    %c27 = arith.constant 27 : index
    %c0_151 = arith.constant 0 : index
    %520 = vector.load %arg2[%c27, %c0_151] : memref<28x128xf32, #tpu.memory_space<vmem>>, vector<1x1xf32>
    %521 = vector.broadcast %520 : vector<1x1xf32> to vector<16x1xf32>
    %522 = arith.addf %519, %521 : vector<16x1xf32>
    %523 = math.tanh %522 : vector<16x1xf32>
    %524 = vector.shape_cast %523 : vector<16x1xf32> to vector<2x8x1xf32>
    %c0_152 = arith.constant 0 : index
    %c0_153 = arith.constant 0 : index
    %c0_154 = arith.constant 0 : index
    %525 = vector.load %arg3[%c0_152, %c0_153, %c0_154] : memref<2x8x1xf32, #tpu.memory_space<vmem>>, vector<2x8x1xf32>
    tpu.vector_store %arg3[%c0_152, %c0_153, %c0_154], %524 {strides = array<i32>} : memref<2x8x1xf32, #tpu.memory_space<vmem>>, vector<2x8x1xf32>,
    return
  }
}

</mosaic_0001>

<llo_original>
// kernel: tft_forward.1
$region0: #{tft_forward.1}
  #allocation0 [shape = 'u32[]', space=smem, size = 0x4, offset = 0x4, fixed_abs, tag = 'smem constant byte address 0x4 - core index']
  #allocation1 [shape = 'u32[144,128]{1,0:T(1,128)}', space=vmem, size = 0x12000, scoped, tag = 'internal scratch']
  %s0 = inlined_call_operand.vmem [shape: f32[2,8,3], index: 0, kind: input, shape index: {}]
  %s1 = inlined_call_operand.hbm [shape: f32[1216,128], index: 1, kind: input, shape index: {}]
  %s2 = inlined_call_operand.hbm [shape: f32[28,128], index: 2, kind: input, shape index: {}]
  %s3 = inlined_call_operand.vmem [shape: f32[2,8,1], index: 3, kind: output, shape index: {}]
  %s4 = sld [smem:[#allocation0]]
  $region30: #{tft_forward.1} parent=0
    _
  %s6 = ssub.s32 1, %s4
  %s7 = scalar_select 0, %s6, %s4
  $region1: #{tft_forward.1} parent=0
    #allocation2 [shape = 'u8[622592]{0}', space=vmem, size = 0x98000, scoped, tag = 'input window, operand 1, single buffered']
    #allocation3 [shape = 's32[1]{0}', space=sflag, size = 0x4, scoped, tag = 'scoped memory for tft_forward.1']
    #allocation4 [shape = 'u8[16384]{0}', space=vmem, size = 0x4000, scoped, tag = 'input window, operand 2, single buffered']
    #allocation5 [shape = 's32[1]{0}', space=sflag, size = 0x4, scoped, tag = 'scoped memory for tft_forward.1']
    %8 = vsyncpa [#allocation3], 0
    %9 = vsyncpa [#allocation5], 0
    // Predicated region
    $region2: #{tft_forward.1} parent=1 // pred_check
      _
    $region3: #{tft_forward.1} parent=1 // pred_check_branch
      %11 = sbr.rel (0) target = $region5
    $region4: #{tft_forward.1} parent=1 // pred_region
      _
    $region5: #{tft_forward.1} parent=1 // pred_fallthru
      _
    // Predicated region
    $region6: #{tft_forward.1} parent=1 // pred_check
      _
    $region7: #{tft_forward.1} parent=1 // pred_check_branch
      %13 = sbr.rel (0) target = $region9
    $region8: #{tft_forward.1} parent=1 // pred_region
      %s15 = ssub.s32 19456, 19456
      %16 = vsyncadd [#allocation3], %s15
      %s17 = sshll.u32 [#allocation2], 4
      %s18 = int_to_ptr.vmem [resolvable:$true] %s17
      %23 = dma.hbm_to_vmem [thread:$0]  %s1, 19456, %s18, [#allocation3], 128, 128, 8
    $region9: #{tft_forward.1} parent=1 // pred_fallthru
      _
    // Predicated region
    $region10: #{tft_forward.1} parent=1 // pred_check
      _
    $region11: #{tft_forward.1} parent=1 // pred_check_branch
      %25 = sbr.rel (0) target = $region13
    $region12: #{tft_forward.1} parent=1 // pred_region
      %s27 = ssub.s32 512, 512
      %28 = vsyncadd [#allocation5], %s27
      %s29 = sshll.u32 [#allocation4], 4
      %s30 = int_to_ptr.vmem [resolvable:$true] %s29
      %35 = dma.hbm_to_vmem [thread:$0]  %s2, 512, %s30, [#allocation5], 128, 128, 8
    $region13: #{tft_forward.1} parent=1 // pred_fallthru
      _
    // Predicated region
    $region14: #{tft_forward.1} parent=1 // pred_check
      _
    $region15: #{tft_forward.1} parent=1 // pred_check_branch
      %37 = sbr.rel (0) target = $region17
    $region16: #{tft_forward.1} parent=1 // pred_region
      %38 = dma.done [#allocation3], 19456
    $region17: #{tft_forward.1} parent=1 // pred_fallthru
      _
    // Predicated region
    $region18: #{tft_forward.1} parent=1 // pred_check
      _
    $region19: #{tft_forward.1} parent=1 // pred_check_branch
      %40 = sbr.rel (0) target = $region21
    $region20: #{tft_forward.1} parent=1 // pred_region
      %41 = dma.done [#allocation5], 512
    $region21: #{tft_forward.1} parent=1 // pred_fallthru
      _
    %v42 = vld [vmem:[%s0] sm:$0xff]
    %v43 = vld [vmem:[%s0 + $0x8] sm:$0xff]
    %v44 = vld [vmem:[#allocation2] sm:$0x3]
    %v45 = vld [vmem:[#allocation2 + $0x8] sm:$0x3]
    %47 = vset.pattern.permute.xlu0 1
    %48 = vperm.xlu0 %47, %v42
    %v49 = vpop.permute.xlu0 %48
    %52 = vset.pattern.permute.xlu0 1
    %53 = vperm.xlu0 %52, %v43
    %v54 = vpop.permute.xlu0 %53
    %v56 = vlaneseq
    %v57 = vshrl.u32 %v56, 7
    %v58 = vsub.s32 1, %v57
    %v59 = vrot.slane %v44, %v58
    %v60 = vmul.f32 %v49, %v59
    %v61 = vmul.f32 %v54, %v59
    %v62 = vlaneseq
    %v63 = vshrl.u32 %v62, 7
    %v64 = vsub.s32 1, %v63
    %v65 = vrot.slane %v45, %v64
    %v66 = vadd.f32 %v60, %v65
    %v67 = vadd.f32 %v61, %v65
    %v68 = vcvt.f32.s32.to.zero.pseudo %v42
    %v69 = vcvt.f32.s32.to.zero.pseudo %v43
    %v70 = vlaneseq
    %v71 = vand.u32 %v70, 127
    %72 = vset.pattern.permute.xlu0 2
    %73 = vperm.xlu0 %72, %v68
    %v74 = vpop.permute.xlu0 %73
    %75 = vset.pattern.permute.xlu0 2
    %76 = vperm.xlu0 %75, %v69
    %v77 = vpop.permute.xlu0 %76
    %v78 = vrot.slane %v77, 7
    %vm79 = vcmask 1041409
    %v80 = vsel %vm79, %v78, %v74
    %vm81 = vcmp.eq.s32.totalorder %v71, %v80
    %v82 = vsel %vm81, 1, 0
    %v83 = vcvt.s32.f32 %v82
    %v84 = vld [vmem:[#allocation2 + $0x10] sm:$0x3f]
    %vm85 = vcmask 48128
    %v87 = vsel %vm85, %v83, 0
    %vm89 = vcmask 1045504
    %v91 = vsel %vm89, %v84, 0
    %93 = vmatprep.subr.mxu0 0.0
    %94 = vmatpush1.msra.mxu0 0.0
    %95 = vmatprep.subr.mxu0 0.0
    %96 = vmatpush1.msra.mxu0 0.0
    %97 = vmatprep.subr.mxu0 0.0
    %98 = vmatpush1.msra.mxu0 0.0
    %99 = vmatprep.subr.mxu0 0.0
    %100 = vmatpush1.msra.mxu0 0.0
    %101 = vmatprep.subr.mxu0 0.0
    %102 = vmatpush1.msra.mxu0 0.0
    %103 = vmatprep.subr.mxu0 0.0
    %104 = vmatpush1.msra.mxu0 0.0
    %105 = vmatprep.subr.mxu0 0.0
    %106 = vmatpush1.msra.mxu0 0.0
    %107 = vmatprep.subr.mxu0 0.0
    %108 = vmatpush1.msra.mxu0 0.0
    %109 = vmatprep.subr.mxu0 0.0
    %110 = vmatpush1.msra.mxu0 0.0
    %111 = vmatprep.subr.mxu0 0.0
    %112 = vmatpush1.msra.mxu0 0.0
    %113 = vmatprep.subr.mxu0 0.0
    %114 = vmatpush1.msra.mxu0 0.0
    %115 = vmatprep.subr.mxu0 0.0
    %116 = vmatpush1.msra.mxu0 0.0
    %117 = vmatprep.subr.mxu0 0.0
    %118 = vmatpush1.msra.mxu0 0.0
    %119 = vmatprep.subr.mxu0 0.0
    %120 = vmatpush1.msra.mxu0 0.0
    %121 = vmatprep.subr.mxu0 0.0
    %122 = vmatpush1.msra.mxu0 0.0
    %123 = vmatprep.subr.mxu0 0.0
    %124 = vmatpush1.msra.mxu0 %v91
    %125 = vmatprep.subr.mxu0 0.0
    %126 = vmatpush2.msra.mxu0 0.0
    %127 = vmatprep.subr.mxu0 0.0
    %128 = vmatpush2.msra.mxu0 0.0
    %129 = vmatprep.subr.mxu0 0.0
    %130 = vmatpush2.msra.mxu0 0.0
    %131 = vmatprep.subr.mxu0 0.0
    %132 = vmatpush2.msra.mxu0 0.0
    %133 = vmatprep.subr.mxu0 0.0
    %134 = vmatpush2.msra.mxu0 0.0
    %135 = vmatprep.subr.mxu0 0.0
    %136 = vmatpush2.msra.mxu0 0.0
    %137 = vmatprep.subr.mxu0 0.0
    %138 = vmatpush2.msra.mxu0 0.0
    %139 = vmatprep.subr.mxu0 0.0
    %140 = vmatpush2.msra.mxu0 0.0
    %141 = vmatprep.subr.mxu0 0.0
    %142 = vmatpush2.msra.mxu0 0.0
    %143 = vmatprep.subr.mxu0 0.0
    %144 = vmatpush2.msra.mxu0 0.0
    %145 = vmatprep.subr.mxu0 0.0
    %146 = vmatpush2.msra.mxu0 0.0
    %147 = vmatprep.subr.mxu0 0.0
    %148 = vmatpush2.msra.mxu0 0.0
    %149 = vmatprep.subr.mxu0 0.0
    %150 = vmatpush2.msra.mxu0 0.0
    %151 = vmatprep.subr.mxu0 0.0
    %152 = vmatpush2.msra.mxu0 0.0
    %153 = vmatprep.subr.mxu0 0.0
    %154 = vmatpush2.msra.mxu0 0.0
    %155 = vmatprep.subr.mxu0 0.0
    %156 = vmatpush2.msra.mxu0 0.0
    %157 = vmatprep.mubr.f32.mxu0 0.0
    %158 = vmatmul.mubr.f32.gmra.mxu0 %v87
    %v159 = vpop.f32.mrf.mxu0
    %v160 = vadd.f32 0.0, %v159
    %v161 = vpop.f32.mrf.mxu0
    %162 = vdwg.mxu0
    %v165 = vrot.slane %v67, 7
    %v166 = vsel %vm79, %v165, %v66
    %169 = vrot.lane.b32.xlu0 %v160, 32
    %v170 = vpop.permute.xlu0 %169
    %vm172 = vcmask 261120
    %v173 = vsel %vm172, %v166, %v170
    %174 = vset.pattern.permute.xlu0 0
    %175 = vperm.xlu0 %174, %v42
    %v176 = vpop.permute.xlu0 %175
    %178 = vset.pattern.permute.xlu0 0
    %179 = vperm.xlu0 %178, %v43
    %v180 = vpop.permute.xlu0 %179
    %v182 = vlaneseq
    %v183 = vshrl.u32 %v182, 7
    %v184 = vsub.s32 0, %v183
    %v185 = vrot.slane %v44, %v184
    %v186 = vmul.f32 %v176, %v185
    %v187 = vmul.f32 %v180, %v185
    %v188 = vlaneseq
    %v189 = vshrl.u32 %v188, 7
    %v190 = vsub.s32 0, %v189
    %v191 = vrot.slane %v45, %v190
    %v192 = vadd.f32 %v186, %v191
    %v193 = vadd.f32 %v187, %v191
    %v194 = vld [vmem:[#allocation2 + $0x18] sm:$0xff]
    %v195 = vld [vmem:[#allocation2 + $0x20] sm:$0xff]
    %v196 = vld [vmem:[#allocation2 + $0x28] sm:$0xff]
    %v197 = vld [vmem:[#allocation2 + $0x30] sm:$0xff]
    %v198 = vld [vmem:[#allocation2 + $0x38] sm:$0xff]
    %v199 = vld [vmem:[#allocation2 + $0x40] sm:$0xff]
    %v200 = vld [vmem:[#allocation2 + $0x48] sm:$0xff]
    %v201 = vld [vmem:[#allocation2 + $0x50] sm:$0xff]
    %v202 = vld [vmem:[#allocation4] sm:$0x1]
    %v203 = vlaneseq
    %v204 = vshrl.u32 %v203, 7
    %v205 = vsub.s32 0, %v204
    %v206 = vrot.slane %v202, %v205
    %vm207 = vcmask 523264
    %v209 = vsel %vm207, %v173, 0
    %211 = vmatprep.subr.mxu0 0.0
    %212 = vmatpush1.msra.mxu0 0.0
    %213 = vmatprep.subr.mxu0 0.0
    %214 = vmatpush1.msra.mxu0 0.0
    %215 = vmatprep.subr.mxu0 0.0
    %216 = vmatpush1.msra.mxu0 0.0
    %217 = vmatprep.subr.mxu0 0.0
    %218 = vmatpush1.msra.mxu0 0.0
    %219 = vmatprep.subr.mxu0 0.0
    %220 = vmatpush1.msra.mxu0 0.0
    %221 = vmatprep.subr.mxu0 0.0
    %222 = vmatpush1.msra.mxu0 0.0
    %223 = vmatprep.subr.mxu0 0.0
    %224 = vmatpush1.msra.mxu0 0.0
    %225 = vmatprep.subr.mxu0 0.0
    %226 = vmatpush1.msra.mxu0 0.0
    %227 = vmatprep.subr.mxu0 0.0
    %228 = vmatpush1.msra.mxu0 %v201
    %229 = vmatprep.subr.mxu0 0.0
    %230 = vmatpush1.msra.mxu0 %v200
    %231 = vmatprep.subr.mxu0 0.0
    %232 = vmatpush1.msra.mxu0 %v199
    %233 = vmatprep.subr.mxu0 0.0
    %234 = vmatpush1.msra.mxu0 %v198
    %235 = vmatprep.subr.mxu0 0.0
    %236 = vmatpush1.msra.mxu0 %v197
    %237 = vmatprep.subr.mxu0 0.0
    %238 = vmatpush1.msra.mxu0 %v196
    %239 = vmatprep.subr.mxu0 0.0
    %240 = vmatpush1.msra.mxu0 %v195
    %241 = vmatprep.subr.mxu0 0.0
    %242 = vmatpush1.msra.mxu0 %v194
    %243 = vmatprep.subr.mxu0 0.0
    %244 = vmatpush2.msra.mxu0 0.0
    %245 = vmatprep.subr.mxu0 0.0
    %246 = vmatpush2.msra.mxu0 0.0
    %247 = vmatprep.subr.mxu0 0.0
    %248 = vmatpush2.msra.mxu0 0.0
    %249 = vmatprep.subr.mxu0 0.0
    %250 = vmatpush2.msra.mxu0 0.0
    %251 = vmatprep.subr.mxu0 0.0
    %252 = vmatpush2.msra.mxu0 0.0
    %253 = vmatprep.subr.mxu0 0.0
    %254 = vmatpush2.msra.mxu0 0.0
    %255 = vmatprep.subr.mxu0 0.0
    %256 = vmatpush2.msra.mxu0 0.0
    %257 = vmatprep.subr.mxu0 0.0
    %258 = vmatpush2.msra.mxu0 0.0
    %259 = vmatprep.subr.mxu0 0.0
    %260 = vmatpush2.msra.mxu0 0.0
    %261 = vmatprep.subr.mxu0 0.0
    %262 = vmatpush2.msra.mxu0 0.0
    %263 = vmatprep.subr.mxu0 0.0
    %264 = vmatpush2.msra.mxu0 0.0
    %265 = vmatprep.subr.mxu0 0.0
    %266 = vmatpush2.msra.mxu0 0.0
    %267 = vmatprep.subr.mxu0 0.0
    %268 = vmatpush2.msra.mxu0 0.0
    %269 = vmatprep.subr.mxu0 0.0
    %270 = vmatpush2.msra.mxu0 0.0
    %271 = vmatprep.subr.mxu0 0.0
    %272 = vmatpush2.msra.mxu0 0.0
    %273 = vmatprep.subr.mxu0 0.0
    %274 = vmatpush2.msra.mxu0 0.0
    %275 = vmatprep.mubr.f32.mxu0 0.0
    %276 = vmatmul.mubr.f32.gmra.mxu0 %v209
    %v277 = vpop.f32.mrf.mxu0
    %v278 = vadd.f32 %v206, %v277
    %v279 = vpop.f32.mrf.mxu0
    %280 = vdwg.mxu0
    %vm281 = vcmask 9216
    %v282 = vsel %vm281, %v278, -inf
    %283 = vmax.xlane.f32.xlu0 %v282
    %v284 = vpop.xlane.xlu0 %283
    %v285 = vsub.f32 %v278, %v284
    %v286 = vmul.f32 %v285, 1.442695
    %v287 = vpow.pop %v286
    %v288 = vsel %vm281, %v287, 0.0
    %289 = vadd.xlane.f32.xlu0 %v288
    %v290 = vpop.xlane.xlu0 %289
    %v291 = vrcp.pop %v290
    %v292 = vmul.f32 %v287, %v291
    %v293 = vld [vmem:[#allocation2 + $0x58] sm:$0xff]
    %v294 = vld [vmem:[#allocation2 + $0x60] sm:$0xff]
    %v295 = vld [vmem:[#allocation2 + $0x68] sm:$0xff]
    %v296 = vld [vmem:[#allocation2 + $0x70] sm:$0xff]
    %v297 = vld [vmem:[#allocation2 + $0x78] sm:$0xff]
    %v298 = vld [vmem:[#allocation2 + $0x80] sm:$0xff]
    %v299 = vld [vmem:[#allocation2 + $0x88] sm:$0xff]
    %v300 = vld [vmem:[#allocation2 + $0x90] sm:$0xff]
    %v301 = vld [vmem:[#allocation4 + $0x1] sm:$0x1]
    %v302 = vlaneseq
    %v303 = vshrl.u32 %v302, 7
    %v304 = vsub.s32 0, %v303
    %v305 = vrot.slane %v301, %v304
    %306 = vmatprep.subr.mxu0 0.0
    %307 = vmatpush1.msra.mxu0 0.0
    %308 = vmatprep.subr.mxu0 0.0
    %309 = vmatpush1.msra.mxu0 0.0
    %310 = vmatprep.subr.mxu0 0.0
    %311 = vmatpush1.msra.mxu0 0.0
    %312 = vmatprep.subr.mxu0 0.0
    %313 = vmatpush1.msra.mxu0 0.0
    %314 = vmatprep.subr.mxu0 0.0
    %315 = vmatpush1.msra.mxu0 0.0
    %316 = vmatprep.subr.mxu0 0.0
    %317 = vmatpush1.msra.mxu0 0.0
    %318 = vmatprep.subr.mxu0 0.0
    %319 = vmatpush1.msra.mxu0 0.0
    %320 = vmatprep.subr.mxu0 0.0
    %321 = vmatpush1.msra.mxu0 0.0
    %322 = vmatprep.subr.mxu0 0.0
    %323 = vmatpush1.msra.mxu0 %v300
    %324 = vmatprep.subr.mxu0 0.0
    %325 = vmatpush1.msra.mxu0 %v299
    %326 = vmatprep.subr.mxu0 0.0
    %327 = vmatpush1.msra.mxu0 %v298
    %328 = vmatprep.subr.mxu0 0.0
    %329 = vmatpush1.msra.mxu0 %v297
    %330 = vmatprep.subr.mxu0 0.0
    %331 = vmatpush1.msra.mxu0 %v296
    %332 = vmatprep.subr.mxu0 0.0
    %333 = vmatpush1.msra.mxu0 %v295
    %334 = vmatprep.subr.mxu0 0.0
    %335 = vmatpush1.msra.mxu0 %v294
    %336 = vmatprep.subr.mxu0 0.0
    %337 = vmatpush1.msra.mxu0 %v293
    %338 = vmatprep.subr.mxu0 0.0
    %339 = vmatpush2.msra.mxu0 0.0
    %340 = vmatprep.subr.mxu0 0.0
    %341 = vmatpush2.msra.mxu0 0.0
    %342 = vmatprep.subr.mxu0 0.0
    %343 = vmatpush2.msra.mxu0 0.0
    %344 = vmatprep.subr.mxu0 0.0
    %345 = vmatpush2.msra.mxu0 0.0
    %346 = vmatprep.subr.mxu0 0.0
    %347 = vmatpush2.msra.mxu0 0.0
    %348 = vmatprep.subr.mxu0 0.0
    %349 = vmatpush2.msra.mxu0 0.0
    %350 = vmatprep.subr.mxu0 0.0
    %351 = vmatpush2.msra.mxu0 0.0
    %352 = vmatprep.subr.mxu0 0.0
    %353 = vmatpush2.msra.mxu0 0.0
    %354 = vmatprep.subr.mxu0 0.0
    %355 = vmatpush2.msra.mxu0 0.0
    %356 = vmatprep.subr.mxu0 0.0
    %357 = vmatpush2.msra.mxu0 0.0
    %358 = vmatprep.subr.mxu0 0.0
    %359 = vmatpush2.msra.mxu0 0.0
    %360 = vmatprep.subr.mxu0 0.0
    %361 = vmatpush2.msra.mxu0 0.0
    %362 = vmatprep.subr.mxu0 0.0
    %363 = vmatpush2.msra.mxu0 0.0
    %364 = vmatprep.subr.mxu0 0.0
    %365 = vmatpush2.msra.mxu0 0.0
    %366 = vmatprep.subr.mxu0 0.0
    %367 = vmatpush2.msra.mxu0 0.0
    %368 = vmatprep.subr.mxu0 0.0
    %369 = vmatpush2.msra.mxu0 0.0
    %370 = vmatprep.mubr.f32.mxu0 0.0
    %371 = vmatmul.mubr.f32.gmra.mxu0 %v209
    %v372 = vpop.f32.mrf.mxu0
    %v373 = vadd.f32 %v305, %v372
    %v374 = vpop.f32.mrf.mxu0
    %375 = vdwg.mxu0
    %vm376 = vcmp.gt.f32.partialorder %v373, 0.0
    %v377 = vmin.f32 %v373, 0.0
    %v378 = vmul.f32 %v377, 1.442695
    %v379 = vpow.pop %v378
    %v380 = vsub.f32 %v379, 1.0
    %v381 = vsel %vm376, %v373, %v380
    %v382 = vld [vmem:[#allocation2 + $0x98] sm:$0xff]
    %v383 = vld [vmem:[#allocation2 + $0xa0] sm:$0xff]
    %v384 = vld [vmem:[#allocation2 + $0xa8] sm:$0xff]
    %v385 = vld [vmem:[#allocation2 + $0xb0] sm:$0xff]
    %v386 = vld [vmem:[#allocation2 + $0xb8] sm:$0xff]
    %v387 = vld [vmem:[#allocation2 + $0xc0] sm:$0xff]
    %v388 = vld [vmem:[#allocation2 + $0xc8] sm:$0xff]
    %v389 = vld [vmem:[#allocation2 + $0xd0] sm:$0xff]
    %v390 = vld [vmem:[#allocation4 + $0x2] sm:$0x1]
    %v391 = vlaneseq
    %v392 = vshrl.u32 %v391, 7
    %v393 = vsub.s32 0, %v392
    %v394 = vrot.slane %v390, %v393
    %v396 = vsel %vm207, %v381, 0
    %398 = vmatprep.subr.mxu0 0.0
    %399 = vmatpush1.msra.mxu0 0.0
    %400 = vmatprep.subr.mxu0 0.0
    %401 = vmatpush1.msra.mxu0 0.0
    %402 = vmatprep.subr.mxu0 0.0
    %403 = vmatpush1.msra.mxu0 0.0
    %404 = vmatprep.subr.mxu0 0.0
    %405 = vmatpush1.msra.mxu0 0.0
    %406 = vmatprep.subr.mxu0 0.0
    %407 = vmatpush1.msra.mxu0 0.0
    %408 = vmatprep.subr.mxu0 0.0
    %409 = vmatpush1.msra.mxu0 0.0
    %410 = vmatprep.subr.mxu0 0.0
    %411 = vmatpush1.msra.mxu0 0.0
    %412 = vmatprep.subr.mxu0 0.0
    %413 = vmatpush1.msra.mxu0 0.0
    %414 = vmatprep.subr.mxu0 0.0
    %415 = vmatpush1.msra.mxu0 %v389
    %416 = vmatprep.subr.mxu0 0.0
    %417 = vmatpush1.msra.mxu0 %v388
    %418 = vmatprep.subr.mxu0 0.0
    %419 = vmatpush1.msra.mxu0 %v387
    %420 = vmatprep.subr.mxu0 0.0
    %421 = vmatpush1.msra.mxu0 %v386
    %422 = vmatprep.subr.mxu0 0.0
    %423 = vmatpush1.msra.mxu0 %v385
    %424 = vmatprep.subr.mxu0 0.0
    %425 = vmatpush1.msra.mxu0 %v384
    %426 = vmatprep.subr.mxu0 0.0
    %427 = vmatpush1.msra.mxu0 %v383
    %428 = vmatprep.subr.mxu0 0.0
    %429 = vmatpush1.msra.mxu0 %v382
    %430 = vmatprep.subr.mxu0 0.0
    %431 = vmatpush2.msra.mxu0 0.0
    %432 = vmatprep.subr.mxu0 0.0
    %433 = vmatpush2.msra.mxu0 0.0
    %434 = vmatprep.subr.mxu0 0.0
    %435 = vmatpush2.msra.mxu0 0.0
    %436 = vmatprep.subr.mxu0 0.0
    %437 = vmatpush2.msra.mxu0 0.0
    %438 = vmatprep.subr.mxu0 0.0
    %439 = vmatpush2.msra.mxu0 0.0
    %440 = vmatprep.subr.mxu0 0.0
    %441 = vmatpush2.msra.mxu0 0.0
    %442 = vmatprep.subr.mxu0 0.0
    %443 = vmatpush2.msra.mxu0 0.0
    %444 = vmatprep.subr.mxu0 0.0
    %445 = vmatpush2.msra.mxu0 0.0
    %446 = vmatprep.subr.mxu0 0.0
    %447 = vmatpush2.msra.mxu0 0.0
    %448 = vmatprep.subr.mxu0 0.0
    %449 = vmatpush2.msra.mxu0 0.0
    %450 = vmatprep.subr.mxu0 0.0
    %451 = vmatpush2.msra.mxu0 0.0
    %452 = vmatprep.subr.mxu0 0.0
    %453 = vmatpush2.msra.mxu0 0.0
    %454 = vmatprep.subr.mxu0 0.0
    %455 = vmatpush2.msra.mxu0 0.0
    %456 = vmatprep.subr.mxu0 0.0
    %457 = vmatpush2.msra.mxu0 0.0
    %458 = vmatprep.subr.mxu0 0.0
    %459 = vmatpush2.msra.mxu0 0.0
    %460 = vmatprep.subr.mxu0 0.0
    %461 = vmatpush2.msra.mxu0 0.0
    %462 = vmatprep.mubr.f32.mxu0 0.0
    %463 = vmatmul.mubr.f32.gmra.mxu0 %v396
    %v464 = vpop.f32.mrf.mxu0
    %v465 = vadd.f32 %v394, %v464
    %v466 = vpop.f32.mrf.mxu0
    %467 = vdwg.mxu0
    %v468 = vld [vmem:[#allocation2 + $0xd8] sm:$0xff]
    %v469 = vld [vmem:[#allocation2 + $0xe0] sm:$0xff]
    %v470 = vld [vmem:[#allocation2 + $0xe8] sm:$0xff]
    %v471 = vld [vmem:[#allocation2 + $0xf0] sm:$0xff]
    %v472 = vld [vmem:[#allocation2 + $0xf8] sm:$0xff]
    %v473 = vld [vmem:[#allocation2 + $0x100] sm:$0xff]
    %v474 = vld [vmem:[#allocation2 + $0x108] sm:$0xff]
    %v475 = vld [vmem:[#allocation2 + $0x110] sm:$0xff]
    %v476 = vld [vmem:[#allocation4 + $0x3] sm:$0x1]
    %v477 = vlaneseq
    %v478 = vshrl.u32 %v477, 7
    %v479 = vsub.s32 0, %v478
    %v480 = vrot.slane %v476, %v479
    %481 = vmatprep.subr.mxu0 0.0
    %482 = vmatpush1.msra.mxu0 0.0
    %483 = vmatprep.subr.mxu0 0.0
    %484 = vmatpush1.msra.mxu0 0.0
    %485 = vmatprep.subr.mxu0 0.0
    %486 = vmatpush1.msra.mxu0 0.0
    %487 = vmatprep.subr.mxu0 0.0
    %488 = vmatpush1.msra.mxu0 0.0
    %489 = vmatprep.subr.mxu0 0.0
    %490 = vmatpush1.msra.mxu0 0.0
    %491 = vmatprep.subr.mxu0 0.0
    %492 = vmatpush1.msra.mxu0 0.0
    %493 = vmatprep.subr.mxu0 0.0
    %494 = vmatpush1.msra.mxu0 0.0
    %495 = vmatprep.subr.mxu0 0.0
    %496 = vmatpush1.msra.mxu0 0.0
    %497 = vmatprep.subr.mxu0 0.0
    %498 = vmatpush1.msra.mxu0 %v475
    %499 = vmatprep.subr.mxu0 0.0
    %500 = vmatpush1.msra.mxu0 %v474
    %501 = vmatprep.subr.mxu0 0.0
    %502 = vmatpush1.msra.mxu0 %v473
    %503 = vmatprep.subr.mxu0 0.0
    %504 = vmatpush1.msra.mxu0 %v472
    %505 = vmatprep.subr.mxu0 0.0
    %506 = vmatpush1.msra.mxu0 %v471
    %507 = vmatprep.subr.mxu0 0.0
    %508 = vmatpush1.msra.mxu0 %v470
    %509 = vmatprep.subr.mxu0 0.0
    %510 = vmatpush1.msra.mxu0 %v469
    %511 = vmatprep.subr.mxu0 0.0
    %512 = vmatpush1.msra.mxu0 %v468
    %513 = vmatprep.subr.mxu0 0.0
    %514 = vmatpush2.msra.mxu0 0.0
    %515 = vmatprep.subr.mxu0 0.0
    %516 = vmatpush2.msra.mxu0 0.0
    %517 = vmatprep.subr.mxu0 0.0
    %518 = vmatpush2.msra.mxu0 0.0
    %519 = vmatprep.subr.mxu0 0.0
    %520 = vmatpush2.msra.mxu0 0.0
    %521 = vmatprep.subr.mxu0 0.0
    %522 = vmatpush2.msra.mxu0 0.0
    %523 = vmatprep.subr.mxu0 0.0
    %524 = vmatpush2.msra.mxu0 0.0
    %525 = vmatprep.subr.mxu0 0.0
    %526 = vmatpush2.msra.mxu0 0.0
    %527 = vmatprep.subr.mxu0 0.0
    %528 = vmatpush2.msra.mxu0 0.0
    %529 = vmatprep.subr.mxu0 0.0
    %530 = vmatpush2.msra.mxu0 0.0
    %531 = vmatprep.subr.mxu0 0.0
    %532 = vmatpush2.msra.mxu0 0.0
    %533 = vmatprep.subr.mxu0 0.0
    %534 = vmatpush2.msra.mxu0 0.0
    %535 = vmatprep.subr.mxu0 0.0
    %536 = vmatpush2.msra.mxu0 0.0
    %537 = vmatprep.subr.mxu0 0.0
    %538 = vmatpush2.msra.mxu0 0.0
    %539 = vmatprep.subr.mxu0 0.0
    %540 = vmatpush2.msra.mxu0 0.0
    %541 = vmatprep.subr.mxu0 0.0
    %542 = vmatpush2.msra.mxu0 0.0
    %543 = vmatprep.subr.mxu0 0.0
    %544 = vmatpush2.msra.mxu0 0.0
    %545 = vmatprep.mubr.f32.mxu0 0.0
    %546 = vmatmul.mubr.f32.gmra.mxu0 %v396
    %v547 = vpop.f32.mrf.mxu0
    %v548 = vadd.f32 %v480, %v547
    %v549 = vpop.f32.mrf.mxu0
    %550 = vdwg.mxu0
    %v551 = vxor.u32 %v548, 2147483648
    %v552 = vmul.f32 %v551, 1.442695
    %v553 = vpow.pop %v552
    %v554 = vadd.f32 %v553, 1.0
    %v555 = vrcp.pop %v554
    %v556 = vmul.f32 1.0, %v555
    %v557 = vmul.f32 %v465, %v556
    %v558 = vadd.f32 %v173, %v557
    %v559 = vld [vmem:[#allocation2 + $0x118] sm:$0xff]
    %v560 = vld [vmem:[#allocation2 + $0x120] sm:$0xff]
    %v561 = vld [vmem:[#allocation2 + $0x128] sm:$0xff]
    %v562 = vld [vmem:[#allocation2 + $0x130] sm:$0xff]
    %v563 = vld [vmem:[#allocation2 + $0x138] sm:$0xff]
    %v564 = vld [vmem:[#allocation2 + $0x140] sm:$0xff]
    %v565 = vld [vmem:[#allocation2 + $0x148] sm:$0xff]
    %v566 = vld [vmem:[#allocation2 + $0x150] sm:$0xff]
    %v568 = vsel %vm207, %v558, 0
    %570 = vmatprep.subr.mxu0 0.0
    %571 = vmatpush1.msra.mxu0 0.0
    %572 = vmatprep.subr.mxu0 0.0
    %573 = vmatpush1.msra.mxu0 0.0
    %574 = vmatprep.subr.mxu0 0.0
    %575 = vmatpush1.msra.mxu0 0.0
    %576 = vmatprep.subr.mxu0 0.0
    %577 = vmatpush1.msra.mxu0 0.0
    %578 = vmatprep.subr.mxu0 0.0
    %579 = vmatpush1.msra.mxu0 0.0
    %580 = vmatprep.subr.mxu0 0.0
    %581 = vmatpush1.msra.mxu0 0.0
    %582 = vmatprep.subr.mxu0 0.0
    %583 = vmatpush1.msra.mxu0 0.0
    %584 = vmatprep.subr.mxu0 0.0
    %585 = vmatpush1.msra.mxu0 0.0
    %586 = vmatprep.subr.mxu0 0.0
    %587 = vmatpush1.msra.mxu0 %v566
    %588 = vmatprep.subr.mxu0 0.0
    %589 = vmatpush1.msra.mxu0 %v565
    %590 = vmatprep.subr.mxu0 0.0
    %591 = vmatpush1.msra.mxu0 %v564
    %592 = vmatprep.subr.mxu0 0.0
    %593 = vmatpush1.msra.mxu0 %v563
    %594 = vmatprep.subr.mxu0 0.0
    %595 = vmatpush1.msra.mxu0 %v562
    %596 = vmatprep.subr.mxu0 0.0
    %597 = vmatpush1.msra.mxu0 %v561
    %598 = vmatprep.subr.mxu0 0.0
    %599 = vmatpush1.msra.mxu0 %v560
    %600 = vmatprep.subr.mxu0 0.0
    %601 = vmatpush1.msra.mxu0 %v559
    %602 = vmatprep.subr.mxu0 0.0
    %603 = vmatpush2.msra.mxu0 0.0
    %604 = vmatprep.subr.mxu0 0.0
    %605 = vmatpush2.msra.mxu0 0.0
    %606 = vmatprep.subr.mxu0 0.0
    %607 = vmatpush2.msra.mxu0 0.0
    %608 = vmatprep.subr.mxu0 0.0
    %609 = vmatpush2.msra.mxu0 0.0
    %610 = vmatprep.subr.mxu0 0.0
    %611 = vmatpush2.msra.mxu0 0.0
    %612 = vmatprep.subr.mxu0 0.0
    %613 = vmatpush2.msra.mxu0 0.0
    %614 = vmatprep.subr.mxu0 0.0
    %615 = vmatpush2.msra.mxu0 0.0
    %616 = vmatprep.subr.mxu0 0.0
    %617 = vmatpush2.msra.mxu0 0.0
    %618 = vmatprep.subr.mxu0 0.0
    %619 = vmatpush2.msra.mxu0 0.0
    %620 = vmatprep.subr.mxu0 0.0
    %621 = vmatpush2.msra.mxu0 0.0
    %622 = vmatprep.subr.mxu0 0.0
    %623 = vmatpush2.msra.mxu0 0.0
    %624 = vmatprep.subr.mxu0 0.0
    %625 = vmatpush2.msra.mxu0 0.0
    %626 = vmatprep.subr.mxu0 0.0
    %627 = vmatpush2.msra.mxu0 0.0
    %628 = vmatprep.subr.mxu0 0.0
    %629 = vmatpush2.msra.mxu0 0.0
    %630 = vmatprep.subr.mxu0 0.0
    %631 = vmatpush2.msra.mxu0 0.0
    %632 = vmatprep.subr.mxu0 0.0
    %633 = vmatpush2.msra.mxu0 0.0
    %634 = vmatprep.mubr.f32.mxu0 0.0
    %635 = vmatmul.mubr.f32.gmra.mxu0 %v568
    %v636 = vpop.f32.mrf.mxu0
    %v637 = vadd.f32 0.0, %v636
    %v638 = vpop.f32.mrf.mxu0
    %639 = vdwg.mxu0
    %v640 = vsub.f32 %v558, %v637
    %v641 = vmul.f32 %v640, %v640
    %v643 = vsel %vm207, %v641, 0
    %645 = vmatprep.subr.mxu0 0.0
    %646 = vmatpush1.msra.mxu0 0.0
    %647 = vmatprep.subr.mxu0 0.0
    %648 = vmatpush1.msra.mxu0 0.0
    %649 = vmatprep.subr.mxu0 0.0
    %650 = vmatpush1.msra.mxu0 0.0
    %651 = vmatprep.subr.mxu0 0.0
    %652 = vmatpush1.msra.mxu0 0.0
    %653 = vmatprep.subr.mxu0 0.0
    %654 = vmatpush1.msra.mxu0 0.0
    %655 = vmatprep.subr.mxu0 0.0
    %656 = vmatpush1.msra.mxu0 0.0
    %657 = vmatprep.subr.mxu0 0.0
    %658 = vmatpush1.msra.mxu0 0.0
    %659 = vmatprep.subr.mxu0 0.0
    %660 = vmatpush1.msra.mxu0 0.0
    %661 = vmatprep.subr.mxu0 0.0
    %662 = vmatpush1.msra.mxu0 %v566
    %663 = vmatprep.subr.mxu0 0.0
    %664 = vmatpush1.msra.mxu0 %v565
    %665 = vmatprep.subr.mxu0 0.0
    %666 = vmatpush1.msra.mxu0 %v564
    %667 = vmatprep.subr.mxu0 0.0
    %668 = vmatpush1.msra.mxu0 %v563
    %669 = vmatprep.subr.mxu0 0.0
    %670 = vmatpush1.msra.mxu0 %v562
    %671 = vmatprep.subr.mxu0 0.0
    %672 = vmatpush1.msra.mxu0 %v561
    %673 = vmatprep.subr.mxu0 0.0
    %674 = vmatpush1.msra.mxu0 %v560
    %675 = vmatprep.subr.mxu0 0.0
    %676 = vmatpush1.msra.mxu0 %v559
    %677 = vmatprep.subr.mxu0 0.0
    %678 = vmatpush2.msra.mxu0 0.0
    %679 = vmatprep.subr.mxu0 0.0
    %680 = vmatpush2.msra.mxu0 0.0
    %681 = vmatprep.subr.mxu0 0.0
    %682 = vmatpush2.msra.mxu0 0.0
    %683 = vmatprep.subr.mxu0 0.0
    %684 = vmatpush2.msra.mxu0 0.0
    %685 = vmatprep.subr.mxu0 0.0
    %686 = vmatpush2.msra.mxu0 0.0
    %687 = vmatprep.subr.mxu0 0.0
    %688 = vmatpush2.msra.mxu0 0.0
    %689 = vmatprep.subr.mxu0 0.0
    %690 = vmatpush2.msra.mxu0 0.0
    %691 = vmatprep.subr.mxu0 0.0
    %692 = vmatpush2.msra.mxu0 0.0
    %693 = vmatprep.subr.mxu0 0.0
    %694 = vmatpush2.msra.mxu0 0.0
    %695 = vmatprep.subr.mxu0 0.0
    %696 = vmatpush2.msra.mxu0 0.0
    %697 = vmatprep.subr.mxu0 0.0
    %698 = vmatpush2.msra.mxu0 0.0
    %699 = vmatprep.subr.mxu0 0.0
    %700 = vmatpush2.msra.mxu0 0.0
    %701 = vmatprep.subr.mxu0 0.0
    %702 = vmatpush2.msra.mxu0 0.0
    %703 = vmatprep.subr.mxu0 0.0
    %704 = vmatpush2.msra.mxu0 0.0
    %705 = vmatprep.subr.mxu0 0.0
    %706 = vmatpush2.msra.mxu0 0.0
    %707 = vmatprep.subr.mxu0 0.0
    %708 = vmatpush2.msra.mxu0 0.0
    %709 = vmatprep.mubr.f32.mxu0 0.0
    %710 = vmatmul.mubr.f32.gmra.mxu0 %v643
    %v711 = vpop.f32.mrf.mxu0
    %v712 = vadd.f32 1e-05, %v711
    %v713 = vpop.f32.mrf.mxu0
    %714 = vdwg.mxu0
    %v715 = vrsqrt.pop %v712
    %v716 = vmul.f32 %v640, %v715
    %v717 = vld [vmem:[#allocation4 + $0x4] sm:$0x1]
    %v718 = vlaneseq
    %v719 = vshrl.u32 %v718, 7
    %v720 = vsub.s32 0, %v719
    %v721 = vrot.slane %v717, %v720
    %v722 = vmul.f32 %v716, %v721
    %v723 = vld [vmem:[#allocation4 + $0x5] sm:$0x1]
    %v724 = vlaneseq
    %v725 = vshrl.u32 %v724, 7
    %v726 = vsub.s32 0, %v725
    %v727 = vrot.slane %v723, %v726
    %v728 = vadd.f32 %v722, %v727
    %v729 = vld [vmem:[#allocation2 + $0x158] sm:$0x3]
    %vm730 = vcmask 15360
    %v732 = vsel %vm730, %v292, 0
    %vm734 = vcmask 1041408
    %v736 = vsel %vm734, %v729, 0
    %738 = vmatprep.subr.mxu0 0.0
    %739 = vmatpush1.msra.mxu0 0.0
    %740 = vmatprep.subr.mxu0 0.0
    %741 = vmatpush1.msra.mxu0 0.0
    %742 = vmatprep.subr.mxu0 0.0
    %743 = vmatpush1.msra.mxu0 0.0
    %744 = vmatprep.subr.mxu0 0.0
    %745 = vmatpush1.msra.mxu0 0.0
    %746 = vmatprep.subr.mxu0 0.0
    %747 = vmatpush1.msra.mxu0 0.0
    %748 = vmatprep.subr.mxu0 0.0
    %749 = vmatpush1.msra.mxu0 0.0
    %750 = vmatprep.subr.mxu0 0.0
    %751 = vmatpush1.msra.mxu0 0.0
    %752 = vmatprep.subr.mxu0 0.0
    %753 = vmatpush1.msra.mxu0 0.0
    %754 = vmatprep.subr.mxu0 0.0
    %755 = vmatpush1.msra.mxu0 0.0
    %756 = vmatprep.subr.mxu0 0.0
    %757 = vmatpush1.msra.mxu0 0.0
    %758 = vmatprep.subr.mxu0 0.0
    %759 = vmatpush1.msra.mxu0 0.0
    %760 = vmatprep.subr.mxu0 0.0
    %761 = vmatpush1.msra.mxu0 0.0
    %762 = vmatprep.subr.mxu0 0.0
    %763 = vmatpush1.msra.mxu0 0.0
    %764 = vmatprep.subr.mxu0 0.0
    %765 = vmatpush1.msra.mxu0 0.0
    %766 = vmatprep.subr.mxu0 0.0
    %767 = vmatpush1.msra.mxu0 0.0
    %768 = vmatprep.subr.mxu0 0.0
    %769 = vmatpush1.msra.mxu0 %v736
    %770 = vmatprep.subr.mxu0 0.0
    %771 = vmatpush2.msra.mxu0 0.0
    %772 = vmatprep.subr.mxu0 0.0
    %773 = vmatpush2.msra.mxu0 0.0
    %774 = vmatprep.subr.mxu0 0.0
    %775 = vmatpush2.msra.mxu0 0.0
    %776 = vmatprep.subr.mxu0 0.0
    %777 = vmatpush2.msra.mxu0 0.0
    %778 = vmatprep.subr.mxu0 0.0
    %779 = vmatpush2.msra.mxu0 0.0
    %780 = vmatprep.subr.mxu0 0.0
    %781 = vmatpush2.msra.mxu0 0.0
    %782 = vmatprep.subr.mxu0 0.0
    %783 = vmatpush2.msra.mxu0 0.0
    %784 = vmatprep.subr.mxu0 0.0
    %785 = vmatpush2.msra.mxu0 0.0
    %786 = vmatprep.subr.mxu0 0.0
    %787 = vmatpush2.msra.mxu0 0.0
    %788 = vmatprep.subr.mxu0 0.0
    %789 = vmatpush2.msra.mxu0 0.0
    %790 = vmatprep.subr.mxu0 0.0
    %791 = vmatpush2.msra.mxu0 0.0
    %792 = vmatprep.subr.mxu0 0.0
    %793 = vmatpush2.msra.mxu0 0.0
    %794 = vmatprep.subr.mxu0 0.0
    %795 = vmatpush2.msra.mxu0 0.0
    %796 = vmatprep.subr.mxu0 0.0
    %797 = vmatpush2.msra.mxu0 0.0
    %798 = vmatprep.subr.mxu0 0.0
    %799 = vmatpush2.msra.mxu0 0.0
    %800 = vmatprep.subr.mxu0 0.0
    %801 = vmatpush2.msra.mxu0 0.0
    %802 = vmatprep.mubr.f32.mxu0 0.0
    %803 = vmatmul.mubr.f32.gmra.mxu0 %v732
    %v804 = vpop.f32.mrf.mxu0
    %v805 = vadd.f32 0.0, %v804
    %v806 = vpop.f32.mrf.mxu0
    %807 = vdwg.mxu0
    %v808 = vmul.f32 %v728, %v805
    %v809 = vld [vmem:[#allocation2 + $0x160] sm:$0xff]
    %v810 = vld [vmem:[#allocation2 + $0x168] sm:$0xff]
    %v811 = vld [vmem:[#allocation2 + $0x170] sm:$0xff]
    %v812 = vld [vmem:[#allocation2 + $0x178] sm:$0xff]
    %v813 = vld [vmem:[#allocation2 + $0x180] sm:$0xff]
    %v814 = vld [vmem:[#allocation2 + $0x188] sm:$0xff]
    %v815 = vld [vmem:[#allocation2 + $0x190] sm:$0xff]
    %v816 = vld [vmem:[#allocation2 + $0x198] sm:$0xff]
    %v818 = vsel %vm207, %v808, 0
    %820 = vmatprep.subr.mxu0 0.0
    %821 = vmatpush1.msra.mxu0 0.0
    %822 = vmatprep.subr.mxu0 0.0
    %823 = vmatpush1.msra.mxu0 0.0
    %824 = vmatprep.subr.mxu0 0.0
    %825 = vmatpush1.msra.mxu0 0.0
    %826 = vmatprep.subr.mxu0 0.0
    %827 = vmatpush1.msra.mxu0 0.0
    %828 = vmatprep.subr.mxu0 0.0
    %829 = vmatpush1.msra.mxu0 0.0
    %830 = vmatprep.subr.mxu0 0.0
    %831 = vmatpush1.msra.mxu0 0.0
    %832 = vmatprep.subr.mxu0 0.0
    %833 = vmatpush1.msra.mxu0 0.0
    %834 = vmatprep.subr.mxu0 0.0
    %835 = vmatpush1.msra.mxu0 0.0
    %836 = vmatprep.subr.mxu0 0.0
    %837 = vmatpush1.msra.mxu0 %v816
    %838 = vmatprep.subr.mxu0 0.0
    %839 = vmatpush1.msra.mxu0 %v815
    %840 = vmatprep.subr.mxu0 0.0
    %841 = vmatpush1.msra.mxu0 %v814
    %842 = vmatprep.subr.mxu0 0.0
    %843 = vmatpush1.msra.mxu0 %v813
    %844 = vmatprep.subr.mxu0 0.0
    %845 = vmatpush1.msra.mxu0 %v812
    %846 = vmatprep.subr.mxu0 0.0
    %847 = vmatpush1.msra.mxu0 %v811
    %848 = vmatprep.subr.mxu0 0.0
    %849 = vmatpush1.msra.mxu0 %v810
    %850 = vmatprep.subr.mxu0 0.0
    %851 = vmatpush1.msra.mxu0 %v809
    %852 = vmatprep.subr.mxu0 0.0
    %853 = vmatpush2.msra.mxu0 0.0
    %854 = vmatprep.subr.mxu0 0.0
    %855 = vmatpush2.msra.mxu0 0.0
    %856 = vmatprep.subr.mxu0 0.0
    %857 = vmatpush2.msra.mxu0 0.0
    %858 = vmatprep.subr.mxu0 0.0
    %859 = vmatpush2.msra.mxu0 0.0
    %860 = vmatprep.subr.mxu0 0.0
    %861 = vmatpush2.msra.mxu0 0.0
    %862 = vmatprep.subr.mxu0 0.0
    %863 = vmatpush2.msra.mxu0 0.0
    %864 = vmatprep.subr.mxu0 0.0
    %865 = vmatpush2.msra.mxu0 0.0
    %866 = vmatprep.subr.mxu0 0.0
    %867 = vmatpush2.msra.mxu0 0.0
    %868 = vmatprep.subr.mxu0 0.0
    %869 = vmatpush2.msra.mxu0 0.0
    %870 = vmatprep.subr.mxu0 0.0
    %871 = vmatpush2.msra.mxu0 0.0
    %872 = vmatprep.subr.mxu0 0.0
    %873 = vmatpush2.msra.mxu0 0.0
    %874 = vmatprep.subr.mxu0 0.0
    %875 = vmatpush2.msra.mxu0 0.0
    %876 = vmatprep.subr.mxu0 0.0
    %877 = vmatpush2.msra.mxu0 0.0
    %878 = vmatprep.subr.mxu0 0.0
    %879 = vmatpush2.msra.mxu0 0.0
    %880 = vmatprep.subr.mxu0 0.0
    %881 = vmatpush2.msra.mxu0 0.0
    %882 = vmatprep.subr.mxu0 0.0
    %883 = vmatpush2.msra.mxu0 0.0
    %884 = vmatprep.mubr.f32.mxu0 0.0
    %885 = vmatmul.mubr.f32.gmra.mxu0 %v818
    %v886 = vpop.f32.mrf.mxu0
    %v887 = vadd.f32 0.0, %v886
    %v888 = vpop.f32.mrf.mxu0
    %889 = vdwg.mxu0
    %891 = vrot.lane.b32.xlu0 %v887, 32
    %v892 = vpop.permute.xlu0 %891
    %894 = vrot.lane.b32.xlu0 %v887, 64
    %v895 = vpop.permute.xlu0 %894
    %v897 = vsel %vm172, %v887, %v892
    %v898 = vsel %vm207, %v897, %v895
    %v899 = vld [vmem:[#allocation2 + $0x1a0] sm:$0xff]
    %v900 = vld [vmem:[#allocation2 + $0x1a8] sm:$0xff]
    %v901 = vld [vmem:[#allocation2 + $0x1b0] sm:$0xff]
    %v902 = vld [vmem:[#allocation2 + $0x1b8] sm:$0xff]
    %v903 = vld [vmem:[#allocation4 + $0x6] sm:$0x1]
    %v904 = vlaneseq
    %v905 = vshrl.u32 %v904, 7
    %v906 = vsub.s32 0, %v905
    %v907 = vrot.slane %v903, %v906
    %v908 = vsel %vm172, %v887, 0
    %910 = vmatprep.subr.mxu0 0.0
    %911 = vmatpush1.msra.mxu0 0.0
    %912 = vmatprep.subr.mxu0 0.0
    %913 = vmatpush1.msra.mxu0 0.0
    %914 = vmatprep.subr.mxu0 0.0
    %915 = vmatpush1.msra.mxu0 0.0
    %916 = vmatprep.subr.mxu0 0.0
    %917 = vmatpush1.msra.mxu0 0.0
    %918 = vmatprep.subr.mxu0 0.0
    %919 = vmatpush1.msra.mxu0 0.0
    %920 = vmatprep.subr.mxu0 0.0
    %921 = vmatpush1.msra.mxu0 0.0
    %922 = vmatprep.subr.mxu0 0.0
    %923 = vmatpush1.msra.mxu0 0.0
    %924 = vmatprep.subr.mxu0 0.0
    %925 = vmatpush1.msra.mxu0 0.0
    %926 = vmatprep.subr.mxu0 0.0
    %927 = vmatpush1.msra.mxu0 0.0
    %928 = vmatprep.subr.mxu0 0.0
    %929 = vmatpush1.msra.mxu0 0.0
    %930 = vmatprep.subr.mxu0 0.0
    %931 = vmatpush1.msra.mxu0 0.0
    %932 = vmatprep.subr.mxu0 0.0
    %933 = vmatpush1.msra.mxu0 0.0
    %934 = vmatprep.subr.mxu0 0.0
    %935 = vmatpush1.msra.mxu0 %v902
    %936 = vmatprep.subr.mxu0 0.0
    %937 = vmatpush1.msra.mxu0 %v901
    %938 = vmatprep.subr.mxu0 0.0
    %939 = vmatpush1.msra.mxu0 %v900
    %940 = vmatprep.subr.mxu0 0.0
    %941 = vmatpush1.msra.mxu0 %v899
    %942 = vmatprep.subr.mxu0 0.0
    %943 = vmatpush2.msra.mxu0 0.0
    %944 = vmatprep.subr.mxu0 0.0
    %945 = vmatpush2.msra.mxu0 0.0
    %946 = vmatprep.subr.mxu0 0.0
    %947 = vmatpush2.msra.mxu0 0.0
    %948 = vmatprep.subr.mxu0 0.0
    %949 = vmatpush2.msra.mxu0 0.0
    %950 = vmatprep.subr.mxu0 0.0
    %951 = vmatpush2.msra.mxu0 0.0
    %952 = vmatprep.subr.mxu0 0.0
    %953 = vmatpush2.msra.mxu0 0.0
    %954 = vmatprep.subr.mxu0 0.0
    %955 = vmatpush2.msra.mxu0 0.0
    %956 = vmatprep.subr.mxu0 0.0
    %957 = vmatpush2.msra.mxu0 0.0
    %958 = vmatprep.subr.mxu0 0.0
    %959 = vmatpush2.msra.mxu0 0.0
    %960 = vmatprep.subr.mxu0 0.0
    %961 = vmatpush2.msra.mxu0 0.0
    %962 = vmatprep.subr.mxu0 0.0
    %963 = vmatpush2.msra.mxu0 0.0
    %964 = vmatprep.subr.mxu0 0.0
    %965 = vmatpush2.msra.mxu0 0.0
    %966 = vmatprep.subr.mxu0 0.0
    %967 = vmatpush2.msra.mxu0 0.0
    %968 = vmatprep.subr.mxu0 0.0
    %969 = vmatpush2.msra.mxu0 0.0
    %970 = vmatprep.subr.mxu0 0.0
    %971 = vmatpush2.msra.mxu0 0.0
    %972 = vmatprep.subr.mxu0 0.0
    %973 = vmatpush2.msra.mxu0 0.0
    %974 = vmatprep.mubr.f32.mxu0 0.0
    %975 = vmatmul.mubr.f32.gmra.mxu0 %v908
    %v976 = vpop.f32.mrf.mxu0
    %v977 = vadd.f32 %v907, %v976
    %v978 = vpop.f32.mrf.mxu0
    %979 = vdwg.mxu0
    %vm980 = vcmp.gt.f32.partialorder %v977, 0.0
    %v981 = vmin.f32 %v977, 0.0
    %v982 = vmul.f32 %v981, 1.442695
    %v983 = vpow.pop %v982
    %v984 = vsub.f32 %v983, 1.0
    %v985 = vsel %vm980, %v977, %v984
    %v986 = vld [vmem:[#allocation2 + $0x1c0] sm:$0xff]
    %v987 = vld [vmem:[#allocation2 + $0x1c8] sm:$0xff]
    %v988 = vld [vmem:[#allocation2 + $0x1d0] sm:$0xff]
    %v989 = vld [vmem:[#allocation2 + $0x1d8] sm:$0xff]
    %v990 = vld [vmem:[#allocation2 + $0x1e0] sm:$0xff]
    %v991 = vld [vmem:[#allocation2 + $0x1e8] sm:$0xff]
    %v992 = vld [vmem:[#allocation2 + $0x1f0] sm:$0xff]
    %v993 = vld [vmem:[#allocation2 + $0x1f8] sm:$0xff]
    %v994 = vld [vmem:[#allocation2 + $0x200] sm:$0xff]
    %v995 = vld [vmem:[#allocation2 + $0x208] sm:$0xff]
    %v996 = vld [vmem:[#allocation2 + $0x210] sm:$0xff]
    %v997 = vld [vmem:[#allocation2 + $0x218] sm:$0xff]
    %v998 = vld [vmem:[#allocation4 + $0x7] sm:$0x1]
    %v999 = vlaneseq
    %v1000 = vshrl.u32 %v999, 7
    %v1001 = vsub.s32 0, %v1000
    %v1002 = vrot.slane %v998, %v1001
    %vm1003 = vcmask 785408
    %v1005 = vsel %vm1003, %v985, 0
    %1007 = vmatprep.subr.mxu0 0.0
    %1008 = vmatpush1.msra.mxu0 0.0
    %1009 = vmatprep.subr.mxu0 0.0
    %1010 = vmatpush1.msra.mxu0 0.0
    %1011 = vmatprep.subr.mxu0 0.0
    %1012 = vmatpush1.msra.mxu0 0.0
    %1013 = vmatprep.subr.mxu0 0.0
    %1014 = vmatpush1.msra.mxu0 0.0
    %1015 = vmatprep.subr.mxu0 0.0
    %1016 = vmatpush1.msra.mxu0 %v997
    %1017 = vmatprep.subr.mxu0 0.0
    %1018 = vmatpush1.msra.mxu0 %v996
    %1019 = vmatprep.subr.mxu0 0.0
    %1020 = vmatpush1.msra.mxu0 %v995
    %1021 = vmatprep.subr.mxu0 0.0
    %1022 = vmatpush1.msra.mxu0 %v994
    %1023 = vmatprep.subr.mxu0 0.0
    %1024 = vmatpush1.msra.mxu0 %v993
    %1025 = vmatprep.subr.mxu0 0.0
    %1026 = vmatpush1.msra.mxu0 %v992
    %1027 = vmatprep.subr.mxu0 0.0
    %1028 = vmatpush1.msra.mxu0 %v991
    %1029 = vmatprep.subr.mxu0 0.0
    %1030 = vmatpush1.msra.mxu0 %v990
    %1031 = vmatprep.subr.mxu0 0.0
    %1032 = vmatpush1.msra.mxu0 %v989
    %1033 = vmatprep.subr.mxu0 0.0
    %1034 = vmatpush1.msra.mxu0 %v988
    %1035 = vmatprep.subr.mxu0 0.0
    %1036 = vmatpush1.msra.mxu0 %v987
    %1037 = vmatprep.subr.mxu0 0.0
    %1038 = vmatpush1.msra.mxu0 %v986
    %1039 = vmatprep.subr.mxu0 0.0
    %1040 = vmatpush2.msra.mxu0 0.0
    %1041 = vmatprep.subr.mxu0 0.0
    %1042 = vmatpush2.msra.mxu0 0.0
    %1043 = vmatprep.subr.mxu0 0.0
    %1044 = vmatpush2.msra.mxu0 0.0
    %1045 = vmatprep.subr.mxu0 0.0
    %1046 = vmatpush2.msra.mxu0 0.0
    %1047 = vmatprep.subr.mxu0 0.0
    %1048 = vmatpush2.msra.mxu0 0.0
    %1049 = vmatprep.subr.mxu0 0.0
    %1050 = vmatpush2.msra.mxu0 0.0
    %1051 = vmatprep.subr.mxu0 0.0
    %1052 = vmatpush2.msra.mxu0 0.0
    %1053 = vmatprep.subr.mxu0 0.0
    %1054 = vmatpush2.msra.mxu0 0.0
    %1055 = vmatprep.subr.mxu0 0.0
    %1056 = vmatpush2.msra.mxu0 0.0
    %1057 = vmatprep.subr.mxu0 0.0
    %1058 = vmatpush2.msra.mxu0 0.0
    %1059 = vmatprep.subr.mxu0 0.0
    %1060 = vmatpush2.msra.mxu0 0.0
    %1061 = vmatprep.subr.mxu0 0.0
    %1062 = vmatpush2.msra.mxu0 0.0
    %1063 = vmatprep.subr.mxu0 0.0
    %1064 = vmatpush2.msra.mxu0 0.0
    %1065 = vmatprep.subr.mxu0 0.0
    %1066 = vmatpush2.msra.mxu0 0.0
    %1067 = vmatprep.subr.mxu0 0.0
    %1068 = vmatpush2.msra.mxu0 0.0
    %1069 = vmatprep.subr.mxu0 0.0
    %1070 = vmatpush2.msra.mxu0 0.0
    %1071 = vmatprep.mubr.f32.mxu0 0.0
    %1072 = vmatmul.mubr.f32.gmra.mxu0 %v1005
    %v1073 = vpop.f32.mrf.mxu0
    %v1074 = vadd.f32 %v1002, %v1073
    %v1075 = vpop.f32.mrf.mxu0
    %1076 = vdwg.mxu0
    %v1077 = vld [vmem:[#allocation2 + $0x220] sm:$0xff]
    %v1078 = vld [vmem:[#allocation2 + $0x228] sm:$0xff]
    %v1079 = vld [vmem:[#allocation2 + $0x230] sm:$0xff]
    %v1080 = vld [vmem:[#allocation2 + $0x238] sm:$0xff]
    %v1081 = vld [vmem:[#allocation2 + $0x240] sm:$0xff]
    %v1082 = vld [vmem:[#allocation2 + $0x248] sm:$0xff]
    %v1083 = vld [vmem:[#allocation2 + $0x250] sm:$0xff]
    %v1084 = vld [vmem:[#allocation2 + $0x258] sm:$0xff]
    %v1085 = vld [vmem:[#allocation2 + $0x260] sm:$0xff]
    %v1086 = vld [vmem:[#allocation2 + $0x268] sm:$0xff]
    %v1087 = vld [vmem:[#allocation2 + $0x270] sm:$0xff]
    %v1088 = vld [vmem:[#allocation2 + $0x278] sm:$0xff]
    %v1089 = vld [vmem:[#allocation4 + $0x8] sm:$0x1]
    %v1090 = vlaneseq
    %v1091 = vshrl.u32 %v1090, 7
    %v1092 = vsub.s32 0, %v1091
    %v1093 = vrot.slane %v1089, %v1092
    %1094 = vmatprep.subr.mxu0 0.0
    %1095 = vmatpush1.msra.mxu0 0.0
    %1096 = vmatprep.subr.mxu0 0.0
    %1097 = vmatpush1.msra.mxu0 0.0
    %1098 = vmatprep.subr.mxu0 0.0
    %1099 = vmatpush1.msra.mxu0 0.0
    %1100 = vmatprep.subr.mxu0 0.0
    %1101 = vmatpush1.msra.mxu0 0.0
    %1102 = vmatprep.subr.mxu0 0.0
    %1103 = vmatpush1.msra.mxu0 %v1088
    %1104 = vmatprep.subr.mxu0 0.0
    %1105 = vmatpush1.msra.mxu0 %v1087
    %1106 = vmatprep.subr.mxu0 0.0
    %1107 = vmatpush1.msra.mxu0 %v1086
    %1108 = vmatprep.subr.mxu0 0.0
    %1109 = vmatpush1.msra.mxu0 %v1085
    %1110 = vmatprep.subr.mxu0 0.0
    %1111 = vmatpush1.msra.mxu0 %v1084
    %1112 = vmatprep.subr.mxu0 0.0
    %1113 = vmatpush1.msra.mxu0 %v1083
    %1114 = vmatprep.subr.mxu0 0.0
    %1115 = vmatpush1.msra.mxu0 %v1082
    %1116 = vmatprep.subr.mxu0 0.0
    %1117 = vmatpush1.msra.mxu0 %v1081
    %1118 = vmatprep.subr.mxu0 0.0
    %1119 = vmatpush1.msra.mxu0 %v1080
    %1120 = vmatprep.subr.mxu0 0.0
    %1121 = vmatpush1.msra.mxu0 %v1079
    %1122 = vmatprep.subr.mxu0 0.0
    %1123 = vmatpush1.msra.mxu0 %v1078
    %1124 = vmatprep.subr.mxu0 0.0
    %1125 = vmatpush1.msra.mxu0 %v1077
    %1126 = vmatprep.subr.mxu0 0.0
    %1127 = vmatpush2.msra.mxu0 0.0
    %1128 = vmatprep.subr.mxu0 0.0
    %1129 = vmatpush2.msra.mxu0 0.0
    %1130 = vmatprep.subr.mxu0 0.0
    %1131 = vmatpush2.msra.mxu0 0.0
    %1132 = vmatprep.subr.mxu0 0.0
    %1133 = vmatpush2.msra.mxu0 0.0
    %1134 = vmatprep.subr.mxu0 0.0
    %1135 = vmatpush2.msra.mxu0 0.0
    %1136 = vmatprep.subr.mxu0 0.0
    %1137 = vmatpush2.msra.mxu0 0.0
    %1138 = vmatprep.subr.mxu0 0.0
    %1139 = vmatpush2.msra.mxu0 0.0
    %1140 = vmatprep.subr.mxu0 0.0
    %1141 = vmatpush2.msra.mxu0 0.0
    %1142 = vmatprep.subr.mxu0 0.0
    %1143 = vmatpush2.msra.mxu0 0.0
    %1144 = vmatprep.subr.mxu0 0.0
    %1145 = vmatpush2.msra.mxu0 0.0
    %1146 = vmatprep.subr.mxu0 0.0
    %1147 = vmatpush2.msra.mxu0 0.0
    %1148 = vmatprep.subr.mxu0 0.0
    %1149 = vmatpush2.msra.mxu0 0.0
    %1150 = vmatprep.subr.mxu0 0.0
    %1151 = vmatpush2.msra.mxu0 0.0
    %1152 = vmatprep.subr.mxu0 0.0
    %1153 = vmatpush2.msra.mxu0 0.0
    %1154 = vmatprep.subr.mxu0 0.0
    %1155 = vmatpush2.msra.mxu0 0.0
    %1156 = vmatprep.subr.mxu0 0.0
    %1157 = vmatpush2.msra.mxu0 0.0
    %1158 = vmatprep.mubr.f32.mxu0 0.0
    %1159 = vmatmul.mubr.f32.gmra.mxu0 %v1005
    %v1160 = vpop.f32.mrf.mxu0
    %v1161 = vadd.f32 %v1093, %v1160
    %v1162 = vpop.f32.mrf.mxu0
    %1163 = vdwg.mxu0
    %v1164 = vxor.u32 %v1161, 2147483648
    %v1165 = vmul.f32 %v1164, 1.442695
    %v1166 = vpow.pop %v1165
    %v1167 = vadd.f32 %v1166, 1.0
    %v1168 = vrcp.pop %v1167
    %v1169 = vmul.f32 1.0, %v1168
    %v1170 = vmul.f32 %v1074, %v1169
    %v1171 = vadd.f32 %v898, %v1170
    %v1172 = vld [vmem:[#allocation2 + $0x280] sm:$0xff]
    %v1173 = vld [vmem:[#allocation2 + $0x288] sm:$0xff]
    %v1174 = vld [vmem:[#allocation2 + $0x290] sm:$0xff]
    %v1175 = vld [vmem:[#allocation2 + $0x298] sm:$0xff]
    %v1176 = vld [vmem:[#allocation2 + $0x2a0] sm:$0xff]
    %v1177 = vld [vmem:[#allocation2 + $0x2a8] sm:$0xff]
    %v1178 = vld [vmem:[#allocation2 + $0x2b0] sm:$0xff]
    %v1179 = vld [vmem:[#allocation2 + $0x2b8] sm:$0xff]
    %v1180 = vld [vmem:[#allocation2 + $0x2c0] sm:$0xff]
    %v1181 = vld [vmem:[#allocation2 + $0x2c8] sm:$0xff]
    %v1182 = vld [vmem:[#allocation2 + $0x2d0] sm:$0xff]
    %v1183 = vld [vmem:[#allocation2 + $0x2d8] sm:$0xff]
    %v1185 = vsel %vm1003, %v1171, 0
    %1187 = vmatprep.subr.mxu0 0.0
    %1188 = vmatpush1.msra.mxu0 0.0
    %1189 = vmatprep.subr.mxu0 0.0
    %1190 = vmatpush1.msra.mxu0 0.0
    %1191 = vmatprep.subr.mxu0 0.0
    %1192 = vmatpush1.msra.mxu0 0.0
    %1193 = vmatprep.subr.mxu0 0.0
    %1194 = vmatpush1.msra.mxu0 0.0
    %1195 = vmatprep.subr.mxu0 0.0
    %1196 = vmatpush1.msra.mxu0 %v1183
    %1197 = vmatprep.subr.mxu0 0.0
    %1198 = vmatpush1.msra.mxu0 %v1182
    %1199 = vmatprep.subr.mxu0 0.0
    %1200 = vmatpush1.msra.mxu0 %v1181
    %1201 = vmatprep.subr.mxu0 0.0
    %1202 = vmatpush1.msra.mxu0 %v1180
    %1203 = vmatprep.subr.mxu0 0.0
    %1204 = vmatpush1.msra.mxu0 %v1179
    %1205 = vmatprep.subr.mxu0 0.0
    %1206 = vmatpush1.msra.mxu0 %v1178
    %1207 = vmatprep.subr.mxu0 0.0
    %1208 = vmatpush1.msra.mxu0 %v1177
    %1209 = vmatprep.subr.mxu0 0.0
    %1210 = vmatpush1.msra.mxu0 %v1176
    %1211 = vmatprep.subr.mxu0 0.0
    %1212 = vmatpush1.msra.mxu0 %v1175
    %1213 = vmatprep.subr.mxu0 0.0
    %1214 = vmatpush1.msra.mxu0 %v1174
    %1215 = vmatprep.subr.mxu0 0.0
    %1216 = vmatpush1.msra.mxu0 %v1173
    %1217 = vmatprep.subr.mxu0 0.0
    %1218 = vmatpush1.msra.mxu0 %v1172
    %1219 = vmatprep.subr.mxu0 0.0
    %1220 = vmatpush2.msra.mxu0 0.0
    %1221 = vmatprep.subr.mxu0 0.0
    %1222 = vmatpush2.msra.mxu0 0.0
    %1223 = vmatprep.subr.mxu0 0.0
    %1224 = vmatpush2.msra.mxu0 0.0
    %1225 = vmatprep.subr.mxu0 0.0
    %1226 = vmatpush2.msra.mxu0 0.0
    %1227 = vmatprep.subr.mxu0 0.0
    %1228 = vmatpush2.msra.mxu0 0.0
    %1229 = vmatprep.subr.mxu0 0.0
    %1230 = vmatpush2.msra.mxu0 0.0
    %1231 = vmatprep.subr.mxu0 0.0
    %1232 = vmatpush2.msra.mxu0 0.0
    %1233 = vmatprep.subr.mxu0 0.0
    %1234 = vmatpush2.msra.mxu0 0.0
    %1235 = vmatprep.subr.mxu0 0.0
    %1236 = vmatpush2.msra.mxu0 0.0
    %1237 = vmatprep.subr.mxu0 0.0
    %1238 = vmatpush2.msra.mxu0 0.0
    %1239 = vmatprep.subr.mxu0 0.0
    %1240 = vmatpush2.msra.mxu0 0.0
    %1241 = vmatprep.subr.mxu0 0.0
    %1242 = vmatpush2.msra.mxu0 0.0
    %1243 = vmatprep.subr.mxu0 0.0
    %1244 = vmatpush2.msra.mxu0 0.0
    %1245 = vmatprep.subr.mxu0 0.0
    %1246 = vmatpush2.msra.mxu0 0.0
    %1247 = vmatprep.subr.mxu0 0.0
    %1248 = vmatpush2.msra.mxu0 0.0
    %1249 = vmatprep.subr.mxu0 0.0
    %1250 = vmatpush2.msra.mxu0 0.0
    %1251 = vmatprep.mubr.f32.mxu0 0.0
    %1252 = vmatmul.mubr.f32.gmra.mxu0 %v1185
    %v1253 = vpop.f32.mrf.mxu0
    %v1254 = vadd.f32 0.0, %v1253
    %v1255 = vpop.f32.mrf.mxu0
    %1256 = vdwg.mxu0
    %v1257 = vsub.f32 %v1171, %v1254
    %v1258 = vmul.f32 %v1257, %v1257
    %v1260 = vsel %vm1003, %v1258, 0
    %1262 = vmatprep.subr.mxu0 0.0
    %1263 = vmatpush1.msra.mxu0 0.0
    %1264 = vmatprep.subr.mxu0 0.0
    %1265 = vmatpush1.msra.mxu0 0.0
    %1266 = vmatprep.subr.mxu0 0.0
    %1267 = vmatpush1.msra.mxu0 0.0
    %1268 = vmatprep.subr.mxu0 0.0
    %1269 = vmatpush1.msra.mxu0 0.0
    %1270 = vmatprep.subr.mxu0 0.0
    %1271 = vmatpush1.msra.mxu0 %v1183
    %1272 = vmatprep.subr.mxu0 0.0
    %1273 = vmatpush1.msra.mxu0 %v1182
    %1274 = vmatprep.subr.mxu0 0.0
    %1275 = vmatpush1.msra.mxu0 %v1181
    %1276 = vmatprep.subr.mxu0 0.0
    %1277 = vmatpush1.msra.mxu0 %v1180
    %1278 = vmatprep.subr.mxu0 0.0
    %1279 = vmatpush1.msra.mxu0 %v1179
    %1280 = vmatprep.subr.mxu0 0.0
    %1281 = vmatpush1.msra.mxu0 %v1178
    %1282 = vmatprep.subr.mxu0 0.0
    %1283 = vmatpush1.msra.mxu0 %v1177
    %1284 = vmatprep.subr.mxu0 0.0
    %1285 = vmatpush1.msra.mxu0 %v1176
    %1286 = vmatprep.subr.mxu0 0.0
    %1287 = vmatpush1.msra.mxu0 %v1175
    %1288 = vmatprep.subr.mxu0 0.0
    %1289 = vmatpush1.msra.mxu0 %v1174
    %1290 = vmatprep.subr.mxu0 0.0
    %1291 = vmatpush1.msra.mxu0 %v1173
    %1292 = vmatprep.subr.mxu0 0.0
    %1293 = vmatpush1.msra.mxu0 %v1172
    %1294 = vmatprep.subr.mxu0 0.0
    %1295 = vmatpush2.msra.mxu0 0.0
    %1296 = vmatprep.subr.mxu0 0.0
    %1297 = vmatpush2.msra.mxu0 0.0
    %1298 = vmatprep.subr.mxu0 0.0
    %1299 = vmatpush2.msra.mxu0 0.0
    %1300 = vmatprep.subr.mxu0 0.0
    %1301 = vmatpush2.msra.mxu0 0.0
    %1302 = vmatprep.subr.mxu0 0.0
    %1303 = vmatpush2.msra.mxu0 0.0
    %1304 = vmatprep.subr.mxu0 0.0
    %1305 = vmatpush2.msra.mxu0 0.0
    %1306 = vmatprep.subr.mxu0 0.0
    %1307 = vmatpush2.msra.mxu0 0.0
    %1308 = vmatprep.subr.mxu0 0.0
    %1309 = vmatpush2.msra.mxu0 0.0
    %1310 = vmatprep.subr.mxu0 0.0
    %1311 = vmatpush2.msra.mxu0 0.0
    %1312 = vmatprep.subr.mxu0 0.0
    %1313 = vmatpush2.msra.mxu0 0.0
    %1314 = vmatprep.subr.mxu0 0.0
    %1315 = vmatpush2.msra.mxu0 0.0
    %1316 = vmatprep.subr.mxu0 0.0
    %1317 = vmatpush2.msra.mxu0 0.0
    %1318 = vmatprep.subr.mxu0 0.0
    %1319 = vmatpush2.msra.mxu0 0.0
    %1320 = vmatprep.subr.mxu0 0.0
    %1321 = vmatpush2.msra.mxu0 0.0
    %1322 = vmatprep.subr.mxu0 0.0
    %1323 = vmatpush2.msra.mxu0 0.0
    %1324 = vmatprep.subr.mxu0 0.0
    %1325 = vmatpush2.msra.mxu0 0.0
    %1326 = vmatprep.mubr.f32.mxu0 0.0
    %1327 = vmatmul.mubr.f32.gmra.mxu0 %v1260
    %v1328 = vpop.f32.mrf.mxu0
    %v1329 = vadd.f32 1e-05, %v1328
    %v1330 = vpop.f32.mrf.mxu0
    %1331 = vdwg.mxu0
    %v1332 = vrsqrt.pop %v1329
    %v1333 = vmul.f32 %v1257, %v1332
    %v1334 = vld [vmem:[#allocation4 + $0x9] sm:$0x1]
    %v1335 = vlaneseq
    %v1336 = vshrl.u32 %v1335, 7
    %v1337 = vsub.s32 0, %v1336
    %v1338 = vrot.slane %v1334, %v1337
    %v1339 = vmul.f32 %v1333, %v1338
    %v1340 = vld [vmem:[#allocation4 + $0xa] sm:$0x1]
    %v1341 = vlaneseq
    %v1342 = vshrl.u32 %v1341, 7
    %v1343 = vsub.s32 0, %v1342
    %v1344 = vrot.slane %v1340, %v1343
    %v1345 = vadd.f32 %v1339, %v1344
    %v1346 = vld [vmem:[#allocation2 + $0x2e0] sm:$0xff]
    %v1347 = vld [vmem:[#allocation2 + $0x2e8] sm:$0xff]
    %v1348 = vld [vmem:[#allocation2 + $0x2f0] sm:$0xff]
    %v1349 = vld [vmem:[#allocation2 + $0x2f8] sm:$0xff]
    %v1350 = vld [vmem:[#allocation4 + $0xb] sm:$0x1]
    %v1351 = vlaneseq
    %v1352 = vshrl.u32 %v1351, 7
    %v1353 = vsub.s32 0, %v1352
    %v1354 = vrot.slane %v1350, %v1353
    %v1356 = vsel %vm172, %v192, 0
    %v1359 = vsel %vm172, %v193, 0
    %1361 = vmatprep.subr.mxu0 0.0
    %1362 = vmatpush1.msra.mxu0 0.0
    %1363 = vmatprep.subr.mxu0 0.0
    %1364 = vmatpush1.msra.mxu0 0.0
    %1365 = vmatprep.subr.mxu0 0.0
    %1366 = vmatpush1.msra.mxu0 0.0
    %1367 = vmatprep.subr.mxu0 0.0
    %1368 = vmatpush1.msra.mxu0 0.0
    %1369 = vmatprep.subr.mxu0 0.0
    %1370 = vmatpush1.msra.mxu0 0.0
    %1371 = vmatprep.subr.mxu0 0.0
    %1372 = vmatpush1.msra.mxu0 0.0
    %1373 = vmatprep.subr.mxu0 0.0
    %1374 = vmatpush1.msra.mxu0 0.0
    %1375 = vmatprep.subr.mxu0 0.0
    %1376 = vmatpush1.msra.mxu0 0.0
    %1377 = vmatprep.subr.mxu0 0.0
    %1378 = vmatpush1.msra.mxu0 0.0
    %1379 = vmatprep.subr.mxu0 0.0
    %1380 = vmatpush1.msra.mxu0 0.0
    %1381 = vmatprep.subr.mxu0 0.0
    %1382 = vmatpush1.msra.mxu0 0.0
    %1383 = vmatprep.subr.mxu0 0.0
    %1384 = vmatpush1.msra.mxu0 0.0
    %1385 = vmatprep.subr.mxu0 0.0
    %1386 = vmatpush1.msra.mxu0 %v1349
    %1387 = vmatprep.subr.mxu0 0.0
    %1388 = vmatpush1.msra.mxu0 %v1348
    %1389 = vmatprep.subr.mxu0 0.0
    %1390 = vmatpush1.msra.mxu0 %v1347
    %1391 = vmatprep.subr.mxu0 0.0
    %1392 = vmatpush1.msra.mxu0 %v1346
    %1393 = vmatprep.subr.mxu0 0.0
    %1394 = vmatpush2.msra.mxu0 0.0
    %1395 = vmatprep.subr.mxu0 0.0
    %1396 = vmatpush2.msra.mxu0 0.0
    %1397 = vmatprep.subr.mxu0 0.0
    %1398 = vmatpush2.msra.mxu0 0.0
    %1399 = vmatprep.subr.mxu0 0.0
    %1400 = vmatpush2.msra.mxu0 0.0
    %1401 = vmatprep.subr.mxu0 0.0
    %1402 = vmatpush2.msra.mxu0 0.0
    %1403 = vmatprep.subr.mxu0 0.0
    %1404 = vmatpush2.msra.mxu0 0.0
    %1405 = vmatprep.subr.mxu0 0.0
    %1406 = vmatpush2.msra.mxu0 0.0
    %1407 = vmatprep.subr.mxu0 0.0
    %1408 = vmatpush2.msra.mxu0 0.0
    %1409 = vmatprep.subr.mxu0 0.0
    %1410 = vmatpush2.msra.mxu0 0.0
    %1411 = vmatprep.subr.mxu0 0.0
    %1412 = vmatpush2.msra.mxu0 0.0
    %1413 = vmatprep.subr.mxu0 0.0
    %1414 = vmatpush2.msra.mxu0 0.0
    %1415 = vmatprep.subr.mxu0 0.0
    %1416 = vmatpush2.msra.mxu0 0.0
    %1417 = vmatprep.subr.mxu0 0.0
    %1418 = vmatpush2.msra.mxu0 0.0
    %1419 = vmatprep.subr.mxu0 0.0
    %1420 = vmatpush2.msra.mxu0 0.0
    %1421 = vmatprep.subr.mxu0 0.0
    %1422 = vmatpush2.msra.mxu0 0.0
    %1423 = vmatprep.subr.mxu0 0.0
    %1424 = vmatpush2.msra.mxu0 0.0
    %1425 = vmatprep.mubr.f32.mxu0 0.0
    %1426 = vmatmul.mubr.f32.gmra.mxu0 %v1356
    %v1427 = vpop.f32.mrf.mxu0
    %v1428 = vadd.f32 %v1354, %v1427
    %v1429 = vpop.f32.mrf.mxu0
    %1430 = vmatprep.mubr.f32.mxu0 0.0
    %1431 = vmatmul.mubr.f32.gmra.mxu0 %v1359
    %v1432 = vpop.f32.mrf.mxu0
    %v1433 = vadd.f32 %v1354, %v1432
    %v1434 = vpop.f32.mrf.mxu0
    %1435 = vdwg.mxu0
    %v1436 = vld [vmem:[#allocation2 + $0x300] sm:$0xff]
    %v1437 = vld [vmem:[#allocation2 + $0x308] sm:$0xff]
    %v1438 = vld [vmem:[#allocation2 + $0x310] sm:$0xff]
    %v1439 = vld [vmem:[#allocation2 + $0x318] sm:$0xff]
    %1441 = vrot.lane.b32.xlu0 %v1345, 96
    %v1442 = vpop.permute.xlu0 %1441
    %v1443 = vsel %vm172, %v1442, 0
    %1445 = vmatprep.subr.mxu0 0.0
    %1446 = vmatpush1.msra.mxu0 0.0
    %1447 = vmatprep.subr.mxu0 0.0
    %1448 = vmatpush1.msra.mxu0 0.0
    %1449 = vmatprep.subr.mxu0 0.0
    %1450 = vmatpush1.msra.mxu0 0.0
    %1451 = vmatprep.subr.mxu0 0.0
    %1452 = vmatpush1.msra.mxu0 0.0
    %1453 = vmatprep.subr.mxu0 0.0
    %1454 = vmatpush1.msra.mxu0 0.0
    %1455 = vmatprep.subr.mxu0 0.0
    %1456 = vmatpush1.msra.mxu0 0.0
    %1457 = vmatprep.subr.mxu0 0.0
    %1458 = vmatpush1.msra.mxu0 0.0
    %1459 = vmatprep.subr.mxu0 0.0
    %1460 = vmatpush1.msra.mxu0 0.0
    %1461 = vmatprep.subr.mxu0 0.0
    %1462 = vmatpush1.msra.mxu0 0.0
    %1463 = vmatprep.subr.mxu0 0.0
    %1464 = vmatpush1.msra.mxu0 0.0
    %1465 = vmatprep.subr.mxu0 0.0
    %1466 = vmatpush1.msra.mxu0 0.0
    %1467 = vmatprep.subr.mxu0 0.0
    %1468 = vmatpush1.msra.mxu0 0.0
    %1469 = vmatprep.subr.mxu0 0.0
    %1470 = vmatpush1.msra.mxu0 %v1439
    %1471 = vmatprep.subr.mxu0 0.0
    %1472 = vmatpush1.msra.mxu0 %v1438
    %1473 = vmatprep.subr.mxu0 0.0
    %1474 = vmatpush1.msra.mxu0 %v1437
    %1475 = vmatprep.subr.mxu0 0.0
    %1476 = vmatpush1.msra.mxu0 %v1436
    %1477 = vmatprep.subr.mxu0 0.0
    %1478 = vmatpush2.msra.mxu0 0.0
    %1479 = vmatprep.subr.mxu0 0.0
    %1480 = vmatpush2.msra.mxu0 0.0
    %1481 = vmatprep.subr.mxu0 0.0
    %1482 = vmatpush2.msra.mxu0 0.0
    %1483 = vmatprep.subr.mxu0 0.0
    %1484 = vmatpush2.msra.mxu0 0.0
    %1485 = vmatprep.subr.mxu0 0.0
    %1486 = vmatpush2.msra.mxu0 0.0
    %1487 = vmatprep.subr.mxu0 0.0
    %1488 = vmatpush2.msra.mxu0 0.0
    %1489 = vmatprep.subr.mxu0 0.0
    %1490 = vmatpush2.msra.mxu0 0.0
    %1491 = vmatprep.subr.mxu0 0.0
    %1492 = vmatpush2.msra.mxu0 0.0
    %1493 = vmatprep.subr.mxu0 0.0
    %1494 = vmatpush2.msra.mxu0 0.0
    %1495 = vmatprep.subr.mxu0 0.0
    %1496 = vmatpush2.msra.mxu0 0.0
    %1497 = vmatprep.subr.mxu0 0.0
    %1498 = vmatpush2.msra.mxu0 0.0
    %1499 = vmatprep.subr.mxu0 0.0
    %1500 = vmatpush2.msra.mxu0 0.0
    %1501 = vmatprep.subr.mxu0 0.0
    %1502 = vmatpush2.msra.mxu0 0.0
    %1503 = vmatprep.subr.mxu0 0.0
    %1504 = vmatpush2.msra.mxu0 0.0
    %1505 = vmatprep.subr.mxu0 0.0
    %1506 = vmatpush2.msra.mxu0 0.0
    %1507 = vmatprep.subr.mxu0 0.0
    %1508 = vmatpush2.msra.mxu0 0.0
    %1509 = vmatprep.mubr.f32.mxu0 0.0
    %1510 = vmatmul.mubr.f32.gmra.mxu0 %v1443
    %v1511 = vpop.f32.mrf.mxu0
    %v1512 = vadd.f32 0.0, %v1511
    %v1513 = vpop.f32.mrf.mxu0
    %1514 = vdwg.mxu0
    %v1516 = vrot.slane %v1512, 1
    %v1519 = vadd.f32 %v1428, %v1512
    %v1520 = vadd.f32 %v1433, %v1516
    %v1521 = vxor.u32 %v1519, 2147483648
    %v1522 = vxor.u32 %v1520, 2147483648
    %v1523 = vmul.f32 %v1521, 1.442695
    %v1524 = vpow.pop %v1523
    %v1525 = vmul.f32 %v1522, 1.442695
    %v1526 = vpow.pop %v1525
    %v1527 = vadd.f32 %v1524, 1.0
    %v1528 = vadd.f32 %v1526, 1.0
    %v1529 = vrcp.pop %v1527
    %v1530 = vmul.f32 1.0, %v1529
    %v1531 = vrcp.pop %v1528
    %v1532 = vmul.f32 1.0, %v1531
    %v1533 = vtanh.pop %v1519
    %v1534 = vtanh.pop %v1520
    %v1535 = vrot.slane %v1345, 1
    %1536 = vrot.lane.b32.xlu0 %v1535, 96
    %v1537 = vpop.permute.xlu0 %1536
    %v1540 = vmul.f32 %v1530, %v1442
    %v1541 = vmul.f32 %v1532, %v1537
    %1544 = vrot.lane.b32.xlu0 %v1533, 64
    %v1545 = vpop.permute.xlu0 %1544
    %1546 = vrot.lane.b32.xlu0 %v1534, 64
    %v1547 = vpop.permute.xlu0 %1546
    %v1550 = vmul.f32 %v1530, %v1545
    %v1551 = vmul.f32 %v1532, %v1547
    %1554 = vrot.lane.b32.xlu0 %v1550, 32
    %v1555 = vpop.permute.xlu0 %1554
    %1556 = vrot.lane.b32.xlu0 %v1551, 32
    %v1557 = vpop.permute.xlu0 %1556
    %v1560 = vadd.f32 %v1540, %v1555
    %v1561 = vadd.f32 %v1541, %v1557
    %v1562 = vtanh.pop %v1560
    %v1563 = vtanh.pop %v1561
    %1566 = vrot.lane.b32.xlu0 %v1562, 64
    %v1567 = vpop.permute.xlu0 %1566
    %1568 = vrot.lane.b32.xlu0 %v1563, 64
    %v1569 = vpop.permute.xlu0 %1568
    %v1572 = vmul.f32 %v1530, %v1567
    %v1573 = vmul.f32 %v1532, %v1569
    %v1576 = vrot.slane %v1573, 7
    %v1577 = vsel %vm79, %v1576, %v1572
    %1578 = vrot.lane.b32.xlu0 %v1577, 32
    %v1579 = vpop.permute.xlu0 %1578
    %v1580 = vsel %vm172, %v1579, 0
    %1582 = vmatprep.subr.mxu0 0.0
    %1583 = vmatpush1.msra.mxu0 0.0
    %1584 = vmatprep.subr.mxu0 0.0
    %1585 = vmatpush1.msra.mxu0 0.0
    %1586 = vmatprep.subr.mxu0 0.0
    %1587 = vmatpush1.msra.mxu0 0.0
    %1588 = vmatprep.subr.mxu0 0.0
    %1589 = vmatpush1.msra.mxu0 0.0
    %1590 = vmatprep.subr.mxu0 0.0
    %1591 = vmatpush1.msra.mxu0 0.0
    %1592 = vmatprep.subr.mxu0 0.0
    %1593 = vmatpush1.msra.mxu0 0.0
    %1594 = vmatprep.subr.mxu0 0.0
    %1595 = vmatpush1.msra.mxu0 0.0
    %1596 = vmatprep.subr.mxu0 0.0
    %1597 = vmatpush1.msra.mxu0 0.0
    %1598 = vmatprep.subr.mxu0 0.0
    %1599 = vmatpush1.msra.mxu0 0.0
    %1600 = vmatprep.subr.mxu0 0.0
    %1601 = vmatpush1.msra.mxu0 0.0
    %1602 = vmatprep.subr.mxu0 0.0
    %1603 = vmatpush1.msra.mxu0 0.0
    %1604 = vmatprep.subr.mxu0 0.0
    %1605 = vmatpush1.msra.mxu0 0.0
    %1606 = vmatprep.subr.mxu0 0.0
    %1607 = vmatpush1.msra.mxu0 %v1439
    %1608 = vmatprep.subr.mxu0 0.0
    %1609 = vmatpush1.msra.mxu0 %v1438
    %1610 = vmatprep.subr.mxu0 0.0
    %1611 = vmatpush1.msra.mxu0 %v1437
    %1612 = vmatprep.subr.mxu0 0.0
    %1613 = vmatpush1.msra.mxu0 %v1436
    %1614 = vmatprep.subr.mxu0 0.0
    %1615 = vmatpush2.msra.mxu0 0.0
    %1616 = vmatprep.subr.mxu0 0.0
    %1617 = vmatpush2.msra.mxu0 0.0
    %1618 = vmatprep.subr.mxu0 0.0
    %1619 = vmatpush2.msra.mxu0 0.0
    %1620 = vmatprep.subr.mxu0 0.0
    %1621 = vmatpush2.msra.mxu0 0.0
    %1622 = vmatprep.subr.mxu0 0.0
    %1623 = vmatpush2.msra.mxu0 0.0
    %1624 = vmatprep.subr.mxu0 0.0
    %1625 = vmatpush2.msra.mxu0 0.0
    %1626 = vmatprep.subr.mxu0 0.0
    %1627 = vmatpush2.msra.mxu0 0.0
    %1628 = vmatprep.subr.mxu0 0.0
    %1629 = vmatpush2.msra.mxu0 0.0
    %1630 = vmatprep.subr.mxu0 0.0
    %1631 = vmatpush2.msra.mxu0 0.0
    %1632 = vmatprep.subr.mxu0 0.0
    %1633 = vmatpush2.msra.mxu0 0.0
    %1634 = vmatprep.subr.mxu0 0.0
    %1635 = vmatpush2.msra.mxu0 0.0
    %1636 = vmatprep.subr.mxu0 0.0
    %1637 = vmatpush2.msra.mxu0 0.0
    %1638 = vmatprep.subr.mxu0 0.0
    %1639 = vmatpush2.msra.mxu0 0.0
    %1640 = vmatprep.subr.mxu0 0.0
    %1641 = vmatpush2.msra.mxu0 0.0
    %1642 = vmatprep.subr.mxu0 0.0
    %1643 = vmatpush2.msra.mxu0 0.0
    %1644 = vmatprep.subr.mxu0 0.0
    %1645 = vmatpush2.msra.mxu0 0.0
    %1646 = vmatprep.mubr.f32.mxu0 0.0
    %1647 = vmatmul.mubr.f32.gmra.mxu0 %v1580
    %v1648 = vpop.f32.mrf.mxu0
    %v1649 = vadd.f32 0.0, %v1648
    %v1650 = vpop.f32.mrf.mxu0
    %1651 = vdwg.mxu0
    %v1653 = vrot.slane %v1649, 7
    %v1656 = vadd.f32 %v1428, %v1653
    %v1657 = vadd.f32 %v1433, %v1649
    %v1658 = vxor.u32 %v1656, 2147483648
    %v1659 = vxor.u32 %v1657, 2147483648
    %v1660 = vmul.f32 %v1658, 1.442695
    %v1661 = vpow.pop %v1660
    %v1662 = vmul.f32 %v1659, 1.442695
    %v1663 = vpow.pop %v1662
    %v1664 = vadd.f32 %v1661, 1.0
    %v1665 = vadd.f32 %v1663, 1.0
    %v1666 = vrcp.pop %v1664
    %v1667 = vmul.f32 1.0, %v1666
    %v1668 = vrcp.pop %v1665
    %v1669 = vmul.f32 1.0, %v1668
    %v1670 = vtanh.pop %v1656
    %v1671 = vtanh.pop %v1657
    %v1674 = vrot.slane %v1560, 7
    %v1675 = vrot.slane %v1561, 7
    %v1678 = vmul.f32 %v1667, %v1674
    %v1679 = vmul.f32 %v1669, %v1675
    %1682 = vrot.lane.b32.xlu0 %v1670, 64
    %v1683 = vpop.permute.xlu0 %1682
    %1684 = vrot.lane.b32.xlu0 %v1671, 64
    %v1685 = vpop.permute.xlu0 %1684
    %v1688 = vmul.f32 %v1667, %v1683
    %v1689 = vmul.f32 %v1669, %v1685
    %1692 = vrot.lane.b32.xlu0 %v1688, 32
    %v1693 = vpop.permute.xlu0 %1692
    %1694 = vrot.lane.b32.xlu0 %v1689, 32
    %v1695 = vpop.permute.xlu0 %1694
    %v1698 = vadd.f32 %v1678, %v1693
    %v1699 = vadd.f32 %v1679, %v1695
    %v1700 = vtanh.pop %v1698
    %v1701 = vtanh.pop %v1699
    %1704 = vrot.lane.b32.xlu0 %v1700, 64
    %v1705 = vpop.permute.xlu0 %1704
    %1706 = vrot.lane.b32.xlu0 %v1701, 64
    %v1707 = vpop.permute.xlu0 %1706
    %v1710 = vmul.f32 %v1667, %v1705
    %v1711 = vmul.f32 %v1669, %v1707
    %v1714 = vrot.slane %v1710, 1
    %v1715 = vsel %vm79, %v1711, %v1714
    %1716 = vrot.lane.b32.xlu0 %v1715, 32
    %v1717 = vpop.permute.xlu0 %1716
    %v1718 = vsel %vm172, %v1717, 0
    %1720 = vmatprep.subr.mxu0 0.0
    %1721 = vmatpush1.msra.mxu0 0.0
    %1722 = vmatprep.subr.mxu0 0.0
    %1723 = vmatpush1.msra.mxu0 0.0
    %1724 = vmatprep.subr.mxu0 0.0
    %1725 = vmatpush1.msra.mxu0 0.0
    %1726 = vmatprep.subr.mxu0 0.0
    %1727 = vmatpush1.msra.mxu0 0.0
    %1728 = vmatprep.subr.mxu0 0.0
    %1729 = vmatpush1.msra.mxu0 0.0
    %1730 = vmatprep.subr.mxu0 0.0
    %1731 = vmatpush1.msra.mxu0 0.0
    %1732 = vmatprep.subr.mxu0 0.0
    %1733 = vmatpush1.msra.mxu0 0.0
    %1734 = vmatprep.subr.mxu0 0.0
    %1735 = vmatpush1.msra.mxu0 0.0
    %1736 = vmatprep.subr.mxu0 0.0
    %1737 = vmatpush1.msra.mxu0 0.0
    %1738 = vmatprep.subr.mxu0 0.0
    %1739 = vmatpush1.msra.mxu0 0.0
    %1740 = vmatprep.subr.mxu0 0.0
    %1741 = vmatpush1.msra.mxu0 0.0
    %1742 = vmatprep.subr.mxu0 0.0
    %1743 = vmatpush1.msra.mxu0 0.0
    %1744 = vmatprep.subr.mxu0 0.0
    %1745 = vmatpush1.msra.mxu0 %v1439
    %1746 = vmatprep.subr.mxu0 0.0
    %1747 = vmatpush1.msra.mxu0 %v1438
    %1748 = vmatprep.subr.mxu0 0.0
    %1749 = vmatpush1.msra.mxu0 %v1437
    %1750 = vmatprep.subr.mxu0 0.0
    %1751 = vmatpush1.msra.mxu0 %v1436
    %1752 = vmatprep.subr.mxu0 0.0
    %1753 = vmatpush2.msra.mxu0 0.0
    %1754 = vmatprep.subr.mxu0 0.0
    %1755 = vmatpush2.msra.mxu0 0.0
    %1756 = vmatprep.subr.mxu0 0.0
    %1757 = vmatpush2.msra.mxu0 0.0
    %1758 = vmatprep.subr.mxu0 0.0
    %1759 = vmatpush2.msra.mxu0 0.0
    %1760 = vmatprep.subr.mxu0 0.0
    %1761 = vmatpush2.msra.mxu0 0.0
    %1762 = vmatprep.subr.mxu0 0.0
    %1763 = vmatpush2.msra.mxu0 0.0
    %1764 = vmatprep.subr.mxu0 0.0
    %1765 = vmatpush2.msra.mxu0 0.0
    %1766 = vmatprep.subr.mxu0 0.0
    %1767 = vmatpush2.msra.mxu0 0.0
    %1768 = vmatprep.subr.mxu0 0.0
    %1769 = vmatpush2.msra.mxu0 0.0
    %1770 = vmatprep.subr.mxu0 0.0
    %1771 = vmatpush2.msra.mxu0 0.0
    %1772 = vmatprep.subr.mxu0 0.0
    %1773 = vmatpush2.msra.mxu0 0.0
    %1774 = vmatprep.subr.mxu0 0.0
    %1775 = vmatpush2.msra.mxu0 0.0
    %1776 = vmatprep.subr.mxu0 0.0
    %1777 = vmatpush2.msra.mxu0 0.0
    %1778 = vmatprep.subr.mxu0 0.0
    %1779 = vmatpush2.msra.mxu0 0.0
    %1780 = vmatprep.subr.mxu0 0.0
    %1781 = vmatpush2.msra.mxu0 0.0
    %1782 = vmatprep.subr.mxu0 0.0
    %1783 = vmatpush2.msra.mxu0 0.0
    %1784 = vmatprep.mubr.f32.mxu0 0.0
    %1785 = vmatmul.mubr.f32.gmra.mxu0 %v1718
    %v1786 = vpop.f32.mrf.mxu0
    %v1787 = vadd.f32 0.0, %v1786
    %v1788 = vpop.f32.mrf.mxu0
    %1789 = vdwg.mxu0
    %v1791 = vrot.slane %v1787, 6
    %v1792 = vrot.slane %v1787, 7
    %v1795 = vadd.f32 %v1428, %v1791
    %v1796 = vadd.f32 %v1433, %v1792
    %v1797 = vxor.u32 %v1795, 2147483648
    %v1798 = vxor.u32 %v1796, 2147483648
    %v1799 = vmul.f32 %v1797, 1.442695
    %v1800 = vpow.pop %v1799
    %v1801 = vmul.f32 %v1798, 1.442695
    %v1802 = vpow.pop %v1801
    %v1803 = vadd.f32 %v1800, 1.0
    %v1804 = vadd.f32 %v1802, 1.0
    %v1805 = vrcp.pop %v1803
    %v1806 = vmul.f32 1.0, %v1805
    %v1807 = vrcp.pop %v1804
    %v1808 = vmul.f32 1.0, %v1807
    %v1809 = vtanh.pop %v1795
    %v1810 = vtanh.pop %v1796
    %v1813 = vrot.slane %v1698, 7
    %v1814 = vrot.slane %v1699, 7
    %v1817 = vmul.f32 %v1806, %v1813
    %v1818 = vmul.f32 %v1808, %v1814
    %1821 = vrot.lane.b32.xlu0 %v1809, 64
    %v1822 = vpop.permute.xlu0 %1821
    %1823 = vrot.lane.b32.xlu0 %v1810, 64
    %v1824 = vpop.permute.xlu0 %1823
    %v1827 = vmul.f32 %v1806, %v1822
    %v1828 = vmul.f32 %v1808, %v1824
    %1831 = vrot.lane.b32.xlu0 %v1827, 32
    %v1832 = vpop.permute.xlu0 %1831
    %1833 = vrot.lane.b32.xlu0 %v1828, 32
    %v1834 = vpop.permute.xlu0 %1833
    %v1837 = vadd.f32 %v1817, %v1832
    %v1838 = vadd.f32 %v1818, %v1834
    %v1839 = vtanh.pop %v1837
    %v1840 = vtanh.pop %v1838
    %1843 = vrot.lane.b32.xlu0 %v1839, 64
    %v1844 = vpop.permute.xlu0 %1843
    %1845 = vrot.lane.b32.xlu0 %v1840, 64
    %v1846 = vpop.permute.xlu0 %1845
    %v1849 = vmul.f32 %v1806, %v1844
    %v1850 = vmul.f32 %v1808, %v1846
    %v1853 = vrot.slane %v1849, 2
    %v1854 = vrot.slane %v1850, 1
    %v1855 = vsel %vm79, %v1854, %v1853
    %1856 = vrot.lane.b32.xlu0 %v1855, 32
    %v1857 = vpop.permute.xlu0 %1856
    %v1858 = vsel %vm172, %v1857, 0
    %1860 = vmatprep.subr.mxu0 0.0
    %1861 = vmatpush1.msra.mxu0 0.0
    %1862 = vmatprep.subr.mxu0 0.0
    %1863 = vmatpush1.msra.mxu0 0.0
    %1864 = vmatprep.subr.mxu0 0.0
    %1865 = vmatpush1.msra.mxu0 0.0
    %1866 = vmatprep.subr.mxu0 0.0
    %1867 = vmatpush1.msra.mxu0 0.0
    %1868 = vmatprep.subr.mxu0 0.0
    %1869 = vmatpush1.msra.mxu0 0.0
    %1870 = vmatprep.subr.mxu0 0.0
    %1871 = vmatpush1.msra.mxu0 0.0
    %1872 = vmatprep.subr.mxu0 0.0
    %1873 = vmatpush1.msra.mxu0 0.0
    %1874 = vmatprep.subr.mxu0 0.0
    %1875 = vmatpush1.msra.mxu0 0.0
    %1876 = vmatprep.subr.mxu0 0.0
    %1877 = vmatpush1.msra.mxu0 0.0
    %1878 = vmatprep.subr.mxu0 0.0
    %1879 = vmatpush1.msra.mxu0 0.0
    %1880 = vmatprep.subr.mxu0 0.0
    %1881 = vmatpush1.msra.mxu0 0.0
    %1882 = vmatprep.subr.mxu0 0.0
    %1883 = vmatpush1.msra.mxu0 0.0
    %1884 = vmatprep.subr.mxu0 0.0
    %1885 = vmatpush1.msra.mxu0 %v1439
    %1886 = vmatprep.subr.mxu0 0.0
    %1887 = vmatpush1.msra.mxu0 %v1438
    %1888 = vmatprep.subr.mxu0 0.0
    %1889 = vmatpush1.msra.mxu0 %v1437
    %1890 = vmatprep.subr.mxu0 0.0
    %1891 = vmatpush1.msra.mxu0 %v1436
    %1892 = vmatprep.subr.mxu0 0.0
    %1893 = vmatpush2.msra.mxu0 0.0
    %1894 = vmatprep.subr.mxu0 0.0
    %1895 = vmatpush2.msra.mxu0 0.0
    %1896 = vmatprep.subr.mxu0 0.0
    %1897 = vmatpush2.msra.mxu0 0.0
    %1898 = vmatprep.subr.mxu0 0.0
    %1899 = vmatpush2.msra.mxu0 0.0
    %1900 = vmatprep.subr.mxu0 0.0
    %1901 = vmatpush2.msra.mxu0 0.0
    %1902 = vmatprep.subr.mxu0 0.0
    %1903 = vmatpush2.msra.mxu0 0.0
    %1904 = vmatprep.subr.mxu0 0.0
    %1905 = vmatpush2.msra.mxu0 0.0
    %1906 = vmatprep.subr.mxu0 0.0
    %1907 = vmatpush2.msra.mxu0 0.0
    %1908 = vmatprep.subr.mxu0 0.0
    %1909 = vmatpush2.msra.mxu0 0.0
    %1910 = vmatprep.subr.mxu0 0.0
    %1911 = vmatpush2.msra.mxu0 0.0
    %1912 = vmatprep.subr.mxu0 0.0
    %1913 = vmatpush2.msra.mxu0 0.0
    %1914 = vmatprep.subr.mxu0 0.0
    %1915 = vmatpush2.msra.mxu0 0.0
    %1916 = vmatprep.subr.mxu0 0.0
    %1917 = vmatpush2.msra.mxu0 0.0
    %1918 = vmatprep.subr.mxu0 0.0
    %1919 = vmatpush2.msra.mxu0 0.0
    %1920 = vmatprep.subr.mxu0 0.0
    %1921 = vmatpush2.msra.mxu0 0.0
    %1922 = vmatprep.subr.mxu0 0.0
    %1923 = vmatpush2.msra.mxu0 0.0
    %1924 = vmatprep.mubr.f32.mxu0 0.0
    %1925 = vmatmul.mubr.f32.gmra.mxu0 %v1858
    %v1926 = vpop.f32.mrf.mxu0
    %v1927 = vadd.f32 0.0, %v1926
    %v1928 = vpop.f32.mrf.mxu0
    %1929 = vdwg.mxu0
    %v1931 = vrot.slane %v1927, 5
    %v1932 = vrot.slane %v1927, 6
    %v1935 = vadd.f32 %v1428, %v1931
    %v1936 = vadd.f32 %v1433, %v1932
    %v1937 = vxor.u32 %v1935, 2147483648
    %v1938 = vxor.u32 %v1936, 2147483648
    %v1939 = vmul.f32 %v1937, 1.442695
    %v1940 = vpow.pop %v1939
    %v1941 = vmul.f32 %v1938, 1.442695
    %v1942 = vpow.pop %v1941
    %v1943 = vadd.f32 %v1940, 1.0
    %v1944 = vadd.f32 %v1942, 1.0
    %v1945 = vrcp.pop %v1943
    %v1946 = vmul.f32 1.0, %v1945
    %v1947 = vrcp.pop %v1944
    %v1948 = vmul.f32 1.0, %v1947
    %v1949 = vtanh.pop %v1935
    %v1950 = vtanh.pop %v1936
    %v1953 = vrot.slane %v1837, 7
    %v1954 = vrot.slane %v1838, 7
    %v1957 = vmul.f32 %v1946, %v1953
    %v1958 = vmul.f32 %v1948, %v1954
    %1961 = vrot.lane.b32.xlu0 %v1949, 64
    %v1962 = vpop.permute.xlu0 %1961
    %1963 = vrot.lane.b32.xlu0 %v1950, 64
    %v1964 = vpop.permute.xlu0 %1963
    %v1967 = vmul.f32 %v1946, %v1962
    %v1968 = vmul.f32 %v1948, %v1964
    %1971 = vrot.lane.b32.xlu0 %v1967, 32
    %v1972 = vpop.permute.xlu0 %1971
    %1973 = vrot.lane.b32.xlu0 %v1968, 32
    %v1974 = vpop.permute.xlu0 %1973
    %v1977 = vadd.f32 %v1957, %v1972
    %v1978 = vadd.f32 %v1958, %v1974
    %v1979 = vtanh.pop %v1977
    %v1980 = vtanh.pop %v1978
    %1983 = vrot.lane.b32.xlu0 %v1979, 64
    %v1984 = vpop.permute.xlu0 %1983
    %1985 = vrot.lane.b32.xlu0 %v1980, 64
    %v1986 = vpop.permute.xlu0 %1985
    %v1989 = vmul.f32 %v1946, %v1984
    %v1990 = vmul.f32 %v1948, %v1986
    %v1993 = vrot.slane %v1989, 3
    %v1994 = vrot.slane %v1990, 2
    %v1995 = vsel %vm79, %v1994, %v1993
    %1996 = vrot.lane.b32.xlu0 %v1995, 32
    %v1997 = vpop.permute.xlu0 %1996
    %v1998 = vsel %vm172, %v1997, 0
    %2000 = vmatprep.subr.mxu0 0.0
    %2001 = vmatpush1.msra.mxu0 0.0
    %2002 = vmatprep.subr.mxu0 0.0
    %2003 = vmatpush1.msra.mxu0 0.0
    %2004 = vmatprep.subr.mxu0 0.0
    %2005 = vmatpush1.msra.mxu0 0.0
    %2006 = vmatprep.subr.mxu0 0.0
    %2007 = vmatpush1.msra.mxu0 0.0
    %2008 = vmatprep.subr.mxu0 0.0
    %2009 = vmatpush1.msra.mxu0 0.0
    %2010 = vmatprep.subr.mxu0 0.0
    %2011 = vmatpush1.msra.mxu0 0.0
    %2012 = vmatprep.subr.mxu0 0.0
    %2013 = vmatpush1.msra.mxu0 0.0
    %2014 = vmatprep.subr.mxu0 0.0
    %2015 = vmatpush1.msra.mxu0 0.0
    %2016 = vmatprep.subr.mxu0 0.0
    %2017 = vmatpush1.msra.mxu0 0.0
    %2018 = vmatprep.subr.mxu0 0.0
    %2019 = vmatpush1.msra.mxu0 0.0
    %2020 = vmatprep.subr.mxu0 0.0
    %2021 = vmatpush1.msra.mxu0 0.0
    %2022 = vmatprep.subr.mxu0 0.0
    %2023 = vmatpush1.msra.mxu0 0.0
    %2024 = vmatprep.subr.mxu0 0.0
    %2025 = vmatpush1.msra.mxu0 %v1439
    %2026 = vmatprep.subr.mxu0 0.0
    %2027 = vmatpush1.msra.mxu0 %v1438
    %2028 = vmatprep.subr.mxu0 0.0
    %2029 = vmatpush1.msra.mxu0 %v1437
    %2030 = vmatprep.subr.mxu0 0.0
    %2031 = vmatpush1.msra.mxu0 %v1436
    %2032 = vmatprep.subr.mxu0 0.0
    %2033 = vmatpush2.msra.mxu0 0.0
    %2034 = vmatprep.subr.mxu0 0.0
    %2035 = vmatpush2.msra.mxu0 0.0
    %2036 = vmatprep.subr.mxu0 0.0
    %2037 = vmatpush2.msra.mxu0 0.0
    %2038 = vmatprep.subr.mxu0 0.0
    %2039 = vmatpush2.msra.mxu0 0.0
    %2040 = vmatprep.subr.mxu0 0.0
    %2041 = vmatpush2.msra.mxu0 0.0
    %2042 = vmatprep.subr.mxu0 0.0
    %2043 = vmatpush2.msra.mxu0 0.0
    %2044 = vmatprep.subr.mxu0 0.0
    %2045 = vmatpush2.msra.mxu0 0.0
    %2046 = vmatprep.subr.mxu0 0.0
    %2047 = vmatpush2.msra.mxu0 0.0
    %2048 = vmatprep.subr.mxu0 0.0
    %2049 = vmatpush2.msra.mxu0 0.0
    %2050 = vmatprep.subr.mxu0 0.0
    %2051 = vmatpush2.msra.mxu0 0.0
    %2052 = vmatprep.subr.mxu0 0.0
    %2053 = vmatpush2.msra.mxu0 0.0
    %2054 = vmatprep.subr.mxu0 0.0
    %2055 = vmatpush2.msra.mxu0 0.0
    %2056 = vmatprep.subr.mxu0 0.0
    %2057 = vmatpush2.msra.mxu0 0.0
    %2058 = vmatprep.subr.mxu0 0.0
    %2059 = vmatpush2.msra.mxu0 0.0
    %2060 = vmatprep.subr.mxu0 0.0
    %2061 = vmatpush2.msra.mxu0 0.0
    %2062 = vmatprep.subr.mxu0 0.0
    %2063 = vmatpush2.msra.mxu0 0.0
    %2064 = vmatprep.mubr.f32.mxu0 0.0
    %2065 = vmatmul.mubr.f32.gmra.mxu0 %v1998
    %v2066 = vpop.f32.mrf.mxu0
    %v2067 = vadd.f32 0.0, %v2066
    %v2068 = vpop.f32.mrf.mxu0
    %2069 = vdwg.mxu0
    %v2071 = vrot.slane %v2067, 4
    %v2072 = vrot.slane %v2067, 5
    %v2075 = vadd.f32 %v1428, %v2071
    %v2076 = vadd.f32 %v1433, %v2072
    %v2077 = vxor.u32 %v2075, 2147483648
    %v2078 = vxor.u32 %v2076, 2147483648
    %v2079 = vmul.f32 %v2077, 1.442695
    %v2080 = vpow.pop %v2079
    %v2081 = vmul.f32 %v2078, 1.442695
    %v2082 = vpow.pop %v2081
    %v2083 = vadd.f32 %v2080, 1.0
    %v2084 = vadd.f32 %v2082, 1.0
    %v2085 = vrcp.pop %v2083
    %v2086 = vmul.f32 1.0, %v2085
    %v2087 = vrcp.pop %v2084
    %v2088 = vmul.f32 1.0, %v2087
    %v2089 = vtanh.pop %v2075
    %v2090 = vtanh.pop %v2076
    %v2093 = vrot.slane %v1977, 7
    %v2094 = vrot.slane %v1978, 7
    %v2097 = vmul.f32 %v2086, %v2093
    %v2098 = vmul.f32 %v2088, %v2094
    %2101 = vrot.lane.b32.xlu0 %v2089, 64
    %v2102 = vpop.permute.xlu0 %2101
    %2103 = vrot.lane.b32.xlu0 %v2090, 64
    %v2104 = vpop.permute.xlu0 %2103
    %v2107 = vmul.f32 %v2086, %v2102
    %v2108 = vmul.f32 %v2088, %v2104
    %2111 = vrot.lane.b32.xlu0 %v2107, 32
    %v2112 = vpop.permute.xlu0 %2111
    %2113 = vrot.lane.b32.xlu0 %v2108, 32
    %v2114 = vpop.permute.xlu0 %2113
    %v2117 = vadd.f32 %v2097, %v2112
    %v2118 = vadd.f32 %v2098, %v2114
    %v2119 = vtanh.pop %v2117
    %v2120 = vtanh.pop %v2118
    %2123 = vrot.lane.b32.xlu0 %v2119, 64
    %v2124 = vpop.permute.xlu0 %2123
    %2125 = vrot.lane.b32.xlu0 %v2120, 64
    %v2126 = vpop.permute.xlu0 %2125
    %v2129 = vmul.f32 %v2086, %v2124
    %v2130 = vmul.f32 %v2088, %v2126
    %v2133 = vrot.slane %v2129, 4
    %v2134 = vrot.slane %v2130, 3
    %v2135 = vsel %vm79, %v2134, %v2133
    %2136 = vrot.lane.b32.xlu0 %v2135, 32
    %v2137 = vpop.permute.xlu0 %2136
    %v2138 = vsel %vm172, %v2137, 0
    %2140 = vmatprep.subr.mxu0 0.0
    %2141 = vmatpush1.msra.mxu0 0.0
    %2142 = vmatprep.subr.mxu0 0.0
    %2143 = vmatpush1.msra.mxu0 0.0
    %2144 = vmatprep.subr.mxu0 0.0
    %2145 = vmatpush1.msra.mxu0 0.0
    %2146 = vmatprep.subr.mxu0 0.0
    %2147 = vmatpush1.msra.mxu0 0.0
    %2148 = vmatprep.subr.mxu0 0.0
    %2149 = vmatpush1.msra.mxu0 0.0
    %2150 = vmatprep.subr.mxu0 0.0
    %2151 = vmatpush1.msra.mxu0 0.0
    %2152 = vmatprep.subr.mxu0 0.0
    %2153 = vmatpush1.msra.mxu0 0.0
    %2154 = vmatprep.subr.mxu0 0.0
    %2155 = vmatpush1.msra.mxu0 0.0
    %2156 = vmatprep.subr.mxu0 0.0
    %2157 = vmatpush1.msra.mxu0 0.0
    %2158 = vmatprep.subr.mxu0 0.0
    %2159 = vmatpush1.msra.mxu0 0.0
    %2160 = vmatprep.subr.mxu0 0.0
    %2161 = vmatpush1.msra.mxu0 0.0
    %2162 = vmatprep.subr.mxu0 0.0
    %2163 = vmatpush1.msra.mxu0 0.0
    %2164 = vmatprep.subr.mxu0 0.0
    %2165 = vmatpush1.msra.mxu0 %v1439
    %2166 = vmatprep.subr.mxu0 0.0
    %2167 = vmatpush1.msra.mxu0 %v1438
    %2168 = vmatprep.subr.mxu0 0.0
    %2169 = vmatpush1.msra.mxu0 %v1437
    %2170 = vmatprep.subr.mxu0 0.0
    %2171 = vmatpush1.msra.mxu0 %v1436
    %2172 = vmatprep.subr.mxu0 0.0
    %2173 = vmatpush2.msra.mxu0 0.0
    %2174 = vmatprep.subr.mxu0 0.0
    %2175 = vmatpush2.msra.mxu0 0.0
    %2176 = vmatprep.subr.mxu0 0.0
    %2177 = vmatpush2.msra.mxu0 0.0
    %2178 = vmatprep.subr.mxu0 0.0
    %2179 = vmatpush2.msra.mxu0 0.0
    %2180 = vmatprep.subr.mxu0 0.0
    %2181 = vmatpush2.msra.mxu0 0.0
    %2182 = vmatprep.subr.mxu0 0.0
    %2183 = vmatpush2.msra.mxu0 0.0
    %2184 = vmatprep.subr.mxu0 0.0
    %2185 = vmatpush2.msra.mxu0 0.0
    %2186 = vmatprep.subr.mxu0 0.0
    %2187 = vmatpush2.msra.mxu0 0.0
    %2188 = vmatprep.subr.mxu0 0.0
    %2189 = vmatpush2.msra.mxu0 0.0
    %2190 = vmatprep.subr.mxu0 0.0
    %2191 = vmatpush2.msra.mxu0 0.0
    %2192 = vmatprep.subr.mxu0 0.0
    %2193 = vmatpush2.msra.mxu0 0.0
    %2194 = vmatprep.subr.mxu0 0.0
    %2195 = vmatpush2.msra.mxu0 0.0
    %2196 = vmatprep.subr.mxu0 0.0
    %2197 = vmatpush2.msra.mxu0 0.0
    %2198 = vmatprep.subr.mxu0 0.0
    %2199 = vmatpush2.msra.mxu0 0.0
    %2200 = vmatprep.subr.mxu0 0.0
    %2201 = vmatpush2.msra.mxu0 0.0
    %2202 = vmatprep.subr.mxu0 0.0
    %2203 = vmatpush2.msra.mxu0 0.0
    %2204 = vmatprep.mubr.f32.mxu0 0.0
    %2205 = vmatmul.mubr.f32.gmra.mxu0 %v2138
    %v2206 = vpop.f32.mrf.mxu0
    %v2207 = vadd.f32 0.0, %v2206
    %v2208 = vpop.f32.mrf.mxu0
    %2209 = vdwg.mxu0
    %v2211 = vrot.slane %v2207, 3
    %v2212 = vrot.slane %v2207, 4
    %v2215 = vadd.f32 %v1428, %v2211
    %v2216 = vadd.f32 %v1433, %v2212
    %v2217 = vxor.u32 %v2215, 2147483648
    %v2218 = vxor.u32 %v2216, 2147483648
    %v2219 = vmul.f32 %v2217, 1.442695
    %v2220 = vpow.pop %v2219
    %v2221 = vmul.f32 %v2218, 1.442695
    %v2222 = vpow.pop %v2221
    %v2223 = vadd.f32 %v2220, 1.0
    %v2224 = vadd.f32 %v2222, 1.0
    %v2225 = vrcp.pop %v2223
    %v2226 = vmul.f32 1.0, %v2225
    %v2227 = vrcp.pop %v2224
    %v2228 = vmul.f32 1.0, %v2227
    %v2229 = vtanh.pop %v2215
    %v2230 = vtanh.pop %v2216
    %v2233 = vrot.slane %v2117, 7
    %v2234 = vrot.slane %v2118, 7
    %v2237 = vmul.f32 %v2226, %v2233
    %v2238 = vmul.f32 %v2228, %v2234
    %2241 = vrot.lane.b32.xlu0 %v2229, 64
    %v2242 = vpop.permute.xlu0 %2241
    %2243 = vrot.lane.b32.xlu0 %v2230, 64
    %v2244 = vpop.permute.xlu0 %2243
    %v2247 = vmul.f32 %v2226, %v2242
    %v2248 = vmul.f32 %v2228, %v2244
    %2251 = vrot.lane.b32.xlu0 %v2247, 32
    %v2252 = vpop.permute.xlu0 %2251
    %2253 = vrot.lane.b32.xlu0 %v2248, 32
    %v2254 = vpop.permute.xlu0 %2253
    %v2257 = vadd.f32 %v2237, %v2252
    %v2258 = vadd.f32 %v2238, %v2254
    %v2259 = vtanh.pop %v2257
    %v2260 = vtanh.pop %v2258
    %2263 = vrot.lane.b32.xlu0 %v2259, 64
    %v2264 = vpop.permute.xlu0 %2263
    %2265 = vrot.lane.b32.xlu0 %v2260, 64
    %v2266 = vpop.permute.xlu0 %2265
    %v2269 = vmul.f32 %v2226, %v2264
    %v2270 = vmul.f32 %v2228, %v2266
    %v2273 = vrot.slane %v2269, 5
    %v2274 = vrot.slane %v2270, 4
    %v2275 = vsel %vm79, %v2274, %v2273
    %2276 = vrot.lane.b32.xlu0 %v2275, 32
    %v2277 = vpop.permute.xlu0 %2276
    %v2278 = vsel %vm172, %v2277, 0
    %2280 = vmatprep.subr.mxu0 0.0
    %2281 = vmatpush1.msra.mxu0 0.0
    %2282 = vmatprep.subr.mxu0 0.0
    %2283 = vmatpush1.msra.mxu0 0.0
    %2284 = vmatprep.subr.mxu0 0.0
    %2285 = vmatpush1.msra.mxu0 0.0
    %2286 = vmatprep.subr.mxu0 0.0
    %2287 = vmatpush1.msra.mxu0 0.0
    %2288 = vmatprep.subr.mxu0 0.0
    %2289 = vmatpush1.msra.mxu0 0.0
    %2290 = vmatprep.subr.mxu0 0.0
    %2291 = vmatpush1.msra.mxu0 0.0
    %2292 = vmatprep.subr.mxu0 0.0
    %2293 = vmatpush1.msra.mxu0 0.0
    %2294 = vmatprep.subr.mxu0 0.0
    %2295 = vmatpush1.msra.mxu0 0.0
    %2296 = vmatprep.subr.mxu0 0.0
    %2297 = vmatpush1.msra.mxu0 0.0
    %2298 = vmatprep.subr.mxu0 0.0
    %2299 = vmatpush1.msra.mxu0 0.0
    %2300 = vmatprep.subr.mxu0 0.0
    %2301 = vmatpush1.msra.mxu0 0.0
    %2302 = vmatprep.subr.mxu0 0.0
    %2303 = vmatpush1.msra.mxu0 0.0
    %2304 = vmatprep.subr.mxu0 0.0
    %2305 = vmatpush1.msra.mxu0 %v1439
    %2306 = vmatprep.subr.mxu0 0.0
    %2307 = vmatpush1.msra.mxu0 %v1438
    %2308 = vmatprep.subr.mxu0 0.0
    %2309 = vmatpush1.msra.mxu0 %v1437
    %2310 = vmatprep.subr.mxu0 0.0
    %2311 = vmatpush1.msra.mxu0 %v1436
    %2312 = vmatprep.subr.mxu0 0.0
    %2313 = vmatpush2.msra.mxu0 0.0
    %2314 = vmatprep.subr.mxu0 0.0
    %2315 = vmatpush2.msra.mxu0 0.0
    %2316 = vmatprep.subr.mxu0 0.0
    %2317 = vmatpush2.msra.mxu0 0.0
    %2318 = vmatprep.subr.mxu0 0.0
    %2319 = vmatpush2.msra.mxu0 0.0
    %2320 = vmatprep.subr.mxu0 0.0
    %2321 = vmatpush2.msra.mxu0 0.0
    %2322 = vmatprep.subr.mxu0 0.0
    %2323 = vmatpush2.msra.mxu0 0.0
    %2324 = vmatprep.subr.mxu0 0.0
    %2325 = vmatpush2.msra.mxu0 0.0
    %2326 = vmatprep.subr.mxu0 0.0
    %2327 = vmatpush2.msra.mxu0 0.0
    %2328 = vmatprep.subr.mxu0 0.0
    %2329 = vmatpush2.msra.mxu0 0.0
    %2330 = vmatprep.subr.mxu0 0.0
    %2331 = vmatpush2.msra.mxu0 0.0
    %2332 = vmatprep.subr.mxu0 0.0
    %2333 = vmatpush2.msra.mxu0 0.0
    %2334 = vmatprep.subr.mxu0 0.0
    %2335 = vmatpush2.msra.mxu0 0.0
    %2336 = vmatprep.subr.mxu0 0.0
    %2337 = vmatpush2.msra.mxu0 0.0
    %2338 = vmatprep.subr.mxu0 0.0
    %2339 = vmatpush2.msra.mxu0 0.0
    %2340 = vmatprep.subr.mxu0 0.0
    %2341 = vmatpush2.msra.mxu0 0.0
    %2342 = vmatprep.subr.mxu0 0.0
    %2343 = vmatpush2.msra.mxu0 0.0
    %2344 = vmatprep.mubr.f32.mxu0 0.0
    %2345 = vmatmul.mubr.f32.gmra.mxu0 %v2278
    %v2346 = vpop.f32.mrf.mxu0
    %v2347 = vadd.f32 0.0, %v2346
    %v2348 = vpop.f32.mrf.mxu0
    %2349 = vdwg.mxu0
    %v2351 = vrot.slane %v2347, 2
    %v2352 = vrot.slane %v2347, 3
    %v2355 = vadd.f32 %v1428, %v2351
    %v2356 = vadd.f32 %v1433, %v2352
    %v2357 = vxor.u32 %v2355, 2147483648
    %v2358 = vxor.u32 %v2356, 2147483648
    %v2359 = vmul.f32 %v2357, 1.442695
    %v2360 = vpow.pop %v2359
    %v2361 = vmul.f32 %v2358, 1.442695
    %v2362 = vpow.pop %v2361
    %v2363 = vadd.f32 %v2360, 1.0
    %v2364 = vadd.f32 %v2362, 1.0
    %v2365 = vrcp.pop %v2363
    %v2366 = vmul.f32 1.0, %v2365
    %v2367 = vrcp.pop %v2364
    %v2368 = vmul.f32 1.0, %v2367
    %v2369 = vtanh.pop %v2355
    %v2370 = vtanh.pop %v2356
    %v2373 = vrot.slane %v2257, 7
    %v2374 = vrot.slane %v2258, 7
    %v2377 = vmul.f32 %v2366, %v2373
    %v2378 = vmul.f32 %v2368, %v2374
    %2381 = vrot.lane.b32.xlu0 %v2369, 64
    %v2382 = vpop.permute.xlu0 %2381
    %2383 = vrot.lane.b32.xlu0 %v2370, 64
    %v2384 = vpop.permute.xlu0 %2383
    %v2387 = vmul.f32 %v2366, %v2382
    %v2388 = vmul.f32 %v2368, %v2384
    %2391 = vrot.lane.b32.xlu0 %v2387, 32
    %v2392 = vpop.permute.xlu0 %2391
    %2393 = vrot.lane.b32.xlu0 %v2388, 32
    %v2394 = vpop.permute.xlu0 %2393
    %v2397 = vadd.f32 %v2377, %v2392
    %v2398 = vadd.f32 %v2378, %v2394
    %v2399 = vtanh.pop %v2397
    %v2400 = vtanh.pop %v2398
    %2403 = vrot.lane.b32.xlu0 %v2399, 64
    %v2404 = vpop.permute.xlu0 %2403
    %2405 = vrot.lane.b32.xlu0 %v2400, 64
    %v2406 = vpop.permute.xlu0 %2405
    %v2409 = vmul.f32 %v2366, %v2404
    %v2410 = vmul.f32 %v2368, %v2406
    %v2413 = vrot.slane %v2409, 6
    %v2414 = vrot.slane %v2410, 5
    %v2415 = vsel %vm79, %v2414, %v2413
    %2416 = vrot.lane.b32.xlu0 %v2415, 32
    %v2417 = vpop.permute.xlu0 %2416
    %v2418 = vsel %vm172, %v2417, 0
    %2420 = vmatprep.subr.mxu0 0.0
    %2421 = vmatpush1.msra.mxu0 0.0
    %2422 = vmatprep.subr.mxu0 0.0
    %2423 = vmatpush1.msra.mxu0 0.0
    %2424 = vmatprep.subr.mxu0 0.0
    %2425 = vmatpush1.msra.mxu0 0.0
    %2426 = vmatprep.subr.mxu0 0.0
    %2427 = vmatpush1.msra.mxu0 0.0
    %2428 = vmatprep.subr.mxu0 0.0
    %2429 = vmatpush1.msra.mxu0 0.0
    %2430 = vmatprep.subr.mxu0 0.0
    %2431 = vmatpush1.msra.mxu0 0.0
    %2432 = vmatprep.subr.mxu0 0.0
    %2433 = vmatpush1.msra.mxu0 0.0
    %2434 = vmatprep.subr.mxu0 0.0
    %2435 = vmatpush1.msra.mxu0 0.0
    %2436 = vmatprep.subr.mxu0 0.0
    %2437 = vmatpush1.msra.mxu0 0.0
    %2438 = vmatprep.subr.mxu0 0.0
    %2439 = vmatpush1.msra.mxu0 0.0
    %2440 = vmatprep.subr.mxu0 0.0
    %2441 = vmatpush1.msra.mxu0 0.0
    %2442 = vmatprep.subr.mxu0 0.0
    %2443 = vmatpush1.msra.mxu0 0.0
    %2444 = vmatprep.subr.mxu0 0.0
    %2445 = vmatpush1.msra.mxu0 %v1439
    %2446 = vmatprep.subr.mxu0 0.0
    %2447 = vmatpush1.msra.mxu0 %v1438
    %2448 = vmatprep.subr.mxu0 0.0
    %2449 = vmatpush1.msra.mxu0 %v1437
    %2450 = vmatprep.subr.mxu0 0.0
    %2451 = vmatpush1.msra.mxu0 %v1436
    %2452 = vmatprep.subr.mxu0 0.0
    %2453 = vmatpush2.msra.mxu0 0.0
    %2454 = vmatprep.subr.mxu0 0.0
    %2455 = vmatpush2.msra.mxu0 0.0
    %2456 = vmatprep.subr.mxu0 0.0
    %2457 = vmatpush2.msra.mxu0 0.0
    %2458 = vmatprep.subr.mxu0 0.0
    %2459 = vmatpush2.msra.mxu0 0.0
    %2460 = vmatprep.subr.mxu0 0.0
    %2461 = vmatpush2.msra.mxu0 0.0
    %2462 = vmatprep.subr.mxu0 0.0
    %2463 = vmatpush2.msra.mxu0 0.0
    %2464 = vmatprep.subr.mxu0 0.0
    %2465 = vmatpush2.msra.mxu0 0.0
    %2466 = vmatprep.subr.mxu0 0.0
    %2467 = vmatpush2.msra.mxu0 0.0
    %2468 = vmatprep.subr.mxu0 0.0
    %2469 = vmatpush2.msra.mxu0 0.0
    %2470 = vmatprep.subr.mxu0 0.0
    %2471 = vmatpush2.msra.mxu0 0.0
    %2472 = vmatprep.subr.mxu0 0.0
    %2473 = vmatpush2.msra.mxu0 0.0
    %2474 = vmatprep.subr.mxu0 0.0
    %2475 = vmatpush2.msra.mxu0 0.0
    %2476 = vmatprep.subr.mxu0 0.0
    %2477 = vmatpush2.msra.mxu0 0.0
    %2478 = vmatprep.subr.mxu0 0.0
    %2479 = vmatpush2.msra.mxu0 0.0
    %2480 = vmatprep.subr.mxu0 0.0
    %2481 = vmatpush2.msra.mxu0 0.0
    %2482 = vmatprep.subr.mxu0 0.0
    %2483 = vmatpush2.msra.mxu0 0.0
    %2484 = vmatprep.mubr.f32.mxu0 0.0
    %2485 = vmatmul.mubr.f32.gmra.mxu0 %v2418
    %v2486 = vpop.f32.mrf.mxu0
    %v2487 = vadd.f32 0.0, %v2486
    %v2488 = vpop.f32.mrf.mxu0
    %2489 = vdwg.mxu0
    %v2491 = vrot.slane %v2487, 1
    %v2492 = vrot.slane %v2487, 2
    %v2495 = vadd.f32 %v1428, %v2491
    %v2496 = vadd.f32 %v1433, %v2492
    %v2497 = vxor.u32 %v2495, 2147483648
    %v2498 = vxor.u32 %v2496, 2147483648
    %v2499 = vmul.f32 %v2497, 1.442695
    %v2500 = vpow.pop %v2499
    %v2501 = vmul.f32 %v2498, 1.442695
    %v2502 = vpow.pop %v2501
    %v2503 = vadd.f32 %v2500, 1.0
    %v2504 = vadd.f32 %v2502, 1.0
    %v2505 = vrcp.pop %v2503
    %v2506 = vmul.f32 1.0, %v2505
    %v2507 = vrcp.pop %v2504
    %v2508 = vmul.f32 1.0, %v2507
    %v2509 = vtanh.pop %v2495
    %v2510 = vtanh.pop %v2496
    %v2513 = vrot.slane %v2397, 7
    %v2514 = vrot.slane %v2398, 7
    %v2517 = vmul.f32 %v2506, %v2513
    %v2518 = vmul.f32 %v2508, %v2514
    %2521 = vrot.lane.b32.xlu0 %v2509, 64
    %v2522 = vpop.permute.xlu0 %2521
    %2523 = vrot.lane.b32.xlu0 %v2510, 64
    %v2524 = vpop.permute.xlu0 %2523
    %v2527 = vmul.f32 %v2506, %v2522
    %v2528 = vmul.f32 %v2508, %v2524
    %2531 = vrot.lane.b32.xlu0 %v2527, 32
    %v2532 = vpop.permute.xlu0 %2531
    %2533 = vrot.lane.b32.xlu0 %v2528, 32
    %v2534 = vpop.permute.xlu0 %2533
    %v2537 = vadd.f32 %v2517, %v2532
    %v2538 = vadd.f32 %v2518, %v2534
    %v2539 = vtanh.pop %v2537
    %v2540 = vtanh.pop %v2538
    %2543 = vrot.lane.b32.xlu0 %v2539, 64
    %v2544 = vpop.permute.xlu0 %2543
    %2545 = vrot.lane.b32.xlu0 %v2540, 64
    %v2546 = vpop.permute.xlu0 %2545
    %v2549 = vmul.f32 %v2506, %v2544
    %v2550 = vmul.f32 %v2508, %v2546
    %vm2551 = vcmask 1040384
    %v2552 = vsel %vm2551, %v1572, %v1710
    %v2553 = vsel %vm2551, %v1573, %v1711
    %v2554 = vsel %vm734, %v2552, %v1849
    %v2555 = vsel %vm734, %v2553, %v1850
    %vm2556 = vcmask 1042432
    %v2557 = vsel %vm2556, %v2554, %v1989
    %v2558 = vsel %vm2556, %v2555, %v1990
    %vm2559 = vcmask 1043456
    %v2560 = vsel %vm2559, %v2557, %v2129
    %v2561 = vsel %vm2559, %v2558, %v2130
    %vm2562 = vcmask 1044480
    %v2563 = vsel %vm2562, %v2560, %v2269
    %v2564 = vsel %vm2562, %v2561, %v2270
    %v2565 = vsel %vm89, %v2563, %v2409
    %v2566 = vsel %vm89, %v2564, %v2410
    %vm2567 = vcmask 1046528
    %v2568 = vsel %vm2567, %v2565, %v2549
    %v2569 = vsel %vm2567, %v2566, %v2550
    %v2570 = vld [vmem:[#allocation2 + $0x320] sm:$0xff]
    %v2571 = vld [vmem:[#allocation2 + $0x328] sm:$0xff]
    %v2572 = vld [vmem:[#allocation2 + $0x330] sm:$0xff]
    %v2573 = vld [vmem:[#allocation2 + $0x338] sm:$0xff]
    %v2574 = vld [vmem:[#allocation4 + $0xc] sm:$0x1]
    %v2575 = vlaneseq
    %v2576 = vshrl.u32 %v2575, 7
    %v2577 = vsub.s32 0, %v2576
    %v2578 = vrot.slane %v2574, %v2577
    %2581 = vrot.lane.b32.xlu0 %v2568, 32
    %v2582 = vpop.permute.xlu0 %2581
    %2583 = vrot.lane.b32.xlu0 %v2569, 32
    %v2584 = vpop.permute.xlu0 %2583
    %v2585 = vsel %vm172, %v2582, 0
    %v2587 = vsel %vm172, %v2584, 0
    %2589 = vmatprep.subr.mxu0 0.0
    %2590 = vmatpush1.msra.mxu0 0.0
    %2591 = vmatprep.subr.mxu0 0.0
    %2592 = vmatpush1.msra.mxu0 0.0
    %2593 = vmatprep.subr.mxu0 0.0
    %2594 = vmatpush1.msra.mxu0 0.0
    %2595 = vmatprep.subr.mxu0 0.0
    %2596 = vmatpush1.msra.mxu0 0.0
    %2597 = vmatprep.subr.mxu0 0.0
    %2598 = vmatpush1.msra.mxu0 0.0
    %2599 = vmatprep.subr.mxu0 0.0
    %2600 = vmatpush1.msra.mxu0 0.0
    %2601 = vmatprep.subr.mxu0 0.0
    %2602 = vmatpush1.msra.mxu0 0.0
    %2603 = vmatprep.subr.mxu0 0.0
    %2604 = vmatpush1.msra.mxu0 0.0
    %2605 = vmatprep.subr.mxu0 0.0
    %2606 = vmatpush1.msra.mxu0 0.0
    %2607 = vmatprep.subr.mxu0 0.0
    %2608 = vmatpush1.msra.mxu0 0.0
    %2609 = vmatprep.subr.mxu0 0.0
    %2610 = vmatpush1.msra.mxu0 0.0
    %2611 = vmatprep.subr.mxu0 0.0
    %2612 = vmatpush1.msra.mxu0 0.0
    %2613 = vmatprep.subr.mxu0 0.0
    %2614 = vmatpush1.msra.mxu0 %v2573
    %2615 = vmatprep.subr.mxu0 0.0
    %2616 = vmatpush1.msra.mxu0 %v2572
    %2617 = vmatprep.subr.mxu0 0.0
    %2618 = vmatpush1.msra.mxu0 %v2571
    %2619 = vmatprep.subr.mxu0 0.0
    %2620 = vmatpush1.msra.mxu0 %v2570
    %2621 = vmatprep.subr.mxu0 0.0
    %2622 = vmatpush2.msra.mxu0 0.0
    %2623 = vmatprep.subr.mxu0 0.0
    %2624 = vmatpush2.msra.mxu0 0.0
    %2625 = vmatprep.subr.mxu0 0.0
    %2626 = vmatpush2.msra.mxu0 0.0
    %2627 = vmatprep.subr.mxu0 0.0
    %2628 = vmatpush2.msra.mxu0 0.0
    %2629 = vmatprep.subr.mxu0 0.0
    %2630 = vmatpush2.msra.mxu0 0.0
    %2631 = vmatprep.subr.mxu0 0.0
    %2632 = vmatpush2.msra.mxu0 0.0
    %2633 = vmatprep.subr.mxu0 0.0
    %2634 = vmatpush2.msra.mxu0 0.0
    %2635 = vmatprep.subr.mxu0 0.0
    %2636 = vmatpush2.msra.mxu0 0.0
    %2637 = vmatprep.subr.mxu0 0.0
    %2638 = vmatpush2.msra.mxu0 0.0
    %2639 = vmatprep.subr.mxu0 0.0
    %2640 = vmatpush2.msra.mxu0 0.0
    %2641 = vmatprep.subr.mxu0 0.0
    %2642 = vmatpush2.msra.mxu0 0.0
    %2643 = vmatprep.subr.mxu0 0.0
    %2644 = vmatpush2.msra.mxu0 0.0
    %2645 = vmatprep.subr.mxu0 0.0
    %2646 = vmatpush2.msra.mxu0 0.0
    %2647 = vmatprep.subr.mxu0 0.0
    %2648 = vmatpush2.msra.mxu0 0.0
    %2649 = vmatprep.subr.mxu0 0.0
    %2650 = vmatpush2.msra.mxu0 0.0
    %2651 = vmatprep.subr.mxu0 0.0
    %2652 = vmatpush2.msra.mxu0 0.0
    %2653 = vmatprep.mubr.f32.mxu0 0.0
    %2654 = vmatmul.mubr.f32.gmra.mxu0 %v2585
    %v2655 = vpop.f32.mrf.mxu0
    %v2656 = vadd.f32 %v2578, %v2655
    %v2657 = vpop.f32.mrf.mxu0
    %2658 = vmatprep.mubr.f32.mxu0 0.0
    %2659 = vmatmul.mubr.f32.gmra.mxu0 %v2587
    %v2660 = vpop.f32.mrf.mxu0
    %v2661 = vadd.f32 %v2578, %v2660
    %v2662 = vpop.f32.mrf.mxu0
    %2663 = vdwg.mxu0
    %vm2664 = vcmp.gt.f32.partialorder %v2656, 0.0
    %vm2665 = vcmp.gt.f32.partialorder %v2661, 0.0
    %v2666 = vmin.f32 %v2656, 0.0
    %v2667 = vmin.f32 %v2661, 0.0
    %v2668 = vmul.f32 %v2666, 1.442695
    %v2669 = vpow.pop %v2668
    %v2670 = vmul.f32 %v2667, 1.442695
    %v2671 = vpow.pop %v2670
    %v2672 = vsub.f32 %v2669, 1.0
    %v2673 = vsub.f32 %v2671, 1.0
    %v2674 = vsel %vm2664, %v2656, %v2672
    %v2675 = vsel %vm2665, %v2661, %v2673
    %v2676 = vld [vmem:[#allocation2 + $0x340] sm:$0xff]
    %v2677 = vld [vmem:[#allocation2 + $0x348] sm:$0xff]
    %v2678 = vld [vmem:[#allocation2 + $0x350] sm:$0xff]
    %v2679 = vld [vmem:[#allocation2 + $0x358] sm:$0xff]
    %v2680 = vld [vmem:[#allocation4 + $0xd] sm:$0x1]
    %v2681 = vlaneseq
    %v2682 = vshrl.u32 %v2681, 7
    %v2683 = vsub.s32 0, %v2682
    %v2684 = vrot.slane %v2680, %v2683
    %v2686 = vsel %vm172, %v2674, 0
    %v2689 = vsel %vm172, %v2675, 0
    %2691 = vmatprep.subr.mxu0 0.0
    %2692 = vmatpush1.msra.mxu0 0.0
    %2693 = vmatprep.subr.mxu0 0.0
    %2694 = vmatpush1.msra.mxu0 0.0
    %2695 = vmatprep.subr.mxu0 0.0
    %2696 = vmatpush1.msra.mxu0 0.0
    %2697 = vmatprep.subr.mxu0 0.0
    %2698 = vmatpush1.msra.mxu0 0.0
    %2699 = vmatprep.subr.mxu0 0.0
    %2700 = vmatpush1.msra.mxu0 0.0
    %2701 = vmatprep.subr.mxu0 0.0
    %2702 = vmatpush1.msra.mxu0 0.0
    %2703 = vmatprep.subr.mxu0 0.0
    %2704 = vmatpush1.msra.mxu0 0.0
    %2705 = vmatprep.subr.mxu0 0.0
    %2706 = vmatpush1.msra.mxu0 0.0
    %2707 = vmatprep.subr.mxu0 0.0
    %2708 = vmatpush1.msra.mxu0 0.0
    %2709 = vmatprep.subr.mxu0 0.0
    %2710 = vmatpush1.msra.mxu0 0.0
    %2711 = vmatprep.subr.mxu0 0.0
    %2712 = vmatpush1.msra.mxu0 0.0
    %2713 = vmatprep.subr.mxu0 0.0
    %2714 = vmatpush1.msra.mxu0 0.0
    %2715 = vmatprep.subr.mxu0 0.0
    %2716 = vmatpush1.msra.mxu0 %v2679
    %2717 = vmatprep.subr.mxu0 0.0
    %2718 = vmatpush1.msra.mxu0 %v2678
    %2719 = vmatprep.subr.mxu0 0.0
    %2720 = vmatpush1.msra.mxu0 %v2677
    %2721 = vmatprep.subr.mxu0 0.0
    %2722 = vmatpush1.msra.mxu0 %v2676
    %2723 = vmatprep.subr.mxu0 0.0
    %2724 = vmatpush2.msra.mxu0 0.0
    %2725 = vmatprep.subr.mxu0 0.0
    %2726 = vmatpush2.msra.mxu0 0.0
    %2727 = vmatprep.subr.mxu0 0.0
    %2728 = vmatpush2.msra.mxu0 0.0
    %2729 = vmatprep.subr.mxu0 0.0
    %2730 = vmatpush2.msra.mxu0 0.0
    %2731 = vmatprep.subr.mxu0 0.0
    %2732 = vmatpush2.msra.mxu0 0.0
    %2733 = vmatprep.subr.mxu0 0.0
    %2734 = vmatpush2.msra.mxu0 0.0
    %2735 = vmatprep.subr.mxu0 0.0
    %2736 = vmatpush2.msra.mxu0 0.0
    %2737 = vmatprep.subr.mxu0 0.0
    %2738 = vmatpush2.msra.mxu0 0.0
    %2739 = vmatprep.subr.mxu0 0.0
    %2740 = vmatpush2.msra.mxu0 0.0
    %2741 = vmatprep.subr.mxu0 0.0
    %2742 = vmatpush2.msra.mxu0 0.0
    %2743 = vmatprep.subr.mxu0 0.0
    %2744 = vmatpush2.msra.mxu0 0.0
    %2745 = vmatprep.subr.mxu0 0.0
    %2746 = vmatpush2.msra.mxu0 0.0
    %2747 = vmatprep.subr.mxu0 0.0
    %2748 = vmatpush2.msra.mxu0 0.0
    %2749 = vmatprep.subr.mxu0 0.0
    %2750 = vmatpush2.msra.mxu0 0.0
    %2751 = vmatprep.subr.mxu0 0.0
    %2752 = vmatpush2.msra.mxu0 0.0
    %2753 = vmatprep.subr.mxu0 0.0
    %2754 = vmatpush2.msra.mxu0 0.0
    %2755 = vmatprep.mubr.f32.mxu0 0.0
    %2756 = vmatmul.mubr.f32.gmra.mxu0 %v2686
    %v2757 = vpop.f32.mrf.mxu0
    %v2758 = vadd.f32 %v2684, %v2757
    %v2759 = vpop.f32.mrf.mxu0
    %2760 = vmatprep.mubr.f32.mxu0 0.0
    %2761 = vmatmul.mubr.f32.gmra.mxu0 %v2689
    %v2762 = vpop.f32.mrf.mxu0
    %v2763 = vadd.f32 %v2684, %v2762
    %v2764 = vpop.f32.mrf.mxu0
    %2765 = vdwg.mxu0
    %v2766 = vld [vmem:[#allocation2 + $0x360] sm:$0xff]
    %v2767 = vld [vmem:[#allocation2 + $0x368] sm:$0xff]
    %v2768 = vld [vmem:[#allocation2 + $0x370] sm:$0xff]
    %v2769 = vld [vmem:[#allocation2 + $0x378] sm:$0xff]
    %v2770 = vld [vmem:[#allocation4 + $0xe] sm:$0x1]
    %v2771 = vlaneseq
    %v2772 = vshrl.u32 %v2771, 7
    %v2773 = vsub.s32 0, %v2772
    %v2774 = vrot.slane %v2770, %v2773
    %2775 = vmatprep.subr.mxu0 0.0
    %2776 = vmatpush1.msra.mxu0 0.0
    %2777 = vmatprep.subr.mxu0 0.0
    %2778 = vmatpush1.msra.mxu0 0.0
    %2779 = vmatprep.subr.mxu0 0.0
    %2780 = vmatpush1.msra.mxu0 0.0
    %2781 = vmatprep.subr.mxu0 0.0
    %2782 = vmatpush1.msra.mxu0 0.0
    %2783 = vmatprep.subr.mxu0 0.0
    %2784 = vmatpush1.msra.mxu0 0.0
    %2785 = vmatprep.subr.mxu0 0.0
    %2786 = vmatpush1.msra.mxu0 0.0
    %2787 = vmatprep.subr.mxu0 0.0
    %2788 = vmatpush1.msra.mxu0 0.0
    %2789 = vmatprep.subr.mxu0 0.0
    %2790 = vmatpush1.msra.mxu0 0.0
    %2791 = vmatprep.subr.mxu0 0.0
    %2792 = vmatpush1.msra.mxu0 0.0
    %2793 = vmatprep.subr.mxu0 0.0
    %2794 = vmatpush1.msra.mxu0 0.0
    %2795 = vmatprep.subr.mxu0 0.0
    %2796 = vmatpush1.msra.mxu0 0.0
    %2797 = vmatprep.subr.mxu0 0.0
    %2798 = vmatpush1.msra.mxu0 0.0
    %2799 = vmatprep.subr.mxu0 0.0
    %2800 = vmatpush1.msra.mxu0 %v2769
    %2801 = vmatprep.subr.mxu0 0.0
    %2802 = vmatpush1.msra.mxu0 %v2768
    %2803 = vmatprep.subr.mxu0 0.0
    %2804 = vmatpush1.msra.mxu0 %v2767
    %2805 = vmatprep.subr.mxu0 0.0
    %2806 = vmatpush1.msra.mxu0 %v2766
    %2807 = vmatprep.subr.mxu0 0.0
    %2808 = vmatpush2.msra.mxu0 0.0
    %2809 = vmatprep.subr.mxu0 0.0
    %2810 = vmatpush2.msra.mxu0 0.0
    %2811 = vmatprep.subr.mxu0 0.0
    %2812 = vmatpush2.msra.mxu0 0.0
    %2813 = vmatprep.subr.mxu0 0.0
    %2814 = vmatpush2.msra.mxu0 0.0
    %2815 = vmatprep.subr.mxu0 0.0
    %2816 = vmatpush2.msra.mxu0 0.0
    %2817 = vmatprep.subr.mxu0 0.0
    %2818 = vmatpush2.msra.mxu0 0.0
    %2819 = vmatprep.subr.mxu0 0.0
    %2820 = vmatpush2.msra.mxu0 0.0
    %2821 = vmatprep.subr.mxu0 0.0
    %2822 = vmatpush2.msra.mxu0 0.0
    %2823 = vmatprep.subr.mxu0 0.0
    %2824 = vmatpush2.msra.mxu0 0.0
    %2825 = vmatprep.subr.mxu0 0.0
    %2826 = vmatpush2.msra.mxu0 0.0
    %2827 = vmatprep.subr.mxu0 0.0
    %2828 = vmatpush2.msra.mxu0 0.0
    %2829 = vmatprep.subr.mxu0 0.0
    %2830 = vmatpush2.msra.mxu0 0.0
    %2831 = vmatprep.subr.mxu0 0.0
    %2832 = vmatpush2.msra.mxu0 0.0
    %2833 = vmatprep.subr.mxu0 0.0
    %2834 = vmatpush2.msra.mxu0 0.0
    %2835 = vmatprep.subr.mxu0 0.0
    %2836 = vmatpush2.msra.mxu0 0.0
    %2837 = vmatprep.subr.mxu0 0.0
    %2838 = vmatpush2.msra.mxu0 0.0
    %2839 = vmatprep.mubr.f32.mxu0 0.0
    %2840 = vmatmul.mubr.f32.gmra.mxu0 %v2686
    %v2841 = vpop.f32.mrf.mxu0
    %v2842 = vadd.f32 %v2774, %v2841
    %v2843 = vpop.f32.mrf.mxu0
    %2844 = vmatprep.mubr.f32.mxu0 0.0
    %2845 = vmatmul.mubr.f32.gmra.mxu0 %v2689
    %v2846 = vpop.f32.mrf.mxu0
    %v2847 = vadd.f32 %v2774, %v2846
    %v2848 = vpop.f32.mrf.mxu0
    %2849 = vdwg.mxu0
    %v2850 = vxor.u32 %v2842, 2147483648
    %v2851 = vxor.u32 %v2847, 2147483648
    %v2852 = vmul.f32 %v2850, 1.442695
    %v2853 = vpow.pop %v2852
    %v2854 = vmul.f32 %v2851, 1.442695
    %v2855 = vpow.pop %v2854
    %v2856 = vadd.f32 %v2853, 1.0
    %v2857 = vadd.f32 %v2855, 1.0
    %v2858 = vrcp.pop %v2856
    %v2859 = vmul.f32 1.0, %v2858
    %v2860 = vrcp.pop %v2857
    %v2861 = vmul.f32 1.0, %v2860
    %v2862 = vmul.f32 %v2758, %v2859
    %v2863 = vmul.f32 %v2763, %v2861
    %2866 = vrot.lane.b32.xlu0 %v2862, 96
    %v2867 = vpop.permute.xlu0 %2866
    %2868 = vrot.lane.b32.xlu0 %v2863, 96
    %v2869 = vpop.permute.xlu0 %2868
    %v2872 = vadd.f32 %v2568, %v2867
    %v2873 = vadd.f32 %v2569, %v2869
    %2876 = vrot.lane.b32.xlu0 %v2872, 32
    %v2877 = vpop.permute.xlu0 %2876
    %2878 = vrot.lane.b32.xlu0 %v2873, 32
    %v2879 = vpop.permute.xlu0 %2878
    %v2882 = vsel %vm172, %v2877, 0.0
    %2883 = vadd.xlane.f32.xlu0 %v2882
    %v2884 = vpop.xlane.xlu0 %2883
    %v2885 = vsel %vm172, %v2879, 0.0
    %2886 = vadd.xlane.f32.xlu0 %v2885
    %v2887 = vpop.xlane.xlu0 %2886
    %v2888 = vrcp.pop 32.0
    %v2889 = vmul.f32 %v2884, %v2888
    %v2890 = vmul.f32 %v2887, %v2888
    %v2891 = vsub.f32 %v2872, %v2889
    %v2892 = vsub.f32 %v2873, %v2890
    %v2893 = vmul.f32 %v2891, %v2891
    %v2894 = vmul.f32 %v2892, %v2892
    %2897 = vrot.lane.b32.xlu0 %v2893, 32
    %v2898 = vpop.permute.xlu0 %2897
    %2899 = vrot.lane.b32.xlu0 %v2894, 32
    %v2900 = vpop.permute.xlu0 %2899
    %v2903 = vsel %vm172, %v2898, 0.0
    %2904 = vadd.xlane.f32.xlu0 %v2903
    %v2905 = vpop.xlane.xlu0 %2904
    %v2906 = vsel %vm172, %v2900, 0.0
    %2907 = vadd.xlane.f32.xlu0 %v2906
    %v2908 = vpop.xlane.xlu0 %2907
    %v2909 = vmul.f32 %v2905, %v2888
    %v2910 = vmul.f32 %v2908, %v2888
    %v2911 = vadd.f32 %v2909, 1e-05
    %v2912 = vadd.f32 %v2910, 1e-05
    %v2913 = vrsqrt.pop %v2911
    %v2914 = vrsqrt.pop %v2912
    %v2915 = vmul.f32 %v2891, %v2913
    %v2916 = vmul.f32 %v2892, %v2914
    %v2917 = vld [vmem:[#allocation4 + $0xf] sm:$0x1]
    %v2918 = vlaneseq
    %v2919 = vshrl.u32 %v2918, 7
    %v2920 = vsub.s32 0, %v2919
    %v2921 = vrot.slane %v2917, %v2920
    %2923 = vrot.lane.b32.xlu0 %v2921, 96
    %v2924 = vpop.permute.xlu0 %2923
    %v2926 = vmul.f32 %v2915, %v2924
    %v2927 = vmul.f32 %v2916, %v2924
    %v2928 = vld [vmem:[#allocation4 + $0x10] sm:$0x1]
    %v2929 = vlaneseq
    %v2930 = vshrl.u32 %v2929, 7
    %v2931 = vsub.s32 0, %v2930
    %v2932 = vrot.slane %v2928, %v2931
    %2934 = vrot.lane.b32.xlu0 %v2932, 96
    %v2935 = vpop.permute.xlu0 %2934
    %v2937 = vadd.f32 %v2926, %v2935
    %v2938 = vadd.f32 %v2927, %v2935
    %2939 = vrot.lane.b32.xlu0 %v192, 96
    %v2940 = vpop.permute.xlu0 %2939
    %2941 = vrot.lane.b32.xlu0 %v193, 96
    %v2942 = vpop.permute.xlu0 %2941
    %v2945 = vadd.f32 %v2937, %v2940
    %v2946 = vadd.f32 %v2938, %v2942
    %v2947 = vld [vmem:[#allocation2 + $0x440] sm:$0xff]
    %v2948 = vld [vmem:[#allocation2 + $0x448] sm:$0xff]
    %v2949 = vld [vmem:[#allocation2 + $0x450] sm:$0xff]
    %v2950 = vld [vmem:[#allocation2 + $0x458] sm:$0xff]
    %v2951 = vsel %vm172, %v1345, 0
    %2953 = vmatprep.subr.mxu0 0.0
    %2954 = vmatpush1.msra.mxu0 0.0
    %2955 = vmatprep.subr.mxu0 0.0
    %2956 = vmatpush1.msra.mxu0 0.0
    %2957 = vmatprep.subr.mxu0 0.0
    %2958 = vmatpush1.msra.mxu0 0.0
    %2959 = vmatprep.subr.mxu0 0.0
    %2960 = vmatpush1.msra.mxu0 0.0
    %2961 = vmatprep.subr.mxu0 0.0
    %2962 = vmatpush1.msra.mxu0 0.0
    %2963 = vmatprep.subr.mxu0 0.0
    %2964 = vmatpush1.msra.mxu0 0.0
    %2965 = vmatprep.subr.mxu0 0.0
    %2966 = vmatpush1.msra.mxu0 0.0
    %2967 = vmatprep.subr.mxu0 0.0
    %2968 = vmatpush1.msra.mxu0 0.0
    %2969 = vmatprep.subr.mxu0 0.0
    %2970 = vmatpush1.msra.mxu0 0.0
    %2971 = vmatprep.subr.mxu0 0.0
    %2972 = vmatpush1.msra.mxu0 0.0
    %2973 = vmatprep.subr.mxu0 0.0
    %2974 = vmatpush1.msra.mxu0 0.0
    %2975 = vmatprep.subr.mxu0 0.0
    %2976 = vmatpush1.msra.mxu0 0.0
    %2977 = vmatprep.subr.mxu0 0.0
    %2978 = vmatpush1.msra.mxu0 %v2950
    %2979 = vmatprep.subr.mxu0 0.0
    %2980 = vmatpush1.msra.mxu0 %v2949
    %2981 = vmatprep.subr.mxu0 0.0
    %2982 = vmatpush1.msra.mxu0 %v2948
    %2983 = vmatprep.subr.mxu0 0.0
    %2984 = vmatpush1.msra.mxu0 %v2947
    %2985 = vmatprep.subr.mxu0 0.0
    %2986 = vmatpush2.msra.mxu0 0.0
    %2987 = vmatprep.subr.mxu0 0.0
    %2988 = vmatpush2.msra.mxu0 0.0
    %2989 = vmatprep.subr.mxu0 0.0
    %2990 = vmatpush2.msra.mxu0 0.0
    %2991 = vmatprep.subr.mxu0 0.0
    %2992 = vmatpush2.msra.mxu0 0.0
    %2993 = vmatprep.subr.mxu0 0.0
    %2994 = vmatpush2.msra.mxu0 0.0
    %2995 = vmatprep.subr.mxu0 0.0
    %2996 = vmatpush2.msra.mxu0 0.0
    %2997 = vmatprep.subr.mxu0 0.0
    %2998 = vmatpush2.msra.mxu0 0.0
    %2999 = vmatprep.subr.mxu0 0.0
    %3000 = vmatpush2.msra.mxu0 0.0
    %3001 = vmatprep.subr.mxu0 0.0
    %3002 = vmatpush2.msra.mxu0 0.0
    %3003 = vmatprep.subr.mxu0 0.0
    %3004 = vmatpush2.msra.mxu0 0.0
    %3005 = vmatprep.subr.mxu0 0.0
    %3006 = vmatpush2.msra.mxu0 0.0
    %3007 = vmatprep.subr.mxu0 0.0
    %3008 = vmatpush2.msra.mxu0 0.0
    %3009 = vmatprep.subr.mxu0 0.0
    %3010 = vmatpush2.msra.mxu0 0.0
    %3011 = vmatprep.subr.mxu0 0.0
    %3012 = vmatpush2.msra.mxu0 0.0
    %3013 = vmatprep.subr.mxu0 0.0
    %3014 = vmatpush2.msra.mxu0 0.0
    %3015 = vmatprep.subr.mxu0 0.0
    %3016 = vmatpush2.msra.mxu0 0.0
    %3017 = vmatprep.mubr.f32.mxu0 0.0
    %3018 = vmatmul.mubr.f32.gmra.mxu0 %v2951
    %v3019 = vpop.f32.mrf.mxu0
    %v3020 = vadd.f32 0.0, %v3019
    %v3021 = vpop.f32.mrf.mxu0
    %3022 = vdwg.mxu0
    %v3025 = vunpack.c.l.s4 1966171168
    %v3026 = vunpack.c.0.s8 %v3025
    %v3027 = vlaneseq
    %v3028 = vshrl.u32 %v3027, 7
    %v3029 = vsub.s32 %v3026, %v3028
    %v3030 = vrot.slane %v3020, %v3029
    %v3031 = vcombine.high %v3030, %v3030
    %v3033 = vunpack.c.l.s4 1966171168
    %v3034 = vunpack.c.0.s8 %v3033
    %v3035 = vlaneseq
    %v3036 = vshrl.u32 %v3035, 7
    %v3037 = vsub.s32 %v3034, %v3036
    %v3038 = vrot.slane %v3030, %v3037
    %v3040 = vunpack.c.l.s4 1966171168
    %v3041 = vunpack.c.0.s8 %v3040
    %v3042 = vlaneseq
    %v3043 = vshrl.u32 %v3042, 7
    %v3044 = vsub.s32 %v3041, %v3043
    %v3045 = vrot.slane %v3031, %v3044
    %v3046 = vlaneseq
    %v3047 = vshrl.u32 %v3046, 7
    %v3048 = vsub.s32 0, %v3047
    %v3049 = vrot.slane %v3038, %v3048
    %v3050 = vlaneseq
    %v3051 = vshrl.u32 %v3050, 7
    %v3052 = vsub.s32 0, %v3051
    %v3053 = vrot.slane %v3045, %v3052
    %v3056 = vld [vmem:[#allocation2 + $0x380] sm:$0xff]
    %v3057 = vld [vmem:[#allocation2 + $0x388] sm:$0xff]
    %v3058 = vld [vmem:[#allocation2 + $0x390] sm:$0xff]
    %v3059 = vld [vmem:[#allocation2 + $0x398] sm:$0xff]
    %v3060 = vld [vmem:[#allocation4 + $0x11] sm:$0x1]
    %v3061 = vlaneseq
    %v3062 = vshrl.u32 %v3061, 7
    %v3063 = vsub.s32 0, %v3062
    %v3064 = vrot.slane %v3060, %v3063
    %3067 = vrot.lane.b32.xlu0 %v2945, 32
    %v3068 = vpop.permute.xlu0 %3067
    %3069 = vrot.lane.b32.xlu0 %v2946, 32
    %v3070 = vpop.permute.xlu0 %3069
    %v3071 = vsel %vm172, %v3068, 0
    %v3073 = vsel %vm172, %v3070, 0
    %3075 = vmatprep.subr.mxu0 0.0
    %3076 = vmatpush1.msra.mxu0 0.0
    %3077 = vmatprep.subr.mxu0 0.0
    %3078 = vmatpush1.msra.mxu0 0.0
    %3079 = vmatprep.subr.mxu0 0.0
    %3080 = vmatpush1.msra.mxu0 0.0
    %3081 = vmatprep.subr.mxu0 0.0
    %3082 = vmatpush1.msra.mxu0 0.0
    %3083 = vmatprep.subr.mxu0 0.0
    %3084 = vmatpush1.msra.mxu0 0.0
    %3085 = vmatprep.subr.mxu0 0.0
    %3086 = vmatpush1.msra.mxu0 0.0
    %3087 = vmatprep.subr.mxu0 0.0
    %3088 = vmatpush1.msra.mxu0 0.0
    %3089 = vmatprep.subr.mxu0 0.0
    %3090 = vmatpush1.msra.mxu0 0.0
    %3091 = vmatprep.subr.mxu0 0.0
    %3092 = vmatpush1.msra.mxu0 0.0
    %3093 = vmatprep.subr.mxu0 0.0
    %3094 = vmatpush1.msra.mxu0 0.0
    %3095 = vmatprep.subr.mxu0 0.0
    %3096 = vmatpush1.msra.mxu0 0.0
    %3097 = vmatprep.subr.mxu0 0.0
    %3098 = vmatpush1.msra.mxu0 0.0
    %3099 = vmatprep.subr.mxu0 0.0
    %3100 = vmatpush1.msra.mxu0 %v3059
    %3101 = vmatprep.subr.mxu0 0.0
    %3102 = vmatpush1.msra.mxu0 %v3058
    %3103 = vmatprep.subr.mxu0 0.0
    %3104 = vmatpush1.msra.mxu0 %v3057
    %3105 = vmatprep.subr.mxu0 0.0
    %3106 = vmatpush1.msra.mxu0 %v3056
    %3107 = vmatprep.subr.mxu0 0.0
    %3108 = vmatpush2.msra.mxu0 0.0
    %3109 = vmatprep.subr.mxu0 0.0
    %3110 = vmatpush2.msra.mxu0 0.0
    %3111 = vmatprep.subr.mxu0 0.0
    %3112 = vmatpush2.msra.mxu0 0.0
    %3113 = vmatprep.subr.mxu0 0.0
    %3114 = vmatpush2.msra.mxu0 0.0
    %3115 = vmatprep.subr.mxu0 0.0
    %3116 = vmatpush2.msra.mxu0 0.0
    %3117 = vmatprep.subr.mxu0 0.0
    %3118 = vmatpush2.msra.mxu0 0.0
    %3119 = vmatprep.subr.mxu0 0.0
    %3120 = vmatpush2.msra.mxu0 0.0
    %3121 = vmatprep.subr.mxu0 0.0
    %3122 = vmatpush2.msra.mxu0 0.0
    %3123 = vmatprep.subr.mxu0 0.0
    %3124 = vmatpush2.msra.mxu0 0.0
    %3125 = vmatprep.subr.mxu0 0.0
    %3126 = vmatpush2.msra.mxu0 0.0
    %3127 = vmatprep.subr.mxu0 0.0
    %3128 = vmatpush2.msra.mxu0 0.0
    %3129 = vmatprep.subr.mxu0 0.0
    %3130 = vmatpush2.msra.mxu0 0.0
    %3131 = vmatprep.subr.mxu0 0.0
    %3132 = vmatpush2.msra.mxu0 0.0
    %3133 = vmatprep.subr.mxu0 0.0
    %3134 = vmatpush2.msra.mxu0 0.0
    %3135 = vmatprep.subr.mxu0 0.0
    %3136 = vmatpush2.msra.mxu0 0.0
    %3137 = vmatprep.subr.mxu0 0.0
    %3138 = vmatpush2.msra.mxu0 0.0
    %3139 = vmatprep.mubr.f32.mxu0 0.0
    %3140 = vmatmul.mubr.f32.gmra.mxu0 %v3071
    %v3141 = vpop.f32.mrf.mxu0
    %v3142 = vadd.f32 %v3064, %v3141
    %v3143 = vpop.f32.mrf.mxu0
    %3144 = vmatprep.mubr.f32.mxu0 0.0
    %3145 = vmatmul.mubr.f32.gmra.mxu0 %v3073
    %v3146 = vpop.f32.mrf.mxu0
    %v3147 = vadd.f32 %v3064, %v3146
    %v3148 = vpop.f32.mrf.mxu0
    %3149 = vdwg.mxu0
    %v3150 = vadd.f32 %v3142, %v3049
    %v3151 = vadd.f32 %v3147, %v3053
    %vm3152 = vcmp.gt.f32.partialorder %v3150, 0.0
    %vm3153 = vcmp.gt.f32.partialorder %v3151, 0.0
    %v3154 = vmin.f32 %v3150, 0.0
    %v3155 = vmin.f32 %v3151, 0.0
    %v3156 = vmul.f32 %v3154, 1.442695
    %v3157 = vpow.pop %v3156
    %v3158 = vmul.f32 %v3155, 1.442695
    %v3159 = vpow.pop %v3158
    %v3160 = vsub.f32 %v3157, 1.0
    %v3161 = vsub.f32 %v3159, 1.0
    %v3162 = vsel %vm3152, %v3150, %v3160
    %v3163 = vsel %vm3153, %v3151, %v3161
    %v3164 = vld [vmem:[#allocation2 + $0x3a0] sm:$0xff]
    %v3165 = vld [vmem:[#allocation2 + $0x3a8] sm:$0xff]
    %v3166 = vld [vmem:[#allocation2 + $0x3b0] sm:$0xff]
    %v3167 = vld [vmem:[#allocation2 + $0x3b8] sm:$0xff]
    %v3168 = vld [vmem:[#allocation4 + $0x12] sm:$0x1]
    %v3169 = vlaneseq
    %v3170 = vshrl.u32 %v3169, 7
    %v3171 = vsub.s32 0, %v3170
    %v3172 = vrot.slane %v3168, %v3171
    %v3174 = vsel %vm172, %v3162, 0
    %v3177 = vsel %vm172, %v3163, 0
    %3179 = vmatprep.subr.mxu0 0.0
    %3180 = vmatpush1.msra.mxu0 0.0
    %3181 = vmatprep.subr.mxu0 0.0
    %3182 = vmatpush1.msra.mxu0 0.0
    %3183 = vmatprep.subr.mxu0 0.0
    %3184 = vmatpush1.msra.mxu0 0.0
    %3185 = vmatprep.subr.mxu0 0.0
    %3186 = vmatpush1.msra.mxu0 0.0
    %3187 = vmatprep.subr.mxu0 0.0
    %3188 = vmatpush1.msra.mxu0 0.0
    %3189 = vmatprep.subr.mxu0 0.0
    %3190 = vmatpush1.msra.mxu0 0.0
    %3191 = vmatprep.subr.mxu0 0.0
    %3192 = vmatpush1.msra.mxu0 0.0
    %3193 = vmatprep.subr.mxu0 0.0
    %3194 = vmatpush1.msra.mxu0 0.0
    %3195 = vmatprep.subr.mxu0 0.0
    %3196 = vmatpush1.msra.mxu0 0.0
    %3197 = vmatprep.subr.mxu0 0.0
    %3198 = vmatpush1.msra.mxu0 0.0
    %3199 = vmatprep.subr.mxu0 0.0
    %3200 = vmatpush1.msra.mxu0 0.0
    %3201 = vmatprep.subr.mxu0 0.0
    %3202 = vmatpush1.msra.mxu0 0.0
    %3203 = vmatprep.subr.mxu0 0.0
    %3204 = vmatpush1.msra.mxu0 %v3167
    %3205 = vmatprep.subr.mxu0 0.0
    %3206 = vmatpush1.msra.mxu0 %v3166
    %3207 = vmatprep.subr.mxu0 0.0
    %3208 = vmatpush1.msra.mxu0 %v3165
    %3209 = vmatprep.subr.mxu0 0.0
    %3210 = vmatpush1.msra.mxu0 %v3164
    %3211 = vmatprep.subr.mxu0 0.0
    %3212 = vmatpush2.msra.mxu0 0.0
    %3213 = vmatprep.subr.mxu0 0.0
    %3214 = vmatpush2.msra.mxu0 0.0
    %3215 = vmatprep.subr.mxu0 0.0
    %3216 = vmatpush2.msra.mxu0 0.0
    %3217 = vmatprep.subr.mxu0 0.0
    %3218 = vmatpush2.msra.mxu0 0.0
    %3219 = vmatprep.subr.mxu0 0.0
    %3220 = vmatpush2.msra.mxu0 0.0
    %3221 = vmatprep.subr.mxu0 0.0
    %3222 = vmatpush2.msra.mxu0 0.0
    %3223 = vmatprep.subr.mxu0 0.0
    %3224 = vmatpush2.msra.mxu0 0.0
    %3225 = vmatprep.subr.mxu0 0.0
    %3226 = vmatpush2.msra.mxu0 0.0
    %3227 = vmatprep.subr.mxu0 0.0
    %3228 = vmatpush2.msra.mxu0 0.0
    %3229 = vmatprep.subr.mxu0 0.0
    %3230 = vmatpush2.msra.mxu0 0.0
    %3231 = vmatprep.subr.mxu0 0.0
    %3232 = vmatpush2.msra.mxu0 0.0
    %3233 = vmatprep.subr.mxu0 0.0
    %3234 = vmatpush2.msra.mxu0 0.0
    %3235 = vmatprep.subr.mxu0 0.0
    %3236 = vmatpush2.msra.mxu0 0.0
    %3237 = vmatprep.subr.mxu0 0.0
    %3238 = vmatpush2.msra.mxu0 0.0
    %3239 = vmatprep.subr.mxu0 0.0
    %3240 = vmatpush2.msra.mxu0 0.0
    %3241 = vmatprep.subr.mxu0 0.0
    %3242 = vmatpush2.msra.mxu0 0.0
    %3243 = vmatprep.mubr.f32.mxu0 0.0
    %3244 = vmatmul.mubr.f32.gmra.mxu0 %v3174
    %v3245 = vpop.f32.mrf.mxu0
    %v3246 = vadd.f32 %v3172, %v3245
    %v3247 = vpop.f32.mrf.mxu0
    %3248 = vmatprep.mubr.f32.mxu0 0.0
    %3249 = vmatmul.mubr.f32.gmra.mxu0 %v3177
    %v3250 = vpop.f32.mrf.mxu0
    %v3251 = vadd.f32 %v3172, %v3250
    %v3252 = vpop.f32.mrf.mxu0
    %3253 = vdwg.mxu0
    %v3254 = vld [vmem:[#allocation2 + $0x3c0] sm:$0xff]
    %v3255 = vld [vmem:[#allocation2 + $0x3c8] sm:$0xff]
    %v3256 = vld [vmem:[#allocation2 + $0x3d0] sm:$0xff]
    %v3257 = vld [vmem:[#allocation2 + $0x3d8] sm:$0xff]
    %v3258 = vld [vmem:[#allocation4 + $0x13] sm:$0x1]
    %v3259 = vlaneseq
    %v3260 = vshrl.u32 %v3259, 7
    %v3261 = vsub.s32 0, %v3260
    %v3262 = vrot.slane %v3258, %v3261
    %3263 = vmatprep.subr.mxu0 0.0
    %3264 = vmatpush1.msra.mxu0 0.0
    %3265 = vmatprep.subr.mxu0 0.0
    %3266 = vmatpush1.msra.mxu0 0.0
    %3267 = vmatprep.subr.mxu0 0.0
    %3268 = vmatpush1.msra.mxu0 0.0
    %3269 = vmatprep.subr.mxu0 0.0
    %3270 = vmatpush1.msra.mxu0 0.0
    %3271 = vmatprep.subr.mxu0 0.0
    %3272 = vmatpush1.msra.mxu0 0.0
    %3273 = vmatprep.subr.mxu0 0.0
    %3274 = vmatpush1.msra.mxu0 0.0
    %3275 = vmatprep.subr.mxu0 0.0
    %3276 = vmatpush1.msra.mxu0 0.0
    %3277 = vmatprep.subr.mxu0 0.0
    %3278 = vmatpush1.msra.mxu0 0.0
    %3279 = vmatprep.subr.mxu0 0.0
    %3280 = vmatpush1.msra.mxu0 0.0
    %3281 = vmatprep.subr.mxu0 0.0
    %3282 = vmatpush1.msra.mxu0 0.0
    %3283 = vmatprep.subr.mxu0 0.0
    %3284 = vmatpush1.msra.mxu0 0.0
    %3285 = vmatprep.subr.mxu0 0.0
    %3286 = vmatpush1.msra.mxu0 0.0
    %3287 = vmatprep.subr.mxu0 0.0
    %3288 = vmatpush1.msra.mxu0 %v3257
    %3289 = vmatprep.subr.mxu0 0.0
    %3290 = vmatpush1.msra.mxu0 %v3256
    %3291 = vmatprep.subr.mxu0 0.0
    %3292 = vmatpush1.msra.mxu0 %v3255
    %3293 = vmatprep.subr.mxu0 0.0
    %3294 = vmatpush1.msra.mxu0 %v3254
    %3295 = vmatprep.subr.mxu0 0.0
    %3296 = vmatpush2.msra.mxu0 0.0
    %3297 = vmatprep.subr.mxu0 0.0
    %3298 = vmatpush2.msra.mxu0 0.0
    %3299 = vmatprep.subr.mxu0 0.0
    %3300 = vmatpush2.msra.mxu0 0.0
    %3301 = vmatprep.subr.mxu0 0.0
    %3302 = vmatpush2.msra.mxu0 0.0
    %3303 = vmatprep.subr.mxu0 0.0
    %3304 = vmatpush2.msra.mxu0 0.0
    %3305 = vmatprep.subr.mxu0 0.0
    %3306 = vmatpush2.msra.mxu0 0.0
    %3307 = vmatprep.subr.mxu0 0.0
    %3308 = vmatpush2.msra.mxu0 0.0
    %3309 = vmatprep.subr.mxu0 0.0
    %3310 = vmatpush2.msra.mxu0 0.0
    %3311 = vmatprep.subr.mxu0 0.0
    %3312 = vmatpush2.msra.mxu0 0.0
    %3313 = vmatprep.subr.mxu0 0.0
    %3314 = vmatpush2.msra.mxu0 0.0
    %3315 = vmatprep.subr.mxu0 0.0
    %3316 = vmatpush2.msra.mxu0 0.0
    %3317 = vmatprep.subr.mxu0 0.0
    %3318 = vmatpush2.msra.mxu0 0.0
    %3319 = vmatprep.subr.mxu0 0.0
    %3320 = vmatpush2.msra.mxu0 0.0
    %3321 = vmatprep.subr.mxu0 0.0
    %3322 = vmatpush2.msra.mxu0 0.0
    %3323 = vmatprep.subr.mxu0 0.0
    %3324 = vmatpush2.msra.mxu0 0.0
    %3325 = vmatprep.subr.mxu0 0.0
    %3326 = vmatpush2.msra.mxu0 0.0
    %3327 = vmatprep.mubr.f32.mxu0 0.0
    %3328 = vmatmul.mubr.f32.gmra.mxu0 %v3174
    %v3329 = vpop.f32.mrf.mxu0
    %v3330 = vadd.f32 %v3262, %v3329
    %v3331 = vpop.f32.mrf.mxu0
    %3332 = vmatprep.mubr.f32.mxu0 0.0
    %3333 = vmatmul.mubr.f32.gmra.mxu0 %v3177
    %v3334 = vpop.f32.mrf.mxu0
    %v3335 = vadd.f32 %v3262, %v3334
    %v3336 = vpop.f32.mrf.mxu0
    %3337 = vdwg.mxu0
    %v3338 = vxor.u32 %v3330, 2147483648
    %v3339 = vxor.u32 %v3335, 2147483648
    %v3340 = vmul.f32 %v3338, 1.442695
    %v3341 = vpow.pop %v3340
    %v3342 = vmul.f32 %v3339, 1.442695
    %v3343 = vpow.pop %v3342
    %v3344 = vadd.f32 %v3341, 1.0
    %v3345 = vadd.f32 %v3343, 1.0
    %v3346 = vrcp.pop %v3344
    %v3347 = vmul.f32 1.0, %v3346
    %v3348 = vrcp.pop %v3345
    %v3349 = vmul.f32 1.0, %v3348
    %v3350 = vmul.f32 %v3246, %v3347
    %v3351 = vmul.f32 %v3251, %v3349
    %3354 = vrot.lane.b32.xlu0 %v3350, 96
    %v3355 = vpop.permute.xlu0 %3354
    %3356 = vrot.lane.b32.xlu0 %v3351, 96
    %v3357 = vpop.permute.xlu0 %3356
    %v3360 = vadd.f32 %v2945, %v3355
    %v3361 = vadd.f32 %v2946, %v3357
    %3364 = vrot.lane.b32.xlu0 %v3360, 32
    %v3365 = vpop.permute.xlu0 %3364
    %3366 = vrot.lane.b32.xlu0 %v3361, 32
    %v3367 = vpop.permute.xlu0 %3366
    %v3370 = vsel %vm172, %v3365, 0.0
    %3371 = vadd.xlane.f32.xlu0 %v3370
    %v3372 = vpop.xlane.xlu0 %3371
    %v3373 = vsel %vm172, %v3367, 0.0
    %3374 = vadd.xlane.f32.xlu0 %v3373
    %v3375 = vpop.xlane.xlu0 %3374
    %v3376 = vmul.f32 %v3372, %v2888
    %v3377 = vmul.f32 %v3375, %v2888
    %v3378 = vsub.f32 %v3360, %v3376
    %v3379 = vsub.f32 %v3361, %v3377
    %v3380 = vmul.f32 %v3378, %v3378
    %v3381 = vmul.f32 %v3379, %v3379
    %3384 = vrot.lane.b32.xlu0 %v3380, 32
    %v3385 = vpop.permute.xlu0 %3384
    %3386 = vrot.lane.b32.xlu0 %v3381, 32
    %v3387 = vpop.permute.xlu0 %3386
    %v3390 = vsel %vm172, %v3385, 0.0
    %3391 = vadd.xlane.f32.xlu0 %v3390
    %v3392 = vpop.xlane.xlu0 %3391
    %v3393 = vsel %vm172, %v3387, 0.0
    %3394 = vadd.xlane.f32.xlu0 %v3393
    %v3395 = vpop.xlane.xlu0 %3394
    %v3396 = vmul.f32 %v3392, %v2888
    %v3397 = vmul.f32 %v3395, %v2888
    %v3398 = vadd.f32 %v3396, 1e-05
    %v3399 = vadd.f32 %v3397, 1e-05
    %v3400 = vrsqrt.pop %v3398
    %v3401 = vrsqrt.pop %v3399
    %v3402 = vmul.f32 %v3378, %v3400
    %v3403 = vmul.f32 %v3379, %v3401
    %v3404 = vld [vmem:[#allocation4 + $0x14] sm:$0x1]
    %v3405 = vlaneseq
    %v3406 = vshrl.u32 %v3405, 7
    %v3407 = vsub.s32 0, %v3406
    %v3408 = vrot.slane %v3404, %v3407
    %3410 = vrot.lane.b32.xlu0 %v3408, 96
    %v3411 = vpop.permute.xlu0 %3410
    %v3413 = vmul.f32 %v3402, %v3411
    %v3414 = vmul.f32 %v3403, %v3411
    %v3415 = vld [vmem:[#allocation4 + $0x15] sm:$0x1]
    %v3416 = vlaneseq
    %v3417 = vshrl.u32 %v3416, 7
    %v3418 = vsub.s32 0, %v3417
    %v3419 = vrot.slane %v3415, %v3418
    %3421 = vrot.lane.b32.xlu0 %v3419, 96
    %v3422 = vpop.permute.xlu0 %3421
    %v3424 = vadd.f32 %v3413, %v3422
    %v3425 = vadd.f32 %v3414, %v3422
    %v3426 = vld [vmem:[#allocation2 + $0x460] sm:$0xff]
    %v3427 = vld [vmem:[#allocation2 + $0x468] sm:$0xff]
    %v3428 = vld [vmem:[#allocation2 + $0x470] sm:$0xff]
    %v3429 = vld [vmem:[#allocation2 + $0x478] sm:$0xff]
    %3432 = vrot.lane.b32.xlu0 %v3424, 32
    %v3433 = vpop.permute.xlu0 %3432
    %3434 = vrot.lane.b32.xlu0 %v3425, 32
    %v3435 = vpop.permute.xlu0 %3434
    %v3436 = vsel %vm172, %v3433, 0
    %v3438 = vsel %vm172, %v3435, 0
    %3440 = vmatprep.subr.mxu0 0.0
    %3441 = vmatpush1.msra.mxu0 0.0
    %3442 = vmatprep.subr.mxu0 0.0
    %3443 = vmatpush1.msra.mxu0 0.0
    %3444 = vmatprep.subr.mxu0 0.0
    %3445 = vmatpush1.msra.mxu0 0.0
    %3446 = vmatprep.subr.mxu0 0.0
    %3447 = vmatpush1.msra.mxu0 0.0
    %3448 = vmatprep.subr.mxu0 0.0
    %3449 = vmatpush1.msra.mxu0 0.0
    %3450 = vmatprep.subr.mxu0 0.0
    %3451 = vmatpush1.msra.mxu0 0.0
    %3452 = vmatprep.subr.mxu0 0.0
    %3453 = vmatpush1.msra.mxu0 0.0
    %3454 = vmatprep.subr.mxu0 0.0
    %3455 = vmatpush1.msra.mxu0 0.0
    %3456 = vmatprep.subr.mxu0 0.0
    %3457 = vmatpush1.msra.mxu0 0.0
    %3458 = vmatprep.subr.mxu0 0.0
    %3459 = vmatpush1.msra.mxu0 0.0
    %3460 = vmatprep.subr.mxu0 0.0
    %3461 = vmatpush1.msra.mxu0 0.0
    %3462 = vmatprep.subr.mxu0 0.0
    %3463 = vmatpush1.msra.mxu0 0.0
    %3464 = vmatprep.subr.mxu0 0.0
    %3465 = vmatpush1.msra.mxu0 %v3429
    %3466 = vmatprep.subr.mxu0 0.0
    %3467 = vmatpush1.msra.mxu0 %v3428
    %3468 = vmatprep.subr.mxu0 0.0
    %3469 = vmatpush1.msra.mxu0 %v3427
    %3470 = vmatprep.subr.mxu0 0.0
    %3471 = vmatpush1.msra.mxu0 %v3426
    %3472 = vmatprep.subr.mxu0 0.0
    %3473 = vmatpush2.msra.mxu0 0.0
    %3474 = vmatprep.subr.mxu0 0.0
    %3475 = vmatpush2.msra.mxu0 0.0
    %3476 = vmatprep.subr.mxu0 0.0
    %3477 = vmatpush2.msra.mxu0 0.0
    %3478 = vmatprep.subr.mxu0 0.0
    %3479 = vmatpush2.msra.mxu0 0.0
    %3480 = vmatprep.subr.mxu0 0.0
    %3481 = vmatpush2.msra.mxu0 0.0
    %3482 = vmatprep.subr.mxu0 0.0
    %3483 = vmatpush2.msra.mxu0 0.0
    %3484 = vmatprep.subr.mxu0 0.0
    %3485 = vmatpush2.msra.mxu0 0.0
    %3486 = vmatprep.subr.mxu0 0.0
    %3487 = vmatpush2.msra.mxu0 0.0
    %3488 = vmatprep.subr.mxu0 0.0
    %3489 = vmatpush2.msra.mxu0 0.0
    %3490 = vmatprep.subr.mxu0 0.0
    %3491 = vmatpush2.msra.mxu0 0.0
    %3492 = vmatprep.subr.mxu0 0.0
    %3493 = vmatpush2.msra.mxu0 0.0
    %3494 = vmatprep.subr.mxu0 0.0
    %3495 = vmatpush2.msra.mxu0 0.0
    %3496 = vmatprep.subr.mxu0 0.0
    %3497 = vmatpush2.msra.mxu0 0.0
    %3498 = vmatprep.subr.mxu0 0.0
    %3499 = vmatpush2.msra.mxu0 0.0
    %3500 = vmatprep.subr.mxu0 0.0
    %3501 = vmatpush2.msra.mxu0 0.0
    %3502 = vmatprep.subr.mxu0 0.0
    %3503 = vmatpush2.msra.mxu0 0.0
    %3504 = vmatprep.mubr.f32.mxu0 0.0
    %3505 = vmatmul.mubr.f32.gmra.mxu0 %v3436
    %v3506 = vpop.f32.mrf.mxu0
    %v3507 = vadd.f32 0.0, %v3506
    %v3508 = vpop.f32.mrf.mxu0
    %3509 = vmatprep.mubr.f32.mxu0 0.0
    %3510 = vmatmul.mubr.f32.gmra.mxu0 %v3438
    %v3511 = vpop.f32.mrf.mxu0
    %v3512 = vadd.f32 0.0, %v3511
    %v3513 = vpop.f32.mrf.mxu0
    %3514 = vdwg.mxu0
    %3516 = vrot.lane.b32.xlu0 %v3507, 96
    %v3517 = vpop.permute.xlu0 %3516
    %v3518 = vsel %vm172, %v3507, 0
    %v3520 = vsel %vm172, %v3517, 0
    %3522 = vmatprep.subr.mxu0 0.0
    %3523 = vmatpush1.xpose.msra.mxu0 0.0
    %3524 = vmatprep.subr.mxu0 0.0
    %3525 = vmatpush1.xpose.msra.mxu0 0.0
    %3526 = vmatprep.subr.mxu0 0.0
    %3527 = vmatpush1.xpose.msra.mxu0 0.0
    %3528 = vmatprep.subr.mxu0 0.0
    %3529 = vmatpush1.xpose.msra.mxu0 0.0
    %3530 = vmatprep.subr.mxu0 0.0
    %3531 = vmatpush1.xpose.msra.mxu0 0.0
    %3532 = vmatprep.subr.mxu0 0.0
    %3533 = vmatpush1.xpose.msra.mxu0 0.0
    %3534 = vmatprep.subr.mxu0 0.0
    %3535 = vmatpush1.xpose.msra.mxu0 0.0
    %3536 = vmatprep.subr.mxu0 0.0
    %3537 = vmatpush1.xpose.msra.mxu0 0.0
    %3538 = vmatprep.subr.mxu0 0.0
    %3539 = vmatpush1.xpose.msra.mxu0 0.0
    %3540 = vmatprep.subr.mxu0 0.0
    %3541 = vmatpush1.xpose.msra.mxu0 0.0
    %3542 = vmatprep.subr.mxu0 0.0
    %3543 = vmatpush1.xpose.msra.mxu0 0.0
    %3544 = vmatprep.subr.mxu0 0.0
    %3545 = vmatpush1.xpose.msra.mxu0 0.0
    %3546 = vmatprep.subr.mxu0 0.0
    %3547 = vmatpush1.xpose.msra.mxu0 0.0
    %3548 = vmatprep.subr.mxu0 0.0
    %3549 = vmatpush1.xpose.msra.mxu0 0.0
    %3550 = vmatprep.subr.mxu0 0.0
    %3551 = vmatpush1.xpose.msra.mxu0 0.0
    %3552 = vmatprep.subr.mxu0 0.0
    %3553 = vmatpush1.xpose.msra.mxu0 %v3520
    %3554 = vmatprep.subr.mxu0 0.0
    %3555 = vmatpush2.xpose.msra.mxu0 0.0
    %3556 = vmatprep.subr.mxu0 0.0
    %3557 = vmatpush2.xpose.msra.mxu0 0.0
    %3558 = vmatprep.subr.mxu0 0.0
    %3559 = vmatpush2.xpose.msra.mxu0 0.0
    %3560 = vmatprep.subr.mxu0 0.0
    %3561 = vmatpush2.xpose.msra.mxu0 0.0
    %3562 = vmatprep.subr.mxu0 0.0
    %3563 = vmatpush2.xpose.msra.mxu0 0.0
    %3564 = vmatprep.subr.mxu0 0.0
    %3565 = vmatpush2.xpose.msra.mxu0 0.0
    %3566 = vmatprep.subr.mxu0 0.0
    %3567 = vmatpush2.xpose.msra.mxu0 0.0
    %3568 = vmatprep.subr.mxu0 0.0
    %3569 = vmatpush2.xpose.msra.mxu0 0.0
    %3570 = vmatprep.subr.mxu0 0.0
    %3571 = vmatpush2.xpose.msra.mxu0 0.0
    %3572 = vmatprep.subr.mxu0 0.0
    %3573 = vmatpush2.xpose.msra.mxu0 0.0
    %3574 = vmatprep.subr.mxu0 0.0
    %3575 = vmatpush2.xpose.msra.mxu0 0.0
    %3576 = vmatprep.subr.mxu0 0.0
    %3577 = vmatpush2.xpose.msra.mxu0 0.0
    %3578 = vmatprep.subr.mxu0 0.0
    %3579 = vmatpush2.xpose.msra.mxu0 0.0
    %3580 = vmatprep.subr.mxu0 0.0
    %3581 = vmatpush2.xpose.msra.mxu0 0.0
    %3582 = vmatprep.subr.mxu0 0.0
    %3583 = vmatpush2.xpose.msra.mxu0 0.0
    %3584 = vmatprep.subr.mxu0 0.0
    %3585 = vmatpush2.xpose.msra.mxu0 0.0
    %3586 = vmatprep.mubr.f32.mxu0 0.0
    %3587 = vmatmul.mubr.f32.gmra.mxu0 %v3518
    %v3588 = vpop.f32.mrf.mxu0
    %v3589 = vadd.f32 0.0, %v3588
    %v3590 = vpop.f32.mrf.mxu0
    %3591 = vdwg.mxu0
    %3593 = vrot.lane.b32.xlu0 %v3512, 96
    %v3594 = vpop.permute.xlu0 %3593
    %v3595 = vsel %vm172, %v3512, 0
    %v3597 = vsel %vm172, %v3594, 0
    %3599 = vmatprep.subr.mxu0 0.0
    %3600 = vmatpush1.xpose.msra.mxu0 0.0
    %3601 = vmatprep.subr.mxu0 0.0
    %3602 = vmatpush1.xpose.msra.mxu0 0.0
    %3603 = vmatprep.subr.mxu0 0.0
    %3604 = vmatpush1.xpose.msra.mxu0 0.0
    %3605 = vmatprep.subr.mxu0 0.0
    %3606 = vmatpush1.xpose.msra.mxu0 0.0
    %3607 = vmatprep.subr.mxu0 0.0
    %3608 = vmatpush1.xpose.msra.mxu0 0.0
    %3609 = vmatprep.subr.mxu0 0.0
    %3610 = vmatpush1.xpose.msra.mxu0 0.0
    %3611 = vmatprep.subr.mxu0 0.0
    %3612 = vmatpush1.xpose.msra.mxu0 0.0
    %3613 = vmatprep.subr.mxu0 0.0
    %3614 = vmatpush1.xpose.msra.mxu0 0.0
    %3615 = vmatprep.subr.mxu0 0.0
    %3616 = vmatpush1.xpose.msra.mxu0 0.0
    %3617 = vmatprep.subr.mxu0 0.0
    %3618 = vmatpush1.xpose.msra.mxu0 0.0
    %3619 = vmatprep.subr.mxu0 0.0
    %3620 = vmatpush1.xpose.msra.mxu0 0.0
    %3621 = vmatprep.subr.mxu0 0.0
    %3622 = vmatpush1.xpose.msra.mxu0 0.0
    %3623 = vmatprep.subr.mxu0 0.0
    %3624 = vmatpush1.xpose.msra.mxu0 0.0
    %3625 = vmatprep.subr.mxu0 0.0
    %3626 = vmatpush1.xpose.msra.mxu0 0.0
    %3627 = vmatprep.subr.mxu0 0.0
    %3628 = vmatpush1.xpose.msra.mxu0 0.0
    %3629 = vmatprep.subr.mxu0 0.0
    %3630 = vmatpush1.xpose.msra.mxu0 %v3597
    %3631 = vmatprep.subr.mxu0 0.0
    %3632 = vmatpush2.xpose.msra.mxu0 0.0
    %3633 = vmatprep.subr.mxu0 0.0
    %3634 = vmatpush2.xpose.msra.mxu0 0.0
    %3635 = vmatprep.subr.mxu0 0.0
    %3636 = vmatpush2.xpose.msra.mxu0 0.0
    %3637 = vmatprep.subr.mxu0 0.0
    %3638 = vmatpush2.xpose.msra.mxu0 0.0
    %3639 = vmatprep.subr.mxu0 0.0
    %3640 = vmatpush2.xpose.msra.mxu0 0.0
    %3641 = vmatprep.subr.mxu0 0.0
    %3642 = vmatpush2.xpose.msra.mxu0 0.0
    %3643 = vmatprep.subr.mxu0 0.0
    %3644 = vmatpush2.xpose.msra.mxu0 0.0
    %3645 = vmatprep.subr.mxu0 0.0
    %3646 = vmatpush2.xpose.msra.mxu0 0.0
    %3647 = vmatprep.subr.mxu0 0.0
    %3648 = vmatpush2.xpose.msra.mxu0 0.0
    %3649 = vmatprep.subr.mxu0 0.0
    %3650 = vmatpush2.xpose.msra.mxu0 0.0
    %3651 = vmatprep.subr.mxu0 0.0
    %3652 = vmatpush2.xpose.msra.mxu0 0.0
    %3653 = vmatprep.subr.mxu0 0.0
    %3654 = vmatpush2.xpose.msra.mxu0 0.0
    %3655 = vmatprep.subr.mxu0 0.0
    %3656 = vmatpush2.xpose.msra.mxu0 0.0
    %3657 = vmatprep.subr.mxu0 0.0
    %3658 = vmatpush2.xpose.msra.mxu0 0.0
    %3659 = vmatprep.subr.mxu0 0.0
    %3660 = vmatpush2.xpose.msra.mxu0 0.0
    %3661 = vmatprep.subr.mxu0 0.0
    %3662 = vmatpush2.xpose.msra.mxu0 0.0
    %3663 = vmatprep.mubr.f32.mxu0 0.0
    %3664 = vmatmul.mubr.f32.gmra.mxu0 %v3595
    %v3665 = vpop.f32.mrf.mxu0
    %v3666 = vadd.f32 0.0, %v3665
    %v3667 = vpop.f32.mrf.mxu0
    %3668 = vdwg.mxu0
    %v3669 = vmul.f32 %v3589, 0.17677669
    %v3670 = vmul.f32 %v3666, 0.17677669
    %v3671 = vlaneseq
    %v3672 = vshrl.u32 %v3671, 7
    %vm3673 = vcmp.le.s32.totalorder %v71, %v3672
    %v3674 = vsel %vm3673, 1, 0
    %vm3675 = vcmp.eq.s32.totalorder %v3674, 1
    %v3676 = vsel %vm3675, %v3669, -1e+09
    %v3677 = vsel %vm3675, %v3670, -1e+09
    %vm3678 = vcmask 64512
    %v3679 = vsel %vm3678, %v3676, -inf
    %3680 = vmax.xlane.f32.xlu0 %v3679
    %v3681 = vpop.xlane.xlu0 %3680
    %v3682 = vsel %vm3678, %v3677, -inf
    %3683 = vmax.xlane.f32.xlu0 %v3682
    %v3684 = vpop.xlane.xlu0 %3683
    %v3685 = vsub.f32 %v3676, %v3681
    %v3686 = vsub.f32 %v3677, %v3684
    %v3687 = vmul.f32 %v3685, 1.442695
    %v3688 = vpow.pop %v3687
    %v3689 = vmul.f32 %v3686, 1.442695
    %v3690 = vpow.pop %v3689
    %v3691 = vsel %vm3678, %v3688, 0.0
    %3692 = vadd.xlane.f32.xlu0 %v3691
    %v3693 = vpop.xlane.xlu0 %3692
    %v3694 = vsel %vm3678, %v3690, 0.0
    %3695 = vadd.xlane.f32.xlu0 %v3694
    %v3696 = vpop.xlane.xlu0 %3695
    %v3697 = vrcp.pop %v3693
    %v3698 = vmul.f32 %v3688, %v3697
    %v3699 = vrcp.pop %v3696
    %v3700 = vmul.f32 %v3690, %v3699
    %3701 = vrot.lane.b32.xlu0 %v3507, 64
    %v3702 = vpop.permute.xlu0 %3701
    %v3705 = vsel %vm3678, %v3698, 0
    %3707 = vmatprep.subr.mxu0 0.0
    %3708 = vmatpush1.msra.mxu0 0.0
    %3709 = vmatprep.subr.mxu0 0.0
    %3710 = vmatpush1.msra.mxu0 0.0
    %3711 = vmatprep.subr.mxu0 0.0
    %3712 = vmatpush1.msra.mxu0 0.0
    %3713 = vmatprep.subr.mxu0 0.0
    %3714 = vmatpush1.msra.mxu0 0.0
    %3715 = vmatprep.subr.mxu0 0.0
    %3716 = vmatpush1.msra.mxu0 0.0
    %3717 = vmatprep.subr.mxu0 0.0
    %3718 = vmatpush1.msra.mxu0 0.0
    %3719 = vmatprep.subr.mxu0 0.0
    %3720 = vmatpush1.msra.mxu0 0.0
    %3721 = vmatprep.subr.mxu0 0.0
    %3722 = vmatpush1.msra.mxu0 0.0
    %3723 = vmatprep.subr.mxu0 0.0
    %3724 = vmatpush1.msra.mxu0 0.0
    %3725 = vmatprep.subr.mxu0 0.0
    %3726 = vmatpush1.msra.mxu0 0.0
    %3727 = vmatprep.subr.mxu0 0.0
    %3728 = vmatpush1.msra.mxu0 0.0
    %3729 = vmatprep.subr.mxu0 0.0
    %3730 = vmatpush1.msra.mxu0 0.0
    %3731 = vmatprep.subr.mxu0 0.0
    %3732 = vmatpush1.msra.mxu0 0.0
    %3733 = vmatprep.subr.mxu0 0.0
    %3734 = vmatpush1.msra.mxu0 0.0
    %3735 = vmatprep.subr.mxu0 0.0
    %3736 = vmatpush1.msra.mxu0 0.0
    %3737 = vmatprep.subr.mxu0 0.0
    %3738 = vmatpush1.msra.mxu0 %v3702
    %3739 = vmatprep.subr.mxu0 0.0
    %3740 = vmatpush2.msra.mxu0 0.0
    %3741 = vmatprep.subr.mxu0 0.0
    %3742 = vmatpush2.msra.mxu0 0.0
    %3743 = vmatprep.subr.mxu0 0.0
    %3744 = vmatpush2.msra.mxu0 0.0
    %3745 = vmatprep.subr.mxu0 0.0
    %3746 = vmatpush2.msra.mxu0 0.0
    %3747 = vmatprep.subr.mxu0 0.0
    %3748 = vmatpush2.msra.mxu0 0.0
    %3749 = vmatprep.subr.mxu0 0.0
    %3750 = vmatpush2.msra.mxu0 0.0
    %3751 = vmatprep.subr.mxu0 0.0
    %3752 = vmatpush2.msra.mxu0 0.0
    %3753 = vmatprep.subr.mxu0 0.0
    %3754 = vmatpush2.msra.mxu0 0.0
    %3755 = vmatprep.subr.mxu0 0.0
    %3756 = vmatpush2.msra.mxu0 0.0
    %3757 = vmatprep.subr.mxu0 0.0
    %3758 = vmatpush2.msra.mxu0 0.0
    %3759 = vmatprep.subr.mxu0 0.0
    %3760 = vmatpush2.msra.mxu0 0.0
    %3761 = vmatprep.subr.mxu0 0.0
    %3762 = vmatpush2.msra.mxu0 0.0
    %3763 = vmatprep.subr.mxu0 0.0
    %3764 = vmatpush2.msra.mxu0 0.0
    %3765 = vmatprep.subr.mxu0 0.0
    %3766 = vmatpush2.msra.mxu0 0.0
    %3767 = vmatprep.subr.mxu0 0.0
    %3768 = vmatpush2.msra.mxu0 0.0
    %3769 = vmatprep.subr.mxu0 0.0
    %3770 = vmatpush2.msra.mxu0 0.0
    %3771 = vmatprep.mubr.f32.mxu0 0.0
    %3772 = vmatmul.mubr.f32.gmra.mxu0 %v3705
    %v3773 = vpop.f32.mrf.mxu0
    %v3774 = vadd.f32 0.0, %v3773
    %v3775 = vpop.f32.mrf.mxu0
    %3776 = vdwg.mxu0
    %3777 = vrot.lane.b32.xlu0 %v3512, 64
    %v3778 = vpop.permute.xlu0 %3777
    %v3781 = vsel %vm3678, %v3700, 0
    %3783 = vmatprep.subr.mxu0 0.0
    %3784 = vmatpush1.msra.mxu0 0.0
    %3785 = vmatprep.subr.mxu0 0.0
    %3786 = vmatpush1.msra.mxu0 0.0
    %3787 = vmatprep.subr.mxu0 0.0
    %3788 = vmatpush1.msra.mxu0 0.0
    %3789 = vmatprep.subr.mxu0 0.0
    %3790 = vmatpush1.msra.mxu0 0.0
    %3791 = vmatprep.subr.mxu0 0.0
    %3792 = vmatpush1.msra.mxu0 0.0
    %3793 = vmatprep.subr.mxu0 0.0
    %3794 = vmatpush1.msra.mxu0 0.0
    %3795 = vmatprep.subr.mxu0 0.0
    %3796 = vmatpush1.msra.mxu0 0.0
    %3797 = vmatprep.subr.mxu0 0.0
    %3798 = vmatpush1.msra.mxu0 0.0
    %3799 = vmatprep.subr.mxu0 0.0
    %3800 = vmatpush1.msra.mxu0 0.0
    %3801 = vmatprep.subr.mxu0 0.0
    %3802 = vmatpush1.msra.mxu0 0.0
    %3803 = vmatprep.subr.mxu0 0.0
    %3804 = vmatpush1.msra.mxu0 0.0
    %3805 = vmatprep.subr.mxu0 0.0
    %3806 = vmatpush1.msra.mxu0 0.0
    %3807 = vmatprep.subr.mxu0 0.0
    %3808 = vmatpush1.msra.mxu0 0.0
    %3809 = vmatprep.subr.mxu0 0.0
    %3810 = vmatpush1.msra.mxu0 0.0
    %3811 = vmatprep.subr.mxu0 0.0
    %3812 = vmatpush1.msra.mxu0 0.0
    %3813 = vmatprep.subr.mxu0 0.0
    %3814 = vmatpush1.msra.mxu0 %v3778
    %3815 = vmatprep.subr.mxu0 0.0
    %3816 = vmatpush2.msra.mxu0 0.0
    %3817 = vmatprep.subr.mxu0 0.0
    %3818 = vmatpush2.msra.mxu0 0.0
    %3819 = vmatprep.subr.mxu0 0.0
    %3820 = vmatpush2.msra.mxu0 0.0
    %3821 = vmatprep.subr.mxu0 0.0
    %3822 = vmatpush2.msra.mxu0 0.0
    %3823 = vmatprep.subr.mxu0 0.0
    %3824 = vmatpush2.msra.mxu0 0.0
    %3825 = vmatprep.subr.mxu0 0.0
    %3826 = vmatpush2.msra.mxu0 0.0
    %3827 = vmatprep.subr.mxu0 0.0
    %3828 = vmatpush2.msra.mxu0 0.0
    %3829 = vmatprep.subr.mxu0 0.0
    %3830 = vmatpush2.msra.mxu0 0.0
    %3831 = vmatprep.subr.mxu0 0.0
    %3832 = vmatpush2.msra.mxu0 0.0
    %3833 = vmatprep.subr.mxu0 0.0
    %3834 = vmatpush2.msra.mxu0 0.0
    %3835 = vmatprep.subr.mxu0 0.0
    %3836 = vmatpush2.msra.mxu0 0.0
    %3837 = vmatprep.subr.mxu0 0.0
    %3838 = vmatpush2.msra.mxu0 0.0
    %3839 = vmatprep.subr.mxu0 0.0
    %3840 = vmatpush2.msra.mxu0 0.0
    %3841 = vmatprep.subr.mxu0 0.0
    %3842 = vmatpush2.msra.mxu0 0.0
    %3843 = vmatprep.subr.mxu0 0.0
    %3844 = vmatpush2.msra.mxu0 0.0
    %3845 = vmatprep.subr.mxu0 0.0
    %3846 = vmatpush2.msra.mxu0 0.0
    %3847 = vmatprep.mubr.f32.mxu0 0.0
    %3848 = vmatmul.mubr.f32.gmra.mxu0 %v3781
    %v3849 = vpop.f32.mrf.mxu0
    %v3850 = vadd.f32 0.0, %v3849
    %v3851 = vpop.f32.mrf.mxu0
    %3852 = vdwg.mxu0
    %v3853 = vld [vmem:[#allocation2 + $0x480] sm:$0xff]
    %v3854 = vld [vmem:[#allocation2 + $0x488] sm:$0xff]
    %v3855 = vld [vmem:[#allocation2 + $0x490] sm:$0xff]
    %v3856 = vld [vmem:[#allocation2 + $0x498] sm:$0xff]
    %v3860 = vsel %vm172, %v3774, 0
    %v3863 = vsel %vm172, %v3850, 0
    %3865 = vmatprep.subr.mxu0 0.0
    %3866 = vmatpush1.msra.mxu0 0.0
    %3867 = vmatprep.subr.mxu0 0.0
    %3868 = vmatpush1.msra.mxu0 0.0
    %3869 = vmatprep.subr.mxu0 0.0
    %3870 = vmatpush1.msra.mxu0 0.0
    %3871 = vmatprep.subr.mxu0 0.0
    %3872 = vmatpush1.msra.mxu0 0.0
    %3873 = vmatprep.subr.mxu0 0.0
    %3874 = vmatpush1.msra.mxu0 0.0
    %3875 = vmatprep.subr.mxu0 0.0
    %3876 = vmatpush1.msra.mxu0 0.0
    %3877 = vmatprep.subr.mxu0 0.0
    %3878 = vmatpush1.msra.mxu0 0.0
    %3879 = vmatprep.subr.mxu0 0.0
    %3880 = vmatpush1.msra.mxu0 0.0
    %3881 = vmatprep.subr.mxu0 0.0
    %3882 = vmatpush1.msra.mxu0 0.0
    %3883 = vmatprep.subr.mxu0 0.0
    %3884 = vmatpush1.msra.mxu0 0.0
    %3885 = vmatprep.subr.mxu0 0.0
    %3886 = vmatpush1.msra.mxu0 0.0
    %3887 = vmatprep.subr.mxu0 0.0
    %3888 = vmatpush1.msra.mxu0 0.0
    %3889 = vmatprep.subr.mxu0 0.0
    %3890 = vmatpush1.msra.mxu0 %v3856
    %3891 = vmatprep.subr.mxu0 0.0
    %3892 = vmatpush1.msra.mxu0 %v3855
    %3893 = vmatprep.subr.mxu0 0.0
    %3894 = vmatpush1.msra.mxu0 %v3854
    %3895 = vmatprep.subr.mxu0 0.0
    %3896 = vmatpush1.msra.mxu0 %v3853
    %3897 = vmatprep.subr.mxu0 0.0
    %3898 = vmatpush2.msra.mxu0 0.0
    %3899 = vmatprep.subr.mxu0 0.0
    %3900 = vmatpush2.msra.mxu0 0.0
    %3901 = vmatprep.subr.mxu0 0.0
    %3902 = vmatpush2.msra.mxu0 0.0
    %3903 = vmatprep.subr.mxu0 0.0
    %3904 = vmatpush2.msra.mxu0 0.0
    %3905 = vmatprep.subr.mxu0 0.0
    %3906 = vmatpush2.msra.mxu0 0.0
    %3907 = vmatprep.subr.mxu0 0.0
    %3908 = vmatpush2.msra.mxu0 0.0
    %3909 = vmatprep.subr.mxu0 0.0
    %3910 = vmatpush2.msra.mxu0 0.0
    %3911 = vmatprep.subr.mxu0 0.0
    %3912 = vmatpush2.msra.mxu0 0.0
    %3913 = vmatprep.subr.mxu0 0.0
    %3914 = vmatpush2.msra.mxu0 0.0
    %3915 = vmatprep.subr.mxu0 0.0
    %3916 = vmatpush2.msra.mxu0 0.0
    %3917 = vmatprep.subr.mxu0 0.0
    %3918 = vmatpush2.msra.mxu0 0.0
    %3919 = vmatprep.subr.mxu0 0.0
    %3920 = vmatpush2.msra.mxu0 0.0
    %3921 = vmatprep.subr.mxu0 0.0
    %3922 = vmatpush2.msra.mxu0 0.0
    %3923 = vmatprep.subr.mxu0 0.0
    %3924 = vmatpush2.msra.mxu0 0.0
    %3925 = vmatprep.subr.mxu0 0.0
    %3926 = vmatpush2.msra.mxu0 0.0
    %3927 = vmatprep.subr.mxu0 0.0
    %3928 = vmatpush2.msra.mxu0 0.0
    %3929 = vmatprep.mubr.f32.mxu0 0.0
    %3930 = vmatmul.mubr.f32.gmra.mxu0 %v3860
    %v3931 = vpop.f32.mrf.mxu0
    %v3932 = vadd.f32 %v3433, %v3931
    %v3933 = vpop.f32.mrf.mxu0
    %3934 = vmatprep.mubr.f32.mxu0 0.0
    %3935 = vmatmul.mubr.f32.gmra.mxu0 %v3863
    %v3936 = vpop.f32.mrf.mxu0
    %v3937 = vadd.f32 %v3435, %v3936
    %v3938 = vpop.f32.mrf.mxu0
    %3939 = vdwg.mxu0
    %v3940 = vld [vmem:[#allocation2 + $0x3e0] sm:$0xff]
    %v3941 = vld [vmem:[#allocation2 + $0x3e8] sm:$0xff]
    %v3942 = vld [vmem:[#allocation2 + $0x3f0] sm:$0xff]
    %v3943 = vld [vmem:[#allocation2 + $0x3f8] sm:$0xff]
    %v3944 = vld [vmem:[#allocation4 + $0x16] sm:$0x1]
    %v3945 = vlaneseq
    %v3946 = vshrl.u32 %v3945, 7
    %v3947 = vsub.s32 0, %v3946
    %v3948 = vrot.slane %v3944, %v3947
    %v3950 = vsel %vm172, %v3932, 0
    %v3953 = vsel %vm172, %v3937, 0
    %3955 = vmatprep.subr.mxu0 0.0
    %3956 = vmatpush1.msra.mxu0 0.0
    %3957 = vmatprep.subr.mxu0 0.0
    %3958 = vmatpush1.msra.mxu0 0.0
    %3959 = vmatprep.subr.mxu0 0.0
    %3960 = vmatpush1.msra.mxu0 0.0
    %3961 = vmatprep.subr.mxu0 0.0
    %3962 = vmatpush1.msra.mxu0 0.0
    %3963 = vmatprep.subr.mxu0 0.0
    %3964 = vmatpush1.msra.mxu0 0.0
    %3965 = vmatprep.subr.mxu0 0.0
    %3966 = vmatpush1.msra.mxu0 0.0
    %3967 = vmatprep.subr.mxu0 0.0
    %3968 = vmatpush1.msra.mxu0 0.0
    %3969 = vmatprep.subr.mxu0 0.0
    %3970 = vmatpush1.msra.mxu0 0.0
    %3971 = vmatprep.subr.mxu0 0.0
    %3972 = vmatpush1.msra.mxu0 0.0
    %3973 = vmatprep.subr.mxu0 0.0
    %3974 = vmatpush1.msra.mxu0 0.0
    %3975 = vmatprep.subr.mxu0 0.0
    %3976 = vmatpush1.msra.mxu0 0.0
    %3977 = vmatprep.subr.mxu0 0.0
    %3978 = vmatpush1.msra.mxu0 0.0
    %3979 = vmatprep.subr.mxu0 0.0
    %3980 = vmatpush1.msra.mxu0 %v3943
    %3981 = vmatprep.subr.mxu0 0.0
    %3982 = vmatpush1.msra.mxu0 %v3942
    %3983 = vmatprep.subr.mxu0 0.0
    %3984 = vmatpush1.msra.mxu0 %v3941
    %3985 = vmatprep.subr.mxu0 0.0
    %3986 = vmatpush1.msra.mxu0 %v3940
    %3987 = vmatprep.subr.mxu0 0.0
    %3988 = vmatpush2.msra.mxu0 0.0
    %3989 = vmatprep.subr.mxu0 0.0
    %3990 = vmatpush2.msra.mxu0 0.0
    %3991 = vmatprep.subr.mxu0 0.0
    %3992 = vmatpush2.msra.mxu0 0.0
    %3993 = vmatprep.subr.mxu0 0.0
    %3994 = vmatpush2.msra.mxu0 0.0
    %3995 = vmatprep.subr.mxu0 0.0
    %3996 = vmatpush2.msra.mxu0 0.0
    %3997 = vmatprep.subr.mxu0 0.0
    %3998 = vmatpush2.msra.mxu0 0.0
    %3999 = vmatprep.subr.mxu0 0.0
    %4000 = vmatpush2.msra.mxu0 0.0
    %4001 = vmatprep.subr.mxu0 0.0
    %4002 = vmatpush2.msra.mxu0 0.0
    %4003 = vmatprep.subr.mxu0 0.0
    %4004 = vmatpush2.msra.mxu0 0.0
    %4005 = vmatprep.subr.mxu0 0.0
    %4006 = vmatpush2.msra.mxu0 0.0
    %4007 = vmatprep.subr.mxu0 0.0
    %4008 = vmatpush2.msra.mxu0 0.0
    %4009 = vmatprep.subr.mxu0 0.0
    %4010 = vmatpush2.msra.mxu0 0.0
    %4011 = vmatprep.subr.mxu0 0.0
    %4012 = vmatpush2.msra.mxu0 0.0
    %4013 = vmatprep.subr.mxu0 0.0
    %4014 = vmatpush2.msra.mxu0 0.0
    %4015 = vmatprep.subr.mxu0 0.0
    %4016 = vmatpush2.msra.mxu0 0.0
    %4017 = vmatprep.subr.mxu0 0.0
    %4018 = vmatpush2.msra.mxu0 0.0
    %4019 = vmatprep.mubr.f32.mxu0 0.0
    %4020 = vmatmul.mubr.f32.gmra.mxu0 %v3950
    %v4021 = vpop.f32.mrf.mxu0
    %v4022 = vadd.f32 %v3948, %v4021
    %v4023 = vpop.f32.mrf.mxu0
    %4024 = vmatprep.mubr.f32.mxu0 0.0
    %4025 = vmatmul.mubr.f32.gmra.mxu0 %v3953
    %v4026 = vpop.f32.mrf.mxu0
    %v4027 = vadd.f32 %v3948, %v4026
    %v4028 = vpop.f32.mrf.mxu0
    %4029 = vdwg.mxu0
    %vm4030 = vcmp.gt.f32.partialorder %v4022, 0.0
    %vm4031 = vcmp.gt.f32.partialorder %v4027, 0.0
    %v4032 = vmin.f32 %v4022, 0.0
    %v4033 = vmin.f32 %v4027, 0.0
    %v4034 = vmul.f32 %v4032, 1.442695
    %v4035 = vpow.pop %v4034
    %v4036 = vmul.f32 %v4033, 1.442695
    %v4037 = vpow.pop %v4036
    %v4038 = vsub.f32 %v4035, 1.0
    %v4039 = vsub.f32 %v4037, 1.0
    %v4040 = vsel %vm4030, %v4022, %v4038
    %v4041 = vsel %vm4031, %v4027, %v4039
    %v4042 = vld [vmem:[#allocation2 + $0x400] sm:$0xff]
    %v4043 = vld [vmem:[#allocation2 + $0x408] sm:$0xff]
    %v4044 = vld [vmem:[#allocation2 + $0x410] sm:$0xff]
    %v4045 = vld [vmem:[#allocation2 + $0x418] sm:$0xff]
    %v4046 = vld [vmem:[#allocation4 + $0x17] sm:$0x1]
    %v4047 = vlaneseq
    %v4048 = vshrl.u32 %v4047, 7
    %v4049 = vsub.s32 0, %v4048
    %v4050 = vrot.slane %v4046, %v4049
    %v4052 = vsel %vm172, %v4040, 0
    %v4055 = vsel %vm172, %v4041, 0
    %4057 = vmatprep.subr.mxu0 0.0
    %4058 = vmatpush1.msra.mxu0 0.0
    %4059 = vmatprep.subr.mxu0 0.0
    %4060 = vmatpush1.msra.mxu0 0.0
    %4061 = vmatprep.subr.mxu0 0.0
    %4062 = vmatpush1.msra.mxu0 0.0
    %4063 = vmatprep.subr.mxu0 0.0
    %4064 = vmatpush1.msra.mxu0 0.0
    %4065 = vmatprep.subr.mxu0 0.0
    %4066 = vmatpush1.msra.mxu0 0.0
    %4067 = vmatprep.subr.mxu0 0.0
    %4068 = vmatpush1.msra.mxu0 0.0
    %4069 = vmatprep.subr.mxu0 0.0
    %4070 = vmatpush1.msra.mxu0 0.0
    %4071 = vmatprep.subr.mxu0 0.0
    %4072 = vmatpush1.msra.mxu0 0.0
    %4073 = vmatprep.subr.mxu0 0.0
    %4074 = vmatpush1.msra.mxu0 0.0
    %4075 = vmatprep.subr.mxu0 0.0
    %4076 = vmatpush1.msra.mxu0 0.0
    %4077 = vmatprep.subr.mxu0 0.0
    %4078 = vmatpush1.msra.mxu0 0.0
    %4079 = vmatprep.subr.mxu0 0.0
    %4080 = vmatpush1.msra.mxu0 0.0
    %4081 = vmatprep.subr.mxu0 0.0
    %4082 = vmatpush1.msra.mxu0 %v4045
    %4083 = vmatprep.subr.mxu0 0.0
    %4084 = vmatpush1.msra.mxu0 %v4044
    %4085 = vmatprep.subr.mxu0 0.0
    %4086 = vmatpush1.msra.mxu0 %v4043
    %4087 = vmatprep.subr.mxu0 0.0
    %4088 = vmatpush1.msra.mxu0 %v4042
    %4089 = vmatprep.subr.mxu0 0.0
    %4090 = vmatpush2.msra.mxu0 0.0
    %4091 = vmatprep.subr.mxu0 0.0
    %4092 = vmatpush2.msra.mxu0 0.0
    %4093 = vmatprep.subr.mxu0 0.0
    %4094 = vmatpush2.msra.mxu0 0.0
    %4095 = vmatprep.subr.mxu0 0.0
    %4096 = vmatpush2.msra.mxu0 0.0
    %4097 = vmatprep.subr.mxu0 0.0
    %4098 = vmatpush2.msra.mxu0 0.0
    %4099 = vmatprep.subr.mxu0 0.0
    %4100 = vmatpush2.msra.mxu0 0.0
    %4101 = vmatprep.subr.mxu0 0.0
    %4102 = vmatpush2.msra.mxu0 0.0
    %4103 = vmatprep.subr.mxu0 0.0
    %4104 = vmatpush2.msra.mxu0 0.0
    %4105 = vmatprep.subr.mxu0 0.0
    %4106 = vmatpush2.msra.mxu0 0.0
    %4107 = vmatprep.subr.mxu0 0.0
    %4108 = vmatpush2.msra.mxu0 0.0
    %4109 = vmatprep.subr.mxu0 0.0
    %4110 = vmatpush2.msra.mxu0 0.0
    %4111 = vmatprep.subr.mxu0 0.0
    %4112 = vmatpush2.msra.mxu0 0.0
    %4113 = vmatprep.subr.mxu0 0.0
    %4114 = vmatpush2.msra.mxu0 0.0
    %4115 = vmatprep.subr.mxu0 0.0
    %4116 = vmatpush2.msra.mxu0 0.0
    %4117 = vmatprep.subr.mxu0 0.0
    %4118 = vmatpush2.msra.mxu0 0.0
    %4119 = vmatprep.subr.mxu0 0.0
    %4120 = vmatpush2.msra.mxu0 0.0
    %4121 = vmatprep.mubr.f32.mxu0 0.0
    %4122 = vmatmul.mubr.f32.gmra.mxu0 %v4052
    %v4123 = vpop.f32.mrf.mxu0
    %v4124 = vadd.f32 %v4050, %v4123
    %v4125 = vpop.f32.mrf.mxu0
    %4126 = vmatprep.mubr.f32.mxu0 0.0
    %4127 = vmatmul.mubr.f32.gmra.mxu0 %v4055
    %v4128 = vpop.f32.mrf.mxu0
    %v4129 = vadd.f32 %v4050, %v4128
    %v4130 = vpop.f32.mrf.mxu0
    %4131 = vdwg.mxu0
    %v4132 = vld [vmem:[#allocation2 + $0x420] sm:$0xff]
    %v4133 = vld [vmem:[#allocation2 + $0x428] sm:$0xff]
    %v4134 = vld [vmem:[#allocation2 + $0x430] sm:$0xff]
    %v4135 = vld [vmem:[#allocation2 + $0x438] sm:$0xff]
    %v4136 = vld [vmem:[#allocation4 + $0x18] sm:$0x1]
    %v4137 = vlaneseq
    %v4138 = vshrl.u32 %v4137, 7
    %v4139 = vsub.s32 0, %v4138
    %v4140 = vrot.slane %v4136, %v4139
    %4141 = vmatprep.subr.mxu0 0.0
    %4142 = vmatpush1.msra.mxu0 0.0
    %4143 = vmatprep.subr.mxu0 0.0
    %4144 = vmatpush1.msra.mxu0 0.0
    %4145 = vmatprep.subr.mxu0 0.0
    %4146 = vmatpush1.msra.mxu0 0.0
    %4147 = vmatprep.subr.mxu0 0.0
    %4148 = vmatpush1.msra.mxu0 0.0
    %4149 = vmatprep.subr.mxu0 0.0
    %4150 = vmatpush1.msra.mxu0 0.0
    %4151 = vmatprep.subr.mxu0 0.0
    %4152 = vmatpush1.msra.mxu0 0.0
    %4153 = vmatprep.subr.mxu0 0.0
    %4154 = vmatpush1.msra.mxu0 0.0
    %4155 = vmatprep.subr.mxu0 0.0
    %4156 = vmatpush1.msra.mxu0 0.0
    %4157 = vmatprep.subr.mxu0 0.0
    %4158 = vmatpush1.msra.mxu0 0.0
    %4159 = vmatprep.subr.mxu0 0.0
    %4160 = vmatpush1.msra.mxu0 0.0
    %4161 = vmatprep.subr.mxu0 0.0
    %4162 = vmatpush1.msra.mxu0 0.0
    %4163 = vmatprep.subr.mxu0 0.0
    %4164 = vmatpush1.msra.mxu0 0.0
    %4165 = vmatprep.subr.mxu0 0.0
    %4166 = vmatpush1.msra.mxu0 %v4135
    %4167 = vmatprep.subr.mxu0 0.0
    %4168 = vmatpush1.msra.mxu0 %v4134
    %4169 = vmatprep.subr.mxu0 0.0
    %4170 = vmatpush1.msra.mxu0 %v4133
    %4171 = vmatprep.subr.mxu0 0.0
    %4172 = vmatpush1.msra.mxu0 %v4132
    %4173 = vmatprep.subr.mxu0 0.0
    %4174 = vmatpush2.msra.mxu0 0.0
    %4175 = vmatprep.subr.mxu0 0.0
    %4176 = vmatpush2.msra.mxu0 0.0
    %4177 = vmatprep.subr.mxu0 0.0
    %4178 = vmatpush2.msra.mxu0 0.0
    %4179 = vmatprep.subr.mxu0 0.0
    %4180 = vmatpush2.msra.mxu0 0.0
    %4181 = vmatprep.subr.mxu0 0.0
    %4182 = vmatpush2.msra.mxu0 0.0
    %4183 = vmatprep.subr.mxu0 0.0
    %4184 = vmatpush2.msra.mxu0 0.0
    %4185 = vmatprep.subr.mxu0 0.0
    %4186 = vmatpush2.msra.mxu0 0.0
    %4187 = vmatprep.subr.mxu0 0.0
    %4188 = vmatpush2.msra.mxu0 0.0
    %4189 = vmatprep.subr.mxu0 0.0
    %4190 = vmatpush2.msra.mxu0 0.0
    %4191 = vmatprep.subr.mxu0 0.0
    %4192 = vmatpush2.msra.mxu0 0.0
    %4193 = vmatprep.subr.mxu0 0.0
    %4194 = vmatpush2.msra.mxu0 0.0
    %4195 = vmatprep.subr.mxu0 0.0
    %4196 = vmatpush2.msra.mxu0 0.0
    %4197 = vmatprep.subr.mxu0 0.0
    %4198 = vmatpush2.msra.mxu0 0.0
    %4199 = vmatprep.subr.mxu0 0.0
    %4200 = vmatpush2.msra.mxu0 0.0
    %4201 = vmatprep.subr.mxu0 0.0
    %4202 = vmatpush2.msra.mxu0 0.0
    %4203 = vmatprep.subr.mxu0 0.0
    %4204 = vmatpush2.msra.mxu0 0.0
    %4205 = vmatprep.mubr.f32.mxu0 0.0
    %4206 = vmatmul.mubr.f32.gmra.mxu0 %v4052
    %v4207 = vpop.f32.mrf.mxu0
    %v4208 = vadd.f32 %v4140, %v4207
    %v4209 = vpop.f32.mrf.mxu0
    %4210 = vmatprep.mubr.f32.mxu0 0.0
    %4211 = vmatmul.mubr.f32.gmra.mxu0 %v4055
    %v4212 = vpop.f32.mrf.mxu0
    %v4213 = vadd.f32 %v4140, %v4212
    %v4214 = vpop.f32.mrf.mxu0
    %4215 = vdwg.mxu0
    %v4216 = vxor.u32 %v4208, 2147483648
    %v4217 = vxor.u32 %v4213, 2147483648
    %v4218 = vmul.f32 %v4216, 1.442695
    %v4219 = vpow.pop %v4218
    %v4220 = vmul.f32 %v4217, 1.442695
    %v4221 = vpow.pop %v4220
    %v4222 = vadd.f32 %v4219, 1.0
    %v4223 = vadd.f32 %v4221, 1.0
    %v4224 = vrcp.pop %v4222
    %v4225 = vmul.f32 1.0, %v4224
    %v4226 = vrcp.pop %v4223
    %v4227 = vmul.f32 1.0, %v4226
    %v4228 = vmul.f32 %v4124, %v4225
    %v4229 = vmul.f32 %v4129, %v4227
    %v4230 = vadd.f32 %v3932, %v4228
    %v4231 = vadd.f32 %v3937, %v4229
    %v4232 = vsel %vm172, %v4230, 0.0
    %4233 = vadd.xlane.f32.xlu0 %v4232
    %v4234 = vpop.xlane.xlu0 %4233
    %v4235 = vsel %vm172, %v4231, 0.0
    %4236 = vadd.xlane.f32.xlu0 %v4235
    %v4237 = vpop.xlane.xlu0 %4236
    %v4238 = vmul.f32 %v4234, %v2888
    %v4239 = vmul.f32 %v4237, %v2888
    %v4240 = vsub.f32 %v4230, %v4238
    %v4241 = vsub.f32 %v4231, %v4239
    %v4242 = vmul.f32 %v4240, %v4240
    %v4243 = vmul.f32 %v4241, %v4241
    %v4244 = vsel %vm172, %v4242, 0.0
    %4245 = vadd.xlane.f32.xlu0 %v4244
    %v4246 = vpop.xlane.xlu0 %4245
    %v4247 = vsel %vm172, %v4243, 0.0
    %4248 = vadd.xlane.f32.xlu0 %v4247
    %v4249 = vpop.xlane.xlu0 %4248
    %v4250 = vmul.f32 %v4246, %v2888
    %v4251 = vmul.f32 %v4249, %v2888
    %v4252 = vadd.f32 %v4250, 1e-05
    %v4253 = vadd.f32 %v4251, 1e-05
    %v4254 = vrsqrt.pop %v4252
    %v4255 = vrsqrt.pop %v4253
    %v4256 = vmul.f32 %v4240, %v4254
    %v4257 = vmul.f32 %v4241, %v4255
    %v4258 = vld [vmem:[#allocation4 + $0x19] sm:$0x1]
    %v4259 = vlaneseq
    %v4260 = vshrl.u32 %v4259, 7
    %v4261 = vsub.s32 0, %v4260
    %v4262 = vrot.slane %v4258, %v4261
    %v4263 = vmul.f32 %v4256, %v4262
    %v4264 = vmul.f32 %v4257, %v4262
    %v4265 = vld [vmem:[#allocation4 + $0x1a] sm:$0x1]
    %v4266 = vlaneseq
    %v4267 = vshrl.u32 %v4266, 7
    %v4268 = vsub.s32 0, %v4267
    %v4269 = vrot.slane %v4265, %v4268
    %v4270 = vadd.f32 %v4263, %v4269
    %v4271 = vadd.f32 %v4264, %v4269
    %v4274 = vadd.f32 %v4270, %v3068
    %v4275 = vadd.f32 %v4271, %v3070
    %v4276 = vld [vmem:[#allocation2 + $0x4a0] sm:$0xff]
    %v4277 = vld [vmem:[#allocation2 + $0x4a8] sm:$0xff]
    %v4278 = vld [vmem:[#allocation2 + $0x4b0] sm:$0xff]
    %v4279 = vld [vmem:[#allocation2 + $0x4b8] sm:$0xff]
    %v4280 = vld [vmem:[#allocation4 + $0x1b] sm:$0x1]
    %v4281 = vlaneseq
    %v4282 = vshrl.u32 %v4281, 7
    %v4283 = vsub.s32 0, %v4282
    %v4284 = vrot.slane %v4280, %v4283
    %v4286 = vsel %vm172, %v4274, 0
    %v4289 = vsel %vm172, %v4275, 0
    %4291 = vmatprep.subr.mxu0 0.0
    %4292 = vmatpush1.msra.mxu0 0.0
    %4293 = vmatprep.subr.mxu0 0.0
    %4294 = vmatpush1.msra.mxu0 0.0
    %4295 = vmatprep.subr.mxu0 0.0
    %4296 = vmatpush1.msra.mxu0 0.0
    %4297 = vmatprep.subr.mxu0 0.0
    %4298 = vmatpush1.msra.mxu0 0.0
    %4299 = vmatprep.subr.mxu0 0.0
    %4300 = vmatpush1.msra.mxu0 0.0
    %4301 = vmatprep.subr.mxu0 0.0
    %4302 = vmatpush1.msra.mxu0 0.0
    %4303 = vmatprep.subr.mxu0 0.0
    %4304 = vmatpush1.msra.mxu0 0.0
    %4305 = vmatprep.subr.mxu0 0.0
    %4306 = vmatpush1.msra.mxu0 0.0
    %4307 = vmatprep.subr.mxu0 0.0
    %4308 = vmatpush1.msra.mxu0 0.0
    %4309 = vmatprep.subr.mxu0 0.0
    %4310 = vmatpush1.msra.mxu0 0.0
    %4311 = vmatprep.subr.mxu0 0.0
    %4312 = vmatpush1.msra.mxu0 0.0
    %4313 = vmatprep.subr.mxu0 0.0
    %4314 = vmatpush1.msra.mxu0 0.0
    %4315 = vmatprep.subr.mxu0 0.0
    %4316 = vmatpush1.msra.mxu0 %v4279
    %4317 = vmatprep.subr.mxu0 0.0
    %4318 = vmatpush1.msra.mxu0 %v4278
    %4319 = vmatprep.subr.mxu0 0.0
    %4320 = vmatpush1.msra.mxu0 %v4277
    %4321 = vmatprep.subr.mxu0 0.0
    %4322 = vmatpush1.msra.mxu0 %v4276
    %4323 = vmatprep.subr.mxu0 0.0
    %4324 = vmatpush2.msra.mxu0 0.0
    %4325 = vmatprep.subr.mxu0 0.0
    %4326 = vmatpush2.msra.mxu0 0.0
    %4327 = vmatprep.subr.mxu0 0.0
    %4328 = vmatpush2.msra.mxu0 0.0
    %4329 = vmatprep.subr.mxu0 0.0
    %4330 = vmatpush2.msra.mxu0 0.0
    %4331 = vmatprep.subr.mxu0 0.0
    %4332 = vmatpush2.msra.mxu0 0.0
    %4333 = vmatprep.subr.mxu0 0.0
    %4334 = vmatpush2.msra.mxu0 0.0
    %4335 = vmatprep.subr.mxu0 0.0
    %4336 = vmatpush2.msra.mxu0 0.0
    %4337 = vmatprep.subr.mxu0 0.0
    %4338 = vmatpush2.msra.mxu0 0.0
    %4339 = vmatprep.subr.mxu0 0.0
    %4340 = vmatpush2.msra.mxu0 0.0
    %4341 = vmatprep.subr.mxu0 0.0
    %4342 = vmatpush2.msra.mxu0 0.0
    %4343 = vmatprep.subr.mxu0 0.0
    %4344 = vmatpush2.msra.mxu0 0.0
    %4345 = vmatprep.subr.mxu0 0.0
    %4346 = vmatpush2.msra.mxu0 0.0
    %4347 = vmatprep.subr.mxu0 0.0
    %4348 = vmatpush2.msra.mxu0 0.0
    %4349 = vmatprep.subr.mxu0 0.0
    %4350 = vmatpush2.msra.mxu0 0.0
    %4351 = vmatprep.subr.mxu0 0.0
    %4352 = vmatpush2.msra.mxu0 0.0
    %4353 = vmatprep.subr.mxu0 0.0
    %4354 = vmatpush2.msra.mxu0 0.0
    %4355 = vmatprep.mubr.f32.mxu0 0.0
    %4356 = vmatmul.mubr.f32.gmra.mxu0 %v4286
    %v4357 = vpop.f32.mrf.mxu0
    %v4358 = vadd.f32 %v4284, %v4357
    %v4359 = vpop.f32.mrf.mxu0
    %4360 = vmatprep.mubr.f32.mxu0 0.0
    %4361 = vmatmul.mubr.f32.gmra.mxu0 %v4289
    %v4362 = vpop.f32.mrf.mxu0
    %v4363 = vadd.f32 %v4284, %v4362
    %v4364 = vpop.f32.mrf.mxu0
    %4365 = vdwg.mxu0
    %v4366 = vtanh.pop %v4358
    %v4367 = vtanh.pop %v4363
    %vm4368 = vcmask 7168
    %4369 = vst.msk [vmem:[%s3] sm:$0xff] %vm4368, %v4366
    %4370 = vst.msk [vmem:[%s3 + $0x8] sm:$0xff] %vm4368, %v4367
    // Predicated region
    $region22: #{tft_forward.1} parent=1 // pred_check
      _
    $region23: #{tft_forward.1} parent=1 // pred_check_branch
      %4372 = sbr.rel (0) target = $region25
    $region24: #{tft_forward.1} parent=1 // pred_region
      _
    $region25: #{tft_forward.1} parent=1 // pred_fallthru
      _
    // Predicated region
    $region26: #{tft_forward.1} parent=1 // pred_check
      _
    $region27: #{tft_forward.1} parent=1 // pred_check_branch
      %4374 = sbr.rel (0) target = $region29
    $region28: #{tft_forward.1} parent=1 // pred_region
      _
    $region29: #{tft_forward.1} parent=1 // pred_fallthru
      _
    %4375 = vsyncpa [#allocation3], 1
    %4376 = vsyncpa [#allocation5], 1

</llo_original>
